<compile_context>
chip_gen: v7x
topology: tpu7x:2x2x1
jax: 0.10.0
libtpu: 0.0.40
codegen_flags: <defaults>
</compile_context>

<pallas_src>
import functools

import jax
import jax.numpy as jnp
from jax.experimental import pallas as pl
from jax.experimental.pallas import tpu as pltpu

BN_EPS = 1e-5
K_PAD = 128  # lane-dense logits width


def _round_up(v, m):
    return ((v + m - 1) // m) * m


def _cparams(dimension_semantics, vmem_limit_bytes=None):
    if vmem_limit_bytes is None:
        return pltpu.CompilerParams(dimension_semantics=dimension_semantics)
    return pltpu.CompilerParams(dimension_semantics=dimension_semantics,
                                vmem_limit_bytes=vmem_limit_bytes)


# ----------------------------------------------------------------------------
# Pallas kernels
# ----------------------------------------------------------------------------
def _stn_chain_kernel(xc_ref, w1_ref, w2_ref, w3_ref, gmax_ref):
    """STN3d point branch: relu(xc@W1p) -> relu(@W2) -> relu(@W3) -> running max.

    W1p has zero rows for the ensemble columns of xc, so this equals the
    original x-only chain.  The chain is bias-free and ReLU-terminated, so
    zero-padded rows contribute exactly 0 <= max: no padding mask needed and
    the accumulator can be initialized to 0.
    """
    t = pl.program_id(1)

    @pl.when(t == 0)
    def _():
        gmax_ref[...] = jnp.zeros(gmax_ref.shape, gmax_ref.dtype)

    x = xc_ref[0]                                              # (block_n, n+ne) bf16
    h = jnp.maximum(jnp.dot(x, w1_ref[...],
                            preferred_element_type=jnp.float32), 0.0)
    h = jnp.maximum(jnp.dot(h.astype(w2_ref.dtype), w2_ref[...],
                            preferred_element_type=jnp.float32), 0.0)
    h = jnp.maximum(jnp.dot(h.astype(w3_ref.dtype), w3_ref[...],
                            preferred_element_type=jnp.float32), 0.0)
    gmax_ref[0] = jnp.maximum(gmax_ref[0], jnp.max(h, axis=0, keepdims=True))


def _feat_chain_kernel(xc_ref, tw1_ref, w2_ref, w3_ref, gmax_ref, *,
                       n_valid, n_padded, block_n):
    """PointNetfeat: conv1 (trans folded) -> conv2 -> conv3 -> running max."""
    t = pl.program_id(1)
    last = pl.num_programs(1) - 1

    @pl.when(t == 0)
    def _():
        gmax_ref[...] = jnp.full(gmax_ref.shape, -jnp.inf, gmax_ref.dtype)

    x = xc_ref[0]                                              # (block_n, n+ne) bf16
    # conv1: [x @ trans | c] @ W1  ==  xc @ [trans @ W1x ; W1c]  (tw1, per-batch)
    h1 = jnp.maximum(jnp.dot(x, tw1_ref[0],
                             preferred_element_type=jnp.float32), 0.0)
    h2 = jnp.maximum(jnp.dot(h1.astype(w2_ref.dtype), w2_ref[...],
                             preferred_element_type=jnp.float32), 0.0)
    h3 = jnp.dot(h2.astype(w3_ref.dtype), w3_ref[...],
                 preferred_element_type=jnp.float32)           # bn3, no ReLU

    if n_valid != n_padded:
        # Only the last point tile contains padded rows; mask them there only.
        @pl.when(t == last)
        def _():
            row = t * block_n + jax.lax.broadcasted_iota(
                jnp.int32, (block_n, 1), 0)
            h3m = jnp.where(row < n_valid, h3, -jnp.inf)
            gmax_ref[0] = jnp.maximum(gmax_ref[0],
                                      jnp.max(h3m, axis=0, keepdims=True))

        @pl.when(t != last)
        def _():
            gmax_ref[0] = jnp.maximum(gmax_ref[0],
                                      jnp.max(h3, axis=0, keepdims=True))
    else:
        gmax_ref[0] = jnp.maximum(gmax_ref[0],
                                  jnp.max(h3, axis=0, keepdims=True))


def _cls_chain_kernel(xc_ref, tw1_ref, gw_ref, w1pf_ref, w2_ref, w3x_ref,
                      w3c_ref, w4_ref, b4_ref, out_ref):
    """Dense head; pointfeat recomputed in-kernel, global part injected as shift."""
    x = xc_ref[0]                                              # (block_n, n+ne) bf16
    # Recompute pointfeat (conv1 of the feature branch) -- no HBM round trip.
    h1 = jnp.maximum(jnp.dot(x, tw1_ref[0],
                             preferred_element_type=jnp.float32), 0.0)
    # cls conv1: [g | pointfeat] @ W1 == g@W1g (per-batch shift) + pf@W1pf
    h = jnp.dot(h1.astype(w1pf_ref.dtype), w1pf_ref[...],
                preferred_element_type=jnp.float32) + gw_ref[0]
    h = jnp.maximum(h, 0.0)                                    # (block_n, 512)
    h = jnp.maximum(jnp.dot(h.astype(w2_ref.dtype), w2_ref[...],
                            preferred_element_type=jnp.float32), 0.0)
    # cls conv3: [h | c] @ W3 == h@W3x + xc@W3c_pad  (W3c_pad zero on x rows)
    h = (jnp.dot(h.astype(w3x_ref.dtype), w3x_ref[...],
                 preferred_element_type=jnp.float32) +
         jnp.dot(x, w3c_ref[...], preferred_element_type=jnp.float32))
    h = jnp.maximum(h, 0.0)                                    # (block_n, 128)
    y = jnp.dot(h.astype(w4_ref.dtype), w4_ref[...],
                preferred_element_type=jnp.float32) + b4_ref[...]
    out_ref[0] = y.astype(out_ref.dtype)                       # lane-dense (., 128)


# ----------------------------------------------------------------------------
# pallas_call wrappers
# ----------------------------------------------------------------------------
def stn_chain(xc, w1, w2, w3, *, block_n, vmem_limit=None):
    B, N_pad, nc = xc.shape
    T = N_pad // block_n
    gmax = pl.pallas_call(
        _stn_chain_kernel,
        out_shape=jax.ShapeDtypeStruct((B, 1, 1024), jnp.float32),
        grid=(B, T),
        in_specs=[
            pl.BlockSpec((1, block_n, nc), lambda b, t: (b, t, 0)),
            pl.BlockSpec((nc, 64), lambda b, t: (0, 0)),
            pl.BlockSpec((64, 128), lambda b, t: (0, 0)),
            pl.BlockSpec((128, 1024), lambda b, t: (0, 0)),
        ],
        out_specs=pl.BlockSpec((1, 1, 1024), lambda b, t: (b, 0, 0)),
        compiler_params=_cparams(("parallel", "arbitrary"), vmem_limit),
    )(xc, w1, w2, w3)
    return gmax[:, 0, :]


def feat_chain(xc, tw1, w2, w3, *, n_valid, block_n, vmem_limit=None):
    B, N_pad, nc = xc.shape
    T = N_pad // block_n
    kernel = functools.partial(_feat_chain_kernel, n_valid=n_valid,
                               n_padded=N_pad, block_n=block_n)
    gmax = pl.pallas_call(
        kernel,
        out_shape=jax.ShapeDtypeStruct((B, 1, 1024), jnp.float32),
        grid=(B, T),
        in_specs=[
            pl.BlockSpec((1, block_n, nc), lambda b, t: (b, t, 0)),
            pl.BlockSpec((1, nc, 64), lambda b, t: (b, 0, 0)),
            pl.BlockSpec((64, 128), lambda b, t: (0, 0)),
            pl.BlockSpec((128, 1024), lambda b, t: (0, 0)),
        ],
        out_specs=pl.BlockSpec((1, 1, 1024), lambda b, t: (b, 0, 0)),
        compiler_params=_cparams(("parallel", "arbitrary"), vmem_limit),
    )(xc, tw1, w2, w3)
    return gmax[:, 0, :]


def cls_chain(xc, tw1, gw, w1pf, w2, w3x, w3c, w4, b4, *, block_n,
              vmem_limit=None):
    B, N_pad, nc = xc.shape
    T = N_pad // block_n
    return pl.pallas_call(
        _cls_chain_kernel,
        out_shape=jax.ShapeDtypeStruct((B, N_pad, K_PAD), jnp.float32),
        grid=(B, T),
        in_specs=[
            pl.BlockSpec((1, block_n, nc), lambda b, t: (b, t, 0)),
            pl.BlockSpec((1, nc, 64), lambda b, t: (b, 0, 0)),
            pl.BlockSpec((1, 1, 512), lambda b, t: (b, 0, 0)),
            pl.BlockSpec((64, 512), lambda b, t: (0, 0)),
            pl.BlockSpec((512, 256), lambda b, t: (0, 0)),
            pl.BlockSpec((256, 128), lambda b, t: (0, 0)),
            pl.BlockSpec((nc, 128), lambda b, t: (0, 0)),
            pl.BlockSpec((128, K_PAD), lambda b, t: (0, 0)),
            pl.BlockSpec((1, K_PAD), lambda b, t: (0, 0)),
        ],
        out_specs=pl.BlockSpec((1, block_n, K_PAD), lambda b, t: (b, t, 0)),
        compiler_params=_cparams(("parallel", "parallel"), vmem_limit),
    )(xc, tw1, gw, w1pf, w2, w3x, w3c, w4, b4)


# ----------------------------------------------------------------------------
# Forward pass (plain-JAX glue around the fused kernels)
# ----------------------------------------------------------------------------
def pointnet_densecls_forward(x, c, params, *, n, n_ensemble, k, block_n=None):
    """x: (B, n, N), c: (B, n_ensemble, N) -> logits (B, k, N)  (PyTorch NCW)."""
    B, _, N = x.shape
    nc = n + n_ensemble
    compute_dtype = params["stn_w1_pad"].dtype      # bf16 (or f32)

    if block_n is None:
        block_n = min(_round_up(N, 16), 512)
        for cand in (1024, 2048):                   # bigger tile if padding waste <=10%
            if N >= cand and (_round_up(N, cand) - N) <= 0.10 * N:
                block_n = cand
    assert block_n % 16 == 0, "row tile must be a multiple of 16 (bf16 sublane)"
    N_pad = _round_up(N, block_n)
    # Raise scoped VMEM for big tiles (v7x: 32 MiB default / 64 MiB physical).
    vmem_limit = (48 * 1024 * 1024) if block_n >= 1024 else None

    # Single shared point stream [x | c] in NWC layout, zero-padded on points.
    xc = jnp.concatenate([jnp.transpose(x, (0, 2, 1)),
                          jnp.transpose(c, (0, 2, 1))], axis=2)      # (B, N, nc) f32
    if N_pad != N:
        xc = jnp.pad(xc, ((0, 0), (0, N_pad - N), (0, 0)))
    xc = xc.astype(compute_dtype)

    # ---- STN3d: fused point branch + tiny XLA FC head -----------------------
    g_stn = stn_chain(xc, params["stn_w1_pad"], params["stn_conv2"],
                      params["stn_conv3"], block_n=block_n,
                      vmem_limit=vmem_limit)                         # (B, 1024) f32
    h = jax.nn.relu(g_stn @ params["stn_fc1"])
    h = jax.nn.relu(h @ params["stn_fc2"])
    tr = h @ params["stn_fc3"] + params["stn_fc3_b"][None, :]
    trans = tr.reshape(B, n, n) + jnp.eye(n, dtype=tr.dtype)[None]

    # Fold the learned point transform into feat conv1 (per-batch (nc, 64) weight):
    # [x @ trans | c] @ W1 == xc @ [trans @ W1x ; W1c]
    tw1x = jnp.einsum("bij,jo->bio", trans, params["feat_w1x"])      # (B, n, 64)
    w1c = jnp.broadcast_to(params["feat_w1c"][None], (B, n_ensemble, 64))
    tw1 = jnp.concatenate([tw1x, w1c], axis=1).astype(compute_dtype)  # (B, nc, 64)

    # ---- PointNetfeat: fused conv1 -> conv2 -> conv3 + max (no pointfeat I/O)
    g = feat_chain(xc, tw1, params["feat_conv2"], params["feat_conv3"],
                   n_valid=N, block_n=block_n, vmem_limit=vmem_limit)  # (B, 1024)

    # Global-feature contribution to cls conv1 as a per-batch shift (no concat).
    gW = (g @ params["cls_w1g"])[:, None, :]                         # (B, 1, 512) f32

    # ---- Dense classification head: fused conv1..conv4, lane-dense logits ---
    out = cls_chain(xc, tw1, gW, params["cls_w1pf"], params["cls_conv2"],
                    params["cls_w3x"], params["cls_w3c_pad"],
                    params["cls_w4_pad"], params["cls_b4_pad"],
                    block_n=block_n, vmem_limit=vmem_limit)          # (B, N_pad, 128)
    out = out[:, :N, :k]
    return jnp.transpose(out, (0, 2, 1))                             # (B, k, N)


# ----------------------------------------------------------------------------
# Parameters: raw init (as (Cin, Cout) matrices) + BN-folding / weight splits
# ----------------------------------------------------------------------------
def init_params(key, n, n_ensemble, k):
    shapes = {
        "stn_conv1": (n, 64), "stn_conv2": (64, 128), "stn_conv3": (128, 1024),
        "stn_fc1": (1024, 512), "stn_fc2": (512, 256), "stn_fc3": (256, n * n),
        "feat_conv1": (n + n_ensemble, 64), "feat_conv2": (64, 128),
        "feat_conv3": (128, 1024),
        "cls_conv1": (1088, 512), "cls_conv2": (512, 256),
        "cls_conv3": (256 + n_ensemble, 128), "cls_conv4": (128, k),
    }
    names = sorted(shapes)
    keys = jax.random.split(key, len(names) + 2)
    params = {}
    for name, kk in zip(names, keys[:len(names)]):
        cin, cout = shapes[name]
        params[name] = jax.random.normal(kk, (cin, cout), jnp.float32) / (cin ** 0.5)
    params["stn_fc3_b"] = jax.random.normal(keys[-2], (n * n,), jnp.float32) * 0.01
    params["cls_conv4_b"] = jax.random.normal(keys[-1], (k,), jnp.float32) * 0.01
    return params


def prepare_params(raw, *, n, n_ensemble, k, dtype=jnp.bfloat16):
    """Fold eval-mode BN into weights; split/pad concat-fed weights for the kernels."""
    s = 1.0 / (1.0 + BN_EPS) ** 0.5
    p = {}
    # STN3d point branch: zero rows for the ensemble columns of the shared xc stream.
    w1 = raw["stn_conv1"] * s
    p["stn_w1_pad"] = jnp.concatenate(
        [w1, jnp.zeros((n_ensemble, 64), w1.dtype)], axis=0).astype(dtype)
    p["stn_conv2"] = (raw["stn_conv2"] * s).astype(dtype)
    p["stn_conv3"] = (raw["stn_conv3"] * s).astype(dtype)
    # STN FC head stays f32 in XLA (B rows only).
    p["stn_fc1"] = (raw["stn_fc1"] * s).astype(jnp.float32)
    p["stn_fc2"] = (raw["stn_fc2"] * s).astype(jnp.float32)
    p["stn_fc3"] = raw["stn_fc3"].astype(jnp.float32)
    p["stn_fc3_b"] = raw["stn_fc3_b"].astype(jnp.float32)
    # PointNetfeat conv1 split: x-part combined with trans per batch in XLA.
    f1 = raw["feat_conv1"] * s
    p["feat_w1x"] = f1[:n].astype(jnp.float32)
    p["feat_w1c"] = f1[n:].astype(jnp.float32)
    p["feat_conv2"] = (raw["feat_conv2"] * s).astype(dtype)
    p["feat_conv3"] = (raw["feat_conv3"] * s).astype(dtype)
    # Dense head: conv1 split global/pointfeat; conv3 split h/c with zero x-rows;
    # conv4 zero-padded to a lane-dense 128-wide output.
    c1 = raw["cls_conv1"] * s
    p["cls_w1g"] = c1[:1024].astype(jnp.float32)     # per-batch matmul in XLA
    p["cls_w1pf"] = c1[1024:].astype(dtype)
    p["cls_conv2"] = (raw["cls_conv2"] * s).astype(dtype)
    c3 = raw["cls_conv3"] * s
    p["cls_w3x"] = c3[:256].astype(dtype)
    p["cls_w3c_pad"] = jnp.concatenate(
        [jnp.zeros((n, 128), c3.dtype), c3[256:]], axis=0).astype(dtype)
    p["cls_w4_pad"] = jnp.pad(raw["cls_conv4"],
                              ((0, 0), (0, K_PAD - k))).astype(dtype)
    p["cls_b4_pad"] = jnp.pad(raw["cls_conv4_b"],
                              (0, K_PAD - k)).astype(jnp.float32)[None, :]
    return p


# ----------------------------------------------------------------------------
# Pure-JAX reference (eval-mode BN, f32), used for a correctness check
# ----------------------------------------------------------------------------
def reference_forward(x, c, raw, *, n, n_ensemble, k):
    s = 1.0 / (1.0 + BN_EPS) ** 0.5
    B, _, N = x.shape
    xt = jnp.transpose(x, (0, 2, 1))
    ct = jnp.transpose(c, (0, 2, 1))
    # STN3d
    h = jax.nn.relu(xt @ raw["stn_conv1"] * s)
    h = jax.nn.relu(h @ raw["stn_conv2"] * s)
    h = jax.nn.relu(h @ raw["stn_conv3"] * s)
    g = jnp.max(h, axis=1)
    g = jax.nn.relu(g @ raw["stn_fc1"] * s)
    g = jax.nn.relu(g @ raw["stn_fc2"] * s)
    tr = g @ raw["stn_fc3"] + raw["stn_fc3_b"][None, :]
    trans = tr.reshape(B, n, n) + jnp.eye(n, dtype=tr.dtype)[None]
    # PointNetfeat (global_feat=False)
    xtr = jnp.einsum("bni,bij->bnj", xt, trans)
    h0 = jnp.concatenate([xtr, ct], axis=2)
    pf = jax.nn.relu(h0 @ raw["feat_conv1"] * s)
    h = jax.nn.relu(pf @ raw["feat_conv2"] * s)
    h = h @ raw["feat_conv3"] * s
    gg = jnp.max(h, axis=1)
    grep = jnp.broadcast_to(gg[:, None, :], (B, N, 1024))
    feat = jnp.concatenate([grep, pf], axis=2)
    # Dense head
    h = jax.nn.relu(feat @ raw["cls_conv1"] * s)
    h = jax.nn.relu(h @ raw["cls_conv2"] * s)
    h = jnp.concatenate([h, ct], axis=2)
    h = jax.nn.relu(h @ raw["cls_conv3"] * s)
    out = h @ raw["cls_conv4"] + raw["cls_conv4_b"][None, None, :]
    return jnp.transpose(out, (0, 2, 1))


# ----------------------------------------------------------------------------
if __name__ == "__main__":
    # N=20 with block_n=16 exercises padding + last-tile masking (N_pad=32,
    # 2 tiles per batch) and the multi-tile running-max accumulation.
    B, n, n_ensemble, k, N = 2, 4, 20, 2, 20

    key = jax.random.PRNGKey(0)
    kp, kx, kc = jax.random.split(key, 3)
    raw = init_params(kp, n, n_ensemble, k)
    params = prepare_params(raw, n=n, n_ensemble=n_ensemble, k=k,
                            dtype=jnp.bfloat16)

    x = jax.random.normal(kx, (B, n, N), jnp.float32)            # (B, n, n_pts)
    c = jax.random.normal(kc, (B, n_ensemble, N), jnp.float32)   # (B, n_ensemble, n_pts)

    fwd = jax.jit(functools.partial(pointnet_densecls_forward,
                                    n=n, n_ensemble=n_ensemble, k=k, block_n=16))
    out = fwd(x, c, params)
    jax.block_until_ready(out)

    assert out.shape == (B, k, N), out.shape
    assert out.dtype == jnp.float32

    ref = jax.jit(functools.partial(reference_forward,
                                    n=n, n_ensemble=n_ensemble, k=k))(x, c, raw)
    jax.block_until_ready(ref)
    # bf16 MXU operands vs. f32 (default-precision) reference: scaled tolerance.
    err = float(jnp.max(jnp.abs(out - ref)))
    scale = float(1.0 + jnp.max(jnp.abs(ref)))
    assert err / scale < 8e-2, f"max abs error {err} (scale {scale}) vs reference"
    print("KERNEL_OK")
</pallas_src>

<mosaic_0001>
module attributes {stable_mosaic.version = 11 : i64} {
  func.func @_stn_chain_kernel(%arg0: i32, %arg1: i32, %arg2: memref<1x16x24xbf16, #tpu.memory_space<vmem>>, %arg3: memref<24x64xbf16, #tpu.memory_space<vmem>>, %arg4: memref<64x128xbf16, #tpu.memory_space<vmem>>, %arg5: memref<128x1024xbf16, #tpu.memory_space<vmem>>, %arg6: memref<1x1x1024xf32, #tpu.memory_space<vmem>>) attributes {dimension_semantics = [#tpu.dimension_semantics<parallel>, #tpu.dimension_semantics<arbitrary>], iteration_bounds = array<i64: 2, 2>, scalar_prefetch = 0 : i64, scratch_operands = 0 : i64, tpu.core_type = #tpu.core_type<tc>, window_params = [{transform_indices = @transform_0, window_bounds = array<i64: 1, 16, 24>}, {pipeline_mode = #tpu.pipeline_mode<synchronous>, transform_indices = @transform_1, window_bounds = array<i64: 24, 64>}, {pipeline_mode = #tpu.pipeline_mode<synchronous>, transform_indices = @transform_2, window_bounds = array<i64: 64, 128>}, {pipeline_mode = #tpu.pipeline_mode<synchronous>, transform_indices = @transform_3, window_bounds = array<i64: 128, 1024>}, {transform_indices = @transform_4, window_bounds = array<i64: 1, 1, 1024>}]} {
    %c0_i32 = arith.constant 0 : i32
    %0 = arith.cmpi eq, %arg1, %c0_i32 : i32
    %1 = arith.extui %0 : i1 to i32
    %c0_i32_0 = arith.constant 0 : i32
    %2 = arith.cmpi ne, %1, %c0_i32_0 : i32
    scf.if %2 {
      %cst_21 = arith.constant 0.000000e+00 : f32
      %27 = vector.broadcast %cst_21 : f32 to vector<1x1x1024xf32>
      %c0_22 = arith.constant 0 : index
      %c0_23 = arith.constant 0 : index
      %c0_24 = arith.constant 0 : index
      %28 = vector.load %arg6[%c0_22, %c0_23, %c0_24] : memref<1x1x1024xf32, #tpu.memory_space<vmem>>, vector<1x1x1024xf32>
      tpu.vector_store %arg6[%c0_22, %c0_23, %c0_24], %27 {strides = array<i32>} : memref<1x1x1024xf32, #tpu.memory_space<vmem>>, vector<1x1x1024xf32>,
    } else {
    }
    %c0 = arith.constant 0 : index
    %c0_1 = arith.constant 0 : index
    %c0_2 = arith.constant 0 : index
    %3 = vector.load %arg2[%c0, %c0_1, %c0_2] : memref<1x16x24xbf16, #tpu.memory_space<vmem>>, vector<1x16x24xbf16>
    %4 = vector.shape_cast %3 : vector<1x16x24xbf16> to vector<16x24xbf16>
    %c0_3 = arith.constant 0 : index
    %c0_4 = arith.constant 0 : index
    %5 = vector.load %arg3[%c0_3, %c0_4] : memref<24x64xbf16, #tpu.memory_space<vmem>>, vector<24x64xbf16>
    %cst = arith.constant dense<0.000000e+00> : vector<16x64xf32>
    %6 = tpu.matmul %4, %5, %cst {dimension_numbers = #tpu.dot_dimension_numbers<[1], [0], [0], [1], [0, 0, 1, 1], [], []>} : vector<16x24xbf16>, vector<24x64xbf16>, vector<16x64xf32> -> vector<16x64xf32>
    %cst_5 = arith.constant 0.000000e+00 : f32
    %7 = vector.broadcast %cst_5 : f32 to vector<16x64xf32>
    %8 = arith.maximumf %6, %7 : vector<16x64xf32>
    %9 = arith.truncf %8 : vector<16x64xf32> to vector<16x64xbf16>
    %c0_6 = arith.constant 0 : index
    %c0_7 = arith.constant 0 : index
    %10 = vector.load %arg4[%c0_6, %c0_7] : memref<64x128xbf16, #tpu.memory_space<vmem>>, vector<64x128xbf16>
    %cst_8 = arith.constant dense<0.000000e+00> : vector<16x128xf32>
    %11 = tpu.matmul %9, %10, %cst_8 {dimension_numbers = #tpu.dot_dimension_numbers<[1], [0], [0], [1], [0, 0, 1, 1], [], []>} : vector<16x64xbf16>, vector<64x128xbf16>, vector<16x128xf32> -> vector<16x128xf32>
    %cst_9 = arith.constant 0.000000e+00 : f32
    %12 = vector.broadcast %cst_9 : f32 to vector<16x128xf32>
    %13 = arith.maximumf %11, %12 : vector<16x128xf32>
    %14 = arith.truncf %13 : vector<16x128xf32> to vector<16x128xbf16>
    %c0_10 = arith.constant 0 : index
    %c0_11 = arith.constant 0 : index
    %15 = vector.load %arg5[%c0_10, %c0_11] : memref<128x1024xbf16, #tpu.memory_space<vmem>>, vector<128x1024xbf16>
    %cst_12 = arith.constant dense<0.000000e+00> : vector<16x1024xf32>
    %16 = tpu.matmul %14, %15, %cst_12 {dimension_numbers = #tpu.dot_dimension_numbers<[1], [0], [0], [1], [0, 0, 1, 1], [], []>} : vector<16x128xbf16>, vector<128x1024xbf16>, vector<16x1024xf32> -> vector<16x1024xf32>
    %cst_13 = arith.constant 0.000000e+00 : f32
    %17 = vector.broadcast %cst_13 : f32 to vector<16x1024xf32>
    %18 = arith.maximumf %16, %17 : vector<16x1024xf32>
    %c0_14 = arith.constant 0 : index
    %c0_15 = arith.constant 0 : index
    %c0_16 = arith.constant 0 : index
    %19 = vector.load %arg6[%c0_14, %c0_15, %c0_16] : memref<1x1x1024xf32, #tpu.memory_space<vmem>>, vector<1x1x1024xf32>
    %20 = vector.shape_cast %19 : vector<1x1x1024xf32> to vector<1x1024xf32>
    %cst_17 = arith.constant dense<0xFF800000> : vector<1024xf32>
    %21 = vector.multi_reduction <maximumf>, %18, %cst_17 [0] : vector<16x1024xf32> to vector<1024xf32>
    %22 = vector.shape_cast %21 : vector<1024xf32> to vector<1x1024xf32>
    %23 = arith.maximumf %20, %22 : vector<1x1024xf32>
    %c0_18 = arith.constant 0 : index
    %c0_19 = arith.constant 0 : index
    %c0_20 = arith.constant 0 : index
    %24 = vector.load %arg6[%c0_18, %c0_19, %c0_20] : memref<1x1x1024xf32, #tpu.memory_space<vmem>>, vector<1x1x1024xf32>
    %25 = vector.shape_cast %24 : vector<1x1x1024xf32> to vector<1x1024xf32>
    %26 = vector.shape_cast %23 : vector<1x1024xf32> to vector<1x1x1024xf32>
    tpu.vector_store %arg6[%c0_18, %c0_19, %c0_20], %26 {strides = array<i32>} : memref<1x1x1024xf32, #tpu.memory_space<vmem>>, vector<1x1x1024xf32>,
    return
  }
  func.func @transform_0(%arg0: i32, %arg1: i32) -> (i32, i32, i32) {
    %c0_i32 = arith.constant 0 : i32
    %c0_i32_0 = arith.constant 0 : i32
    return %arg0, %arg1, %c0_i32 : i32, i32, i32
  }
  func.func @transform_1(%arg0: i32, %arg1: i32) -> (i32, i32) {
    %c0_i32 = arith.constant 0 : i32
    %c0_i32_0 = arith.constant 0 : i32
    %c0_i32_1 = arith.constant 0 : i32
    return %c0_i32, %c0_i32_0 : i32, i32
  }
  func.func @transform_2(%arg0: i32, %arg1: i32) -> (i32, i32) {
    %c0_i32 = arith.constant 0 : i32
    %c0_i32_0 = arith.constant 0 : i32
    %c0_i32_1 = arith.constant 0 : i32
    return %c0_i32, %c0_i32_0 : i32, i32
  }
  func.func @transform_3(%arg0: i32, %arg1: i32) -> (i32, i32) {
    %c0_i32 = arith.constant 0 : i32
    %c0_i32_0 = arith.constant 0 : i32
    %c0_i32_1 = arith.constant 0 : i32
    return %c0_i32, %c0_i32_0 : i32, i32
  }
  func.func @transform_4(%arg0: i32, %arg1: i32) -> (i32, i32, i32) {
    %c0_i32 = arith.constant 0 : i32
    %c0_i32_0 = arith.constant 0 : i32
    %c0_i32_1 = arith.constant 0 : i32
    return %arg0, %c0_i32, %c0_i32_0 : i32, i32, i32
  }
}

module attributes {stable_mosaic.version = 11 : i64} {
  func.func @_feat_chain_kernel(%arg0: i32, %arg1: i32, %arg2: memref<1x16x24xbf16, #tpu.memory_space<vmem>>, %arg3: memref<1x24x64xbf16, #tpu.memory_space<vmem>>, %arg4: memref<64x128xbf16, #tpu.memory_space<vmem>>, %arg5: memref<128x1024xbf16, #tpu.memory_space<vmem>>, %arg6: memref<1x1x1024xf32, #tpu.memory_space<vmem>>) attributes {dimension_semantics = [#tpu.dimension_semantics<parallel>, #tpu.dimension_semantics<arbitrary>], iteration_bounds = array<i64: 2, 2>, scalar_prefetch = 0 : i64, scratch_operands = 0 : i64, tpu.core_type = #tpu.core_type<tc>, window_params = [{transform_indices = @transform_0, window_bounds = array<i64: 1, 16, 24>}, {transform_indices = @transform_1, window_bounds = array<i64: 1, 24, 64>}, {pipeline_mode = #tpu.pipeline_mode<synchronous>, transform_indices = @transform_2, window_bounds = array<i64: 64, 128>}, {pipeline_mode = #tpu.pipeline_mode<synchronous>, transform_indices = @transform_3, window_bounds = array<i64: 128, 1024>}, {transform_indices = @transform_4, window_bounds = array<i64: 1, 1, 1024>}]} {
    %c0_i32 = arith.constant 0 : i32
    %0 = arith.cmpi eq, %arg1, %c0_i32 : i32
    %1 = arith.extui %0 : i1 to i32
    %c0_i32_0 = arith.constant 0 : i32
    %2 = arith.cmpi ne, %1, %c0_i32_0 : i32
    scf.if %2 {
      %cst_17 = arith.constant 0xFF800000 : f32
      %24 = vector.broadcast %cst_17 : f32 to vector<1x1x1024xf32>
      %c0_18 = arith.constant 0 : index
      %c0_19 = arith.constant 0 : index
      %c0_20 = arith.constant 0 : index
      %25 = vector.load %arg6[%c0_18, %c0_19, %c0_20] : memref<1x1x1024xf32, #tpu.memory_space<vmem>>, vector<1x1x1024xf32>
      tpu.vector_store %arg6[%c0_18, %c0_19, %c0_20], %24 {strides = array<i32>} : memref<1x1x1024xf32, #tpu.memory_space<vmem>>, vector<1x1x1024xf32>,
    } else {
    }
    %c0 = arith.constant 0 : index
    %c0_1 = arith.constant 0 : index
    %c0_2 = arith.constant 0 : index
    %3 = vector.load %arg2[%c0, %c0_1, %c0_2] : memref<1x16x24xbf16, #tpu.memory_space<vmem>>, vector<1x16x24xbf16>
    %4 = vector.shape_cast %3 : vector<1x16x24xbf16> to vector<16x24xbf16>
    %c0_3 = arith.constant 0 : index
    %c0_4 = arith.constant 0 : index
    %c0_5 = arith.constant 0 : index
    %5 = vector.load %arg3[%c0_3, %c0_4, %c0_5] : memref<1x24x64xbf16, #tpu.memory_space<vmem>>, vector<1x24x64xbf16>
    %6 = vector.shape_cast %5 : vector<1x24x64xbf16> to vector<24x64xbf16>
    %cst = arith.constant dense<0.000000e+00> : vector<16x64xf32>
    %7 = tpu.matmul %4, %6, %cst {dimension_numbers = #tpu.dot_dimension_numbers<[1], [0], [0], [1], [0, 0, 1, 1], [], []>} : vector<16x24xbf16>, vector<24x64xbf16>, vector<16x64xf32> -> vector<16x64xf32>
    %cst_6 = arith.constant 0.000000e+00 : f32
    %8 = vector.broadcast %cst_6 : f32 to vector<16x64xf32>
    %9 = arith.maximumf %7, %8 : vector<16x64xf32>
    %10 = arith.truncf %9 : vector<16x64xf32> to vector<16x64xbf16>
    %c0_7 = arith.constant 0 : index
    %c0_8 = arith.constant 0 : index
    %11 = vector.load %arg4[%c0_7, %c0_8] : memref<64x128xbf16, #tpu.memory_space<vmem>>, vector<64x128xbf16>
    %cst_9 = arith.constant dense<0.000000e+00> : vector<16x128xf32>
    %12 = tpu.matmul %10, %11, %cst_9 {dimension_numbers = #tpu.dot_dimension_numbers<[1], [0], [0], [1], [0, 0, 1, 1], [], []>} : vector<16x64xbf16>, vector<64x128xbf16>, vector<16x128xf32> -> vector<16x128xf32>
    %cst_10 = arith.constant 0.000000e+00 : f32
    %13 = vector.broadcast %cst_10 : f32 to vector<16x128xf32>
    %14 = arith.maximumf %12, %13 : vector<16x128xf32>
    %15 = arith.truncf %14 : vector<16x128xf32> to vector<16x128xbf16>
    %c0_11 = arith.constant 0 : index
    %c0_12 = arith.constant 0 : index
    %16 = vector.load %arg5[%c0_11, %c0_12] : memref<128x1024xbf16, #tpu.memory_space<vmem>>, vector<128x1024xbf16>
    %cst_13 = arith.constant dense<0.000000e+00> : vector<16x1024xf32>
    %17 = tpu.matmul %15, %16, %cst_13 {dimension_numbers = #tpu.dot_dimension_numbers<[1], [0], [0], [1], [0, 0, 1, 1], [], []>} : vector<16x128xbf16>, vector<128x1024xbf16>, vector<16x1024xf32> -> vector<16x1024xf32>
    %c1_i32 = arith.constant 1 : i32
    %18 = arith.cmpi eq, %arg1, %c1_i32 : i32
    %19 = arith.extui %18 : i1 to i32
    %c0_i32_14 = arith.constant 0 : i32
    %20 = arith.cmpi ne, %19, %c0_i32_14 : i32
    scf.if %20 {
      %c16_i32 = arith.constant 16 : i32
      %24 = arith.muli %arg1, %c16_i32 : i32
      %25 = tpu.iota {dimensions = array<i32: 0>} : vector<16x1xi32>
      %26 = vector.broadcast %24 : i32 to vector<16x1xi32>
      %27 = arith.addi %26, %25 : vector<16x1xi32>
      %c20_i32 = arith.constant 20 : i32
      %28 = vector.broadcast %c20_i32 : i32 to vector<16x1xi32>
      %29 = arith.cmpi slt, %27, %28 : vector<16x1xi32>
      %cst_17 = arith.constant 0xFF800000 : f32
      %30 = vector.shape_cast %29 : vector<16x1xi1> to vector<16x1xi1>
      %31 = vector.broadcast %30 : vector<16x1xi1> to vector<16x1024xi1>
      %32 = vector.broadcast %cst_17 : f32 to vector<16x1024xf32>
      %33 = arith.select %31, %17, %32 : vector<16x1024xi1>, vector<16x1024xf32>
      %c0_18 = arith.constant 0 : index
      %c0_19 = arith.constant 0 : index
      %c0_20 = arith.constant 0 : index
      %34 = vector.load %arg6[%c0_18, %c0_19, %c0_20] : memref<1x1x1024xf32, #tpu.memory_space<vmem>>, vector<1x1x1024xf32>
      %35 = vector.shape_cast %34 : vector<1x1x1024xf32> to vector<1x1024xf32>
      %cst_21 = arith.constant dense<0xFF800000> : vector<1024xf32>
      %36 = vector.multi_reduction <maximumf>, %33, %cst_21 [0] : vector<16x1024xf32> to vector<1024xf32>
      %37 = vector.shape_cast %36 : vector<1024xf32> to vector<1x1024xf32>
      %38 = arith.maximumf %35, %37 : vector<1x1024xf32>
      %c0_22 = arith.constant 0 : index
      %c0_23 = arith.constant 0 : index
      %c0_24 = arith.constant 0 : index
      %39 = vector.load %arg6[%c0_22, %c0_23, %c0_24] : memref<1x1x1024xf32, #tpu.memory_space<vmem>>, vector<1x1x1024xf32>
      %40 = vector.shape_cast %39 : vector<1x1x1024xf32> to vector<1x1024xf32>
      %41 = vector.shape_cast %38 : vector<1x1024xf32> to vector<1x1x1024xf32>
      tpu.vector_store %arg6[%c0_22, %c0_23, %c0_24], %41 {strides = array<i32>} : memref<1x1x1024xf32, #tpu.memory_space<vmem>>, vector<1x1x1024xf32>,
    } else {
    }
    %c1_i32_15 = arith.constant 1 : i32
    %21 = arith.cmpi ne, %arg1, %c1_i32_15 : i32
    %22 = arith.extui %21 : i1 to i32
    %c0_i32_16 = arith.constant 0 : i32
    %23 = arith.cmpi ne, %22, %c0_i32_16 : i32
    scf.if %23 {
      %c0_17 = arith.constant 0 : index
      %c0_18 = arith.constant 0 : index
      %c0_19 = arith.constant 0 : index
      %24 = vector.load %arg6[%c0_17, %c0_18, %c0_19] : memref<1x1x1024xf32, #tpu.memory_space<vmem>>, vector<1x1x1024xf32>
      %25 = vector.shape_cast %24 : vector<1x1x1024xf32> to vector<1x1024xf32>
      %cst_20 = arith.constant dense<0xFF800000> : vector<1024xf32>
      %26 = vector.multi_reduction <maximumf>, %17, %cst_20 [0] : vector<16x1024xf32> to vector<1024xf32>
      %27 = vector.shape_cast %26 : vector<1024xf32> to vector<1x1024xf32>
      %28 = arith.maximumf %25, %27 : vector<1x1024xf32>
      %c0_21 = arith.constant 0 : index
      %c0_22 = arith.constant 0 : index
      %c0_23 = arith.constant 0 : index
      %29 = vector.load %arg6[%c0_21, %c0_22, %c0_23] : memref<1x1x1024xf32, #tpu.memory_space<vmem>>, vector<1x1x1024xf32>
      %30 = vector.shape_cast %29 : vector<1x1x1024xf32> to vector<1x1024xf32>
      %31 = vector.shape_cast %28 : vector<1x1024xf32> to vector<1x1x1024xf32>
      tpu.vector_store %arg6[%c0_21, %c0_22, %c0_23], %31 {strides = array<i32>} : memref<1x1x1024xf32, #tpu.memory_space<vmem>>, vector<1x1x1024xf32>,
    } else {
    }
    return
  }
  func.func @transform_0(%arg0: i32, %arg1: i32) -> (i32, i32, i32) {
    %c0_i32 = arith.constant 0 : i32
    %c0_i32_0 = arith.constant 0 : i32
    return %arg0, %arg1, %c0_i32 : i32, i32, i32
  }
  func.func @transform_1(%arg0: i32, %arg1: i32) -> (i32, i32, i32) {
    %c0_i32 = arith.constant 0 : i32
    %c0_i32_0 = arith.constant 0 : i32
    %c0_i32_1 = arith.constant 0 : i32
    return %arg0, %c0_i32, %c0_i32_0 : i32, i32, i32
  }
  func.func @transform_2(%arg0: i32, %arg1: i32) -> (i32, i32) {
    %c0_i32 = arith.constant 0 : i32
    %c0_i32_0 = arith.constant 0 : i32
    %c0_i32_1 = arith.constant 0 : i32
    return %c0_i32, %c0_i32_0 : i32, i32
  }
  func.func @transform_3(%arg0: i32, %arg1: i32) -> (i32, i32) {
    %c0_i32 = arith.constant 0 : i32
    %c0_i32_0 = arith.constant 0 : i32
    %c0_i32_1 = arith.constant 0 : i32
    return %c0_i32, %c0_i32_0 : i32, i32
  }
  func.func @transform_4(%arg0: i32, %arg1: i32) -> (i32, i32, i32) {
    %c0_i32 = arith.constant 0 : i32
    %c0_i32_0 = arith.constant 0 : i32
    %c0_i32_1 = arith.constant 0 : i32
    return %arg0, %c0_i32, %c0_i32_0 : i32, i32, i32
  }
}

module attributes {stable_mosaic.version = 11 : i64} {
  func.func @_cls_chain_kernel(%arg0: i32, %arg1: i32, %arg2: memref<1x16x24xbf16, #tpu.memory_space<vmem>>, %arg3: memref<1x24x64xbf16, #tpu.memory_space<vmem>>, %arg4: memref<1x1x512xf32, #tpu.memory_space<vmem>>, %arg5: memref<64x512xbf16, #tpu.memory_space<vmem>>, %arg6: memref<512x256xbf16, #tpu.memory_space<vmem>>, %arg7: memref<256x128xbf16, #tpu.memory_space<vmem>>, %arg8: memref<24x128xbf16, #tpu.memory_space<vmem>>, %arg9: memref<128x128xbf16, #tpu.memory_space<vmem>>, %arg10: memref<1x128xf32, #tpu.memory_space<vmem>>, %arg11: memref<1x16x128xf32, #tpu.memory_space<vmem>>) attributes {dimension_semantics = [#tpu.dimension_semantics<parallel>, #tpu.dimension_semantics<parallel>], iteration_bounds = array<i64: 2, 2>, scalar_prefetch = 0 : i64, scratch_operands = 0 : i64, tpu.core_type = #tpu.core_type<tc>, window_params = [{transform_indices = @transform_0, window_bounds = array<i64: 1, 16, 24>}, {transform_indices = @transform_1, window_bounds = array<i64: 1, 24, 64>}, {transform_indices = @transform_2, window_bounds = array<i64: 1, 1, 512>}, {pipeline_mode = #tpu.pipeline_mode<synchronous>, transform_indices = @transform_3, window_bounds = array<i64: 64, 512>}, {pipeline_mode = #tpu.pipeline_mode<synchronous>, transform_indices = @transform_4, window_bounds = array<i64: 512, 256>}, {pipeline_mode = #tpu.pipeline_mode<synchronous>, transform_indices = @transform_5, window_bounds = array<i64: 256, 128>}, {pipeline_mode = #tpu.pipeline_mode<synchronous>, transform_indices = @transform_6, window_bounds = array<i64: 24, 128>}, {pipeline_mode = #tpu.pipeline_mode<synchronous>, transform_indices = @transform_7, window_bounds = array<i64: 128, 128>}, {pipeline_mode = #tpu.pipeline_mode<synchronous>, transform_indices = @transform_8, window_bounds = array<i64: 1, 128>}, {transform_indices = @transform_9, window_bounds = array<i64: 1, 16, 128>}]} {
    %c0 = arith.constant 0 : index
    %c0_0 = arith.constant 0 : index
    %c0_1 = arith.constant 0 : index
    %0 = vector.load %arg2[%c0, %c0_0, %c0_1] : memref<1x16x24xbf16, #tpu.memory_space<vmem>>, vector<1x16x24xbf16>
    %1 = vector.shape_cast %0 : vector<1x16x24xbf16> to vector<16x24xbf16>
    %c0_2 = arith.constant 0 : index
    %c0_3 = arith.constant 0 : index
    %c0_4 = arith.constant 0 : index
    %2 = vector.load %arg3[%c0_2, %c0_3, %c0_4] : memref<1x24x64xbf16, #tpu.memory_space<vmem>>, vector<1x24x64xbf16>
    %3 = vector.shape_cast %2 : vector<1x24x64xbf16> to vector<24x64xbf16>
    %cst = arith.constant dense<0.000000e+00> : vector<16x64xf32>
    %4 = tpu.matmul %1, %3, %cst {dimension_numbers = #tpu.dot_dimension_numbers<[1], [0], [0], [1], [0, 0, 1, 1], [], []>} : vector<16x24xbf16>, vector<24x64xbf16>, vector<16x64xf32> -> vector<16x64xf32>
    %cst_5 = arith.constant 0.000000e+00 : f32
    %5 = vector.broadcast %cst_5 : f32 to vector<16x64xf32>
    %6 = arith.maximumf %4, %5 : vector<16x64xf32>
    %7 = arith.truncf %6 : vector<16x64xf32> to vector<16x64xbf16>
    %c0_6 = arith.constant 0 : index
    %c0_7 = arith.constant 0 : index
    %8 = vector.load %arg5[%c0_6, %c0_7] : memref<64x512xbf16, #tpu.memory_space<vmem>>, vector<64x512xbf16>
    %cst_8 = arith.constant dense<0.000000e+00> : vector<16x512xf32>
    %9 = tpu.matmul %7, %8, %cst_8 {dimension_numbers = #tpu.dot_dimension_numbers<[1], [0], [0], [1], [0, 0, 1, 1], [], []>} : vector<16x64xbf16>, vector<64x512xbf16>, vector<16x512xf32> -> vector<16x512xf32>
    %c0_9 = arith.constant 0 : index
    %c0_10 = arith.constant 0 : index
    %c0_11 = arith.constant 0 : index
    %10 = vector.load %arg4[%c0_9, %c0_10, %c0_11] : memref<1x1x512xf32, #tpu.memory_space<vmem>>, vector<1x1x512xf32>
    %11 = vector.shape_cast %10 : vector<1x1x512xf32> to vector<1x512xf32>
    %12 = vector.broadcast %11 : vector<1x512xf32> to vector<16x512xf32>
    %13 = arith.addf %9, %12 : vector<16x512xf32>
    %cst_12 = arith.constant 0.000000e+00 : f32
    %14 = vector.broadcast %cst_12 : f32 to vector<16x512xf32>
    %15 = arith.maximumf %13, %14 : vector<16x512xf32>
    %16 = arith.truncf %15 : vector<16x512xf32> to vector<16x512xbf16>
    %c0_13 = arith.constant 0 : index
    %c0_14 = arith.constant 0 : index
    %17 = vector.load %arg6[%c0_13, %c0_14] : memref<512x256xbf16, #tpu.memory_space<vmem>>, vector<512x256xbf16>
    %cst_15 = arith.constant dense<0.000000e+00> : vector<16x256xf32>
    %18 = tpu.matmul %16, %17, %cst_15 {dimension_numbers = #tpu.dot_dimension_numbers<[1], [0], [0], [1], [0, 0, 1, 1], [], []>} : vector<16x512xbf16>, vector<512x256xbf16>, vector<16x256xf32> -> vector<16x256xf32>
    %cst_16 = arith.constant 0.000000e+00 : f32
    %19 = vector.broadcast %cst_16 : f32 to vector<16x256xf32>
    %20 = arith.maximumf %18, %19 : vector<16x256xf32>
    %21 = arith.truncf %20 : vector<16x256xf32> to vector<16x256xbf16>
    %c0_17 = arith.constant 0 : index
    %c0_18 = arith.constant 0 : index
    %22 = vector.load %arg7[%c0_17, %c0_18] : memref<256x128xbf16, #tpu.memory_space<vmem>>, vector<256x128xbf16>
    %cst_19 = arith.constant dense<0.000000e+00> : vector<16x128xf32>
    %23 = tpu.matmul %21, %22, %cst_19 {dimension_numbers = #tpu.dot_dimension_numbers<[1], [0], [0], [1], [0, 0, 1, 1], [], []>} : vector<16x256xbf16>, vector<256x128xbf16>, vector<16x128xf32> -> vector<16x128xf32>
    %c0_20 = arith.constant 0 : index
    %c0_21 = arith.constant 0 : index
    %24 = vector.load %arg8[%c0_20, %c0_21] : memref<24x128xbf16, #tpu.memory_space<vmem>>, vector<24x128xbf16>
    %cst_22 = arith.constant dense<0.000000e+00> : vector<16x128xf32>
    %25 = tpu.matmul %1, %24, %cst_22 {dimension_numbers = #tpu.dot_dimension_numbers<[1], [0], [0], [1], [0, 0, 1, 1], [], []>} : vector<16x24xbf16>, vector<24x128xbf16>, vector<16x128xf32> -> vector<16x128xf32>
    %26 = arith.addf %23, %25 : vector<16x128xf32>
    %cst_23 = arith.constant 0.000000e+00 : f32
    %27 = vector.broadcast %cst_23 : f32 to vector<16x128xf32>
    %28 = arith.maximumf %26, %27 : vector<16x128xf32>
    %29 = arith.truncf %28 : vector<16x128xf32> to vector<16x128xbf16>
    %c0_24 = arith.constant 0 : index
    %c0_25 = arith.constant 0 : index
    %30 = vector.load %arg9[%c0_24, %c0_25] : memref<128x128xbf16, #tpu.memory_space<vmem>>, vector<128x128xbf16>
    %cst_26 = arith.constant dense<0.000000e+00> : vector<16x128xf32>
    %31 = tpu.matmul %29, %30, %cst_26 {dimension_numbers = #tpu.dot_dimension_numbers<[1], [0], [0], [1], [0, 0, 1, 1], [], []>} : vector<16x128xbf16>, vector<128x128xbf16>, vector<16x128xf32> -> vector<16x128xf32>
    %c0_27 = arith.constant 0 : index
    %c0_28 = arith.constant 0 : index
    %32 = vector.load %arg10[%c0_27, %c0_28] : memref<1x128xf32, #tpu.memory_space<vmem>>, vector<1x128xf32>
    %33 = vector.broadcast %32 : vector<1x128xf32> to vector<16x128xf32>
    %34 = arith.addf %31, %33 : vector<16x128xf32>
    %c0_29 = arith.constant 0 : index
    %c0_30 = arith.constant 0 : index
    %c0_31 = arith.constant 0 : index
    %35 = vector.load %arg11[%c0_29, %c0_30, %c0_31] : memref<1x16x128xf32, #tpu.memory_space<vmem>>, vector<1x16x128xf32>
    %36 = vector.shape_cast %35 : vector<1x16x128xf32> to vector<16x128xf32>
    %37 = vector.shape_cast %34 : vector<16x128xf32> to vector<1x16x128xf32>
    tpu.vector_store %arg11[%c0_29, %c0_30, %c0_31], %37 {strides = array<i32>} : memref<1x16x128xf32, #tpu.memory_space<vmem>>, vector<1x16x128xf32>,
    return
  }
  func.func @transform_0(%arg0: i32, %arg1: i32) -> (i32, i32, i32) {
    %c0_i32 = arith.constant 0 : i32
    %c0_i32_0 = arith.constant 0 : i32
    return %arg0, %arg1, %c0_i32 : i32, i32, i32
  }
  func.func @transform_1(%arg0: i32, %arg1: i32) -> (i32, i32, i32) {
    %c0_i32 = arith.constant 0 : i32
    %c0_i32_0 = arith.constant 0 : i32
    %c0_i32_1 = arith.constant 0 : i32
    return %arg0, %c0_i32, %c0_i32_0 : i32, i32, i32
  }
  func.func @transform_2(%arg0: i32, %arg1: i32) -> (i32, i32, i32) {
    %c0_i32 = arith.constant 0 : i32
    %c0_i32_0 = arith.constant 0 : i32
    %c0_i32_1 = arith.constant 0 : i32
    return %arg0, %c0_i32, %c0_i32_0 : i32, i32, i32
  }
  func.func @transform_3(%arg0: i32, %arg1: i32) -> (i32, i32) {
    %c0_i32 = arith.constant 0 : i32
    %c0_i32_0 = arith.constant 0 : i32
    %c0_i32_1 = arith.constant 0 : i32
    return %c0_i32, %c0_i32_0 : i32, i32
  }
  func.func @transform_4(%arg0: i32, %arg1: i32) -> (i32, i32) {
    %c0_i32 = arith.constant 0 : i32
    %c0_i32_0 = arith.constant 0 : i32
    %c0_i32_1 = arith.constant 0 : i32
    return %c0_i32, %c0_i32_0 : i32, i32
  }
  func.func @transform_5(%arg0: i32, %arg1: i32) -> (i32, i32) {
    %c0_i32 = arith.constant 0 : i32
    %c0_i32_0 = arith.constant 0 : i32
    %c0_i32_1 = arith.constant 0 : i32
    return %c0_i32, %c0_i32_0 : i32, i32
  }
  func.func @transform_6(%arg0: i32, %arg1: i32) -> (i32, i32) {
    %c0_i32 = arith.constant 0 : i32
    %c0_i32_0 = arith.constant 0 : i32
    %c0_i32_1 = arith.constant 0 : i32
    return %c0_i32, %c0_i32_0 : i32, i32
  }
  func.func @transform_7(%arg0: i32, %arg1: i32) -> (i32, i32) {
    %c0_i32 = arith.constant 0 : i32
    %c0_i32_0 = arith.constant 0 : i32
    %c0_i32_1 = arith.constant 0 : i32
    return %c0_i32, %c0_i32_0 : i32, i32
  }
  func.func @transform_8(%arg0: i32, %arg1: i32) -> (i32, i32) {
    %c0_i32 = arith.constant 0 : i32
    %c0_i32_0 = arith.constant 0 : i32
    %c0_i32_1 = arith.constant 0 : i32
    return %c0_i32, %c0_i32_0 : i32, i32
  }
  func.func @transform_9(%arg0: i32, %arg1: i32) -> (i32, i32, i32) {
    %c0_i32 = arith.constant 0 : i32
    %c0_i32_0 = arith.constant 0 : i32
    return %arg0, %arg1, %c0_i32 : i32, i32, i32
  }
}

</mosaic_0001>

<llo_original>
// kernel: pointnet_densecls_forward.4
$region0: #{pointnet_densecls_forward.4}
  #allocation0 [shape = 'u32[]', space=smem, size = 0x4, offset = 0x4, fixed_abs, tag = 'smem constant byte address 0x4 - core index']
  #allocation1 [shape = 'u32[144,128]{1,0:T(1,128)}', space=vmem, size = 0x12000, scoped, tag = 'internal scratch']
  %s0 = inlined_call_operand.vmem [shape: bf16[2,32,24], index: 0, kind: input, shape index: {}]
  %s1 = inlined_call_operand.vmem [shape: bf16[2,24,64], index: 1, kind: input, shape index: {}]
  %s2 = inlined_call_operand.vmem [shape: bf16[64,128], index: 2, kind: input, shape index: {}]
  %s3 = inlined_call_operand.vmem [shape: bf16[128,1024], index: 3, kind: input, shape index: {}]
  %s4 = inlined_call_operand.vmem [shape: f32[2,1,1024], index: 4, kind: output, shape index: {}]
  %s5 = sld [smem:[#allocation0]]
  $region61: #{pointnet_densecls_forward.4} parent=0
    _
  %s7 = ssub.s32 1, %s5
  %s8 = scalar_select 0, %s7, %s5
  loop: start=0, step=1, limit=6
  $region2: #{pointnet_densecls_forward.4} parent=0 // loop_pre_header
    _
  $region3: #{pointnet_densecls_forward.4} parent=0 // loop_header
    %s10 = sphi 0, %s14
    %p11 = scmp.ge.s32.totalorder %s10, 6
    %s17 = sphi 0, %s29
    %s18 = sphi 0, %s25
    %s19 = sphi 0, %s17
    %s20 = sphi 0, %s18
    %s21 = sphi 0, %s19
    %s22 = sphi 0, %s20
    %s34 = sphi 0, %s36
    %s37 = sphi 0, %s34
    %s38 = sphi 0, %s37
    %s54 = sphi 0, %s38
    %s60 = sphi 0, %s62
    %s63 = sphi 0, %s60
    %s64 = sphi 0, %s63
    %s80 = sphi 0, %s64
    %s84 = sphi 0, %s84
    %s86 = sphi 0, %s84
    %s87 = sphi 0, %s86
    %s101 = sphi 0, %s87
    %s105 = sphi 0, %s105
    %s107 = sphi 0, %s105
    %s108 = sphi 0, %s107
    %s122 = sphi 0, %s108
    %s128 = sphi 0, %s130
    %s131 = sphi 0, %s128
    %s132 = sphi 0, %s131
    %s148 = sphi 0, %s132
  $region4: #{pointnet_densecls_forward.4} parent=0 // loop_header_branch
    %13 = sbr.rel (%p11) target = $region8
  $region5: #{pointnet_densecls_forward.4} parent=0 // loop_body
    %s15 = ssub.s32 %s10, 1
    %s16 = ssub.s32 %s10, 2
    %s23 = sadd.s32 1, %s18
    %p24 = scmp.ge.s32.totalorder %s23, 2
    %s25 = scalar_select %p24, 0, %s23
    %s26 = sadd.s32 1, %s17
    %s27 = scalar_select %p24, %s26, %s17
    %p28 = scmp.ge.s32.totalorder %s27, 2
    %s29 = scalar_select %p28, 0, %s27
    %s30 = ssub.s32 %s17, %s29
    %s31 = ssub.s32 %s18, %s25
    %s32 = sor.u32 %s30, %s31
    %p33 = scmp.eq.s32.totalorder %s32, 0
    %s35 = sadd.s32 %s34, 1
    %s36 = scalar_select %p33, %s34, %s35
    %p39 = pneg %p33
    %p40 = scmp.eq.s32.totalorder %s10, 3
    %p41 = por %p39, %p40
    %p42 = scmp.ne.s32.totalorder %s34, %s37
    %p43 = scmp.eq.s32.totalorder %s10, 0
    %p44 = por %p42, %p43
    %p45 = scmp.ne.s32.totalorder %s34, %s37
    %p46 = scmp.eq.s32.totalorder %s15, 3
    %p47 = por %p45, %p46
    %p48 = scmp.ne.s32.totalorder %s37, %s38
    %p49 = scmp.eq.s32.totalorder %s15, 0
    %p50 = por %p48, %p49
    %p51 = scmp.ne.s32.totalorder %s37, %s38
    %p52 = scmp.eq.s32.totalorder %s16, 3
    %p53 = por %p51, %p52
    %p55 = scmp.ne.s32.totalorder %s38, %s54
    %p56 = scmp.eq.s32.totalorder %s16, 0
    %p57 = por %p55, %p56
    %s58 = ssub.s32 %s17, %s29
    %p59 = scmp.eq.s32.totalorder %s58, 0
    %s61 = sadd.s32 %s60, 1
    %s62 = scalar_select %p59, %s60, %s61
    %p65 = pneg %p59
    %p66 = scmp.eq.s32.totalorder %s10, 3
    %p67 = por %p65, %p66
    %p68 = scmp.ne.s32.totalorder %s60, %s63
    %p69 = scmp.eq.s32.totalorder %s10, 0
    %p70 = por %p68, %p69
    %p71 = scmp.ne.s32.totalorder %s60, %s63
    %p72 = scmp.eq.s32.totalorder %s15, 3
    %p73 = por %p71, %p72
    %p74 = scmp.ne.s32.totalorder %s63, %s64
    %p75 = scmp.eq.s32.totalorder %s15, 0
    %p76 = por %p74, %p75
    %p77 = scmp.ne.s32.totalorder %s63, %s64
    %p78 = scmp.eq.s32.totalorder %s16, 3
    %p79 = por %p77, %p78
    %p81 = scmp.ne.s32.totalorder %s64, %s80
    %p82 = scmp.eq.s32.totalorder %s16, 0
    %p83 = por %p81, %p82
    %s85 = sadd.s32 %s84, 1
    %p88 = scmp.eq.s32.totalorder %s10, 3
    %p89 = scmp.ne.s32.totalorder %s84, %s86
    %p90 = scmp.eq.s32.totalorder %s10, 0
    %p91 = por %p89, %p90
    %p92 = scmp.ne.s32.totalorder %s84, %s86
    %p93 = scmp.eq.s32.totalorder %s15, 3
    %p94 = por %p92, %p93
    %p95 = scmp.ne.s32.totalorder %s86, %s87
    %p96 = scmp.eq.s32.totalorder %s15, 0
    %p97 = por %p95, %p96
    %p98 = scmp.ne.s32.totalorder %s86, %s87
    %p99 = scmp.eq.s32.totalorder %s16, 3
    %p100 = por %p98, %p99
    %p102 = scmp.ne.s32.totalorder %s87, %s101
    %p103 = scmp.eq.s32.totalorder %s16, 0
    %p104 = por %p102, %p103
    %s106 = sadd.s32 %s105, 1
    %p109 = scmp.eq.s32.totalorder %s10, 3
    %p110 = scmp.ne.s32.totalorder %s105, %s107
    %p111 = scmp.eq.s32.totalorder %s10, 0
    %p112 = por %p110, %p111
    %p113 = scmp.ne.s32.totalorder %s105, %s107
    %p114 = scmp.eq.s32.totalorder %s15, 3
    %p115 = por %p113, %p114
    %p116 = scmp.ne.s32.totalorder %s107, %s108
    %p117 = scmp.eq.s32.totalorder %s15, 0
    %p118 = por %p116, %p117
    %p119 = scmp.ne.s32.totalorder %s107, %s108
    %p120 = scmp.eq.s32.totalorder %s16, 3
    %p121 = por %p119, %p120
    %p123 = scmp.ne.s32.totalorder %s108, %s122
    %p124 = scmp.eq.s32.totalorder %s16, 0
    %p125 = por %p123, %p124
    %s126 = ssub.s32 %s17, %s29
    %p127 = scmp.eq.s32.totalorder %s126, 0
    %s129 = sadd.s32 %s128, 1
    %s130 = scalar_select %p127, %s128, %s129
    %p133 = pneg %p127
    %p134 = scmp.eq.s32.totalorder %s10, 3
    %p135 = por %p133, %p134
    %p136 = scmp.ne.s32.totalorder %s128, %s131
    %p137 = scmp.eq.s32.totalorder %s10, 0
    %p138 = por %p136, %p137
    %p139 = scmp.ne.s32.totalorder %s128, %s131
    %p140 = scmp.eq.s32.totalorder %s15, 3
    %p141 = por %p139, %p140
    %p142 = scmp.ne.s32.totalorder %s131, %s132
    %p143 = scmp.eq.s32.totalorder %s15, 0
    %p144 = por %p142, %p143
    %p145 = scmp.ne.s32.totalorder %s131, %s132
    %p146 = scmp.eq.s32.totalorder %s16, 3
    %p147 = por %p145, %p146
    %p149 = scmp.ne.s32.totalorder %s132, %s148
    %p150 = scmp.eq.s32.totalorder %s16, 0
    %p151 = por %p149, %p150
    %p152 = scmp.le.s32.totalorder 1, %s10
    %p153 = scmp.lt.s32.totalorder %s10, 5
    %p154 = pnand %p152, %p153
    %p155 = pneg %p154
    // Predicated region
    $region9: #{pointnet_densecls_forward.4} parent=5 // pred_check
      _
    $region10: #{pointnet_densecls_forward.4} parent=5 // pred_check_branch
      %157 = sbr.rel (%p154) target = $region12
    $region11: #{pointnet_densecls_forward.4} parent=5 // pred_region
      %s158 = ssub.s32 %s10, 1
      // Predicated region
      $region13: #{pointnet_densecls_forward.4} parent=11 // pred_check
        %p159 = pneg %p97
      $region14: #{pointnet_densecls_forward.4} parent=11 // pred_check_branch
        %161 = sbr.rel (%p159) target = $region16
      $region15: #{pointnet_densecls_forward.4} parent=11 // pred_region
        _
      $region16: #{pointnet_densecls_forward.4} parent=11 // pred_fallthru
        _
      // Predicated region
      $region17: #{pointnet_densecls_forward.4} parent=11 // pred_check
        %p162 = pneg %p118
      $region18: #{pointnet_densecls_forward.4} parent=11 // pred_check_branch
        %164 = sbr.rel (%p162) target = $region20
      $region19: #{pointnet_densecls_forward.4} parent=11 // pred_region
        _
      $region20: #{pointnet_densecls_forward.4} parent=11 // pred_fallthru
        _
    $region12: #{pointnet_densecls_forward.4} parent=5 // pred_fallthru
      _
    %p165 = scmp.lt.s32.totalorder %s10, 4
    // Predicated region
    $region21: #{pointnet_densecls_forward.4} parent=5 // pred_check
      %p166 = pneg %p165
    $region22: #{pointnet_densecls_forward.4} parent=5 // pred_check_branch
      %168 = sbr.rel (%p166) target = $region24
    $region23: #{pointnet_densecls_forward.4} parent=5 // pred_region
      // Predicated region
      $region25: #{pointnet_densecls_forward.4} parent=23 // pred_check
        %p169 = pneg %p44
      $region26: #{pointnet_densecls_forward.4} parent=23 // pred_check_branch
        %171 = sbr.rel (%p169) target = $region28
      $region27: #{pointnet_densecls_forward.4} parent=23 // pred_region
        %s172 = smul.u32 2, %s18
        %p173 = scmp.lt.s32.totalorder %s17, 1
        %s174 = scalar_select %p173, %s17, 1
        %p175 = scmp.lt.s32.totalorder %s172, 3
        %s176 = scalar_select %p175, %s172, 3
        %s177 = smul.addr %s174, 4
        %s178 = sadd.s32 %s176, %s177
        %s179 = smul.addr %s178, 4
        %s180 = scalar_lea.vmem %s0, %s179
        %s181 = smul.u32 2, %s18
      $region28: #{pointnet_densecls_forward.4} parent=23 // pred_fallthru
        _
      // Predicated region
      $region29: #{pointnet_densecls_forward.4} parent=23 // pred_check
        %p182 = pneg %p70
      $region30: #{pointnet_densecls_forward.4} parent=23 // pred_check_branch
        %184 = sbr.rel (%p182) target = $region32
      $region31: #{pointnet_densecls_forward.4} parent=23 // pred_region
        %p185 = scmp.lt.s32.totalorder %s17, 1
        %s186 = scalar_select %p185, %s17, 1
        %s187 = smul.addr %s186, 3
        %s188 = smul.addr %s187, 4
        %s189 = scalar_lea.vmem %s1, %s188
      $region32: #{pointnet_densecls_forward.4} parent=23 // pred_fallthru
        _
    $region24: #{pointnet_densecls_forward.4} parent=5 // pred_fallthru
      _
    %p190 = scmp.le.s32.totalorder 1, %s10
    %p191 = scmp.lt.s32.totalorder %s10, 5
    %p192 = pnand %p190, %p191
    %p193 = pneg %p192
    // Predicated region
    $region33: #{pointnet_densecls_forward.4} parent=5 // pred_check
      _
    $region34: #{pointnet_densecls_forward.4} parent=5 // pred_check_branch
      %195 = sbr.rel (%p192) target = $region36
    $region35: #{pointnet_densecls_forward.4} parent=5 // pred_region
      %s196 = ssub.s32 %s10, 1
      %s197 = smul.u32 2, %s20
      %p198 = scmp.lt.s32.totalorder %s19, 1
      %s199 = scalar_select %p198, %s19, 1
      %p200 = scmp.lt.s32.totalorder %s197, 3
      %s201 = scalar_select %p200, %s197, 3
      %s202 = smul.addr %s199, 4
      %s203 = sadd.s32 %s201, %s202
      %s204 = smul.addr %s203, 4
      %s205 = scalar_lea.vmem %s0, %s204
      %p206 = pneg %p50
      %p207 = pneg %p47
      %p208 = scmp.lt.s32.totalorder %s19, 1
      %s209 = scalar_select %p208, %s19, 1
      %s210 = smul.addr %s209, 3
      %s211 = smul.addr %s210, 4
      %s212 = scalar_lea.vmem %s1, %s211
      %p213 = pneg %p76
      %p214 = pneg %p73
      %p215 = pneg %p97
      %p216 = pneg %p94
      %p217 = pneg %p118
      %p218 = pneg %p115
      %p219 = pneg %p144
      %p220 = pneg %p141
      %p221 = scmp.lt.s32.totalorder %s19, 1
      %s222 = scalar_select %p221, %s19, 1
      %s223 = smul.addr %s222, 8
      %s224 = scalar_lea.vmem %s4, %s223
      %s225 = smul.u32 2, %s20
      %p226 = scmp.lt.s32.totalorder %s19, 1
      %s227 = scalar_select %p226, %s19, 1
      %p228 = scmp.lt.s32.totalorder %s225, 3
      %s229 = scalar_select %p228, %s225, 3
      %s230 = smul.addr %s227, 4
      %s231 = sadd.s32 %s229, %s230
      %s232 = smul.addr %s231, 4
      %s233 = scalar_lea.vmem %s0, %s232
      %s234 = smul.u32 2, %s20
      %p235 = scmp.lt.s32.totalorder %s19, 1
      %s236 = scalar_select %p235, %s19, 1
      %s237 = smul.addr %s236, 3
      %s238 = smul.addr %s237, 4
      %s239 = scalar_lea.vmem %s1, %s238
      %p240 = scmp.lt.s32.totalorder %s19, 1
      %s241 = scalar_select %p240, %s19, 1
      %s242 = smul.addr %s241, 8
      %s243 = scalar_lea.vmem %s4, %s242
      %p245 = scmp.eq.s32.totalorder %s20, 0
      // Predicated region
      $region37: #{pointnet_densecls_forward.4} parent=35 // pred_check
        %p246 = pneg %p245
      $region38: #{pointnet_densecls_forward.4} parent=35 // pred_check_branch
        %248 = sbr.rel (%p246) target = $region40
      $region39: #{pointnet_densecls_forward.4} parent=35 // pred_region
        %249 = vst [vmem:[%s243] sm:$0xff] -inf
      $region40: #{pointnet_densecls_forward.4} parent=35 // pred_fallthru
        _
      %v250 = vld [vmem:[%s233] sm:$0xf]
      %v251 = vld [vmem:[%s233 + $0x4] sm:$0xf]
      %v252 = vld [vmem:[%s239] sm:$0xf]
      %v253 = vld [vmem:[%s239 + $0x4] sm:$0xf]
      %v254 = vld [vmem:[%s239 + $0x8] sm:$0xf]
      %v257 = vunpack.c.l.b16 %v250
      %v258 = vunpack.c.l.b16 %v251
      %v259 = vpack.c.b16 %v258, %v257
      %v263 = vunpack.c.l.b16 %v252
      %v264 = vunpack.c.l.b16 %v253
      %v265 = vunpack.c.l.b16 %v254
      %v266 = vpack.c.b16 %v264, %v263
      %v267 = vpack.c.b16 %v265, %v265
      %vm269 = vcmask 195584
      %v271 = vsel %vm269, %v259, 0
      %vm273 = vcmask 1043456
      %v275 = vsel %vm273, %v267, 0
      %277 = vmatprep.subr.bf16.mxu0 0
      %278 = vmatpush1.bf16.msra.mxu0 %v266
      %279 = vmatprep.subr.bf16.mxu0 0
      %280 = vmatpush1.bf16.msra.mxu0 %v275
      %281 = vmatprep.subr.bf16.mxu0 0
      %282 = vmatpush1.bf16.msra.mxu0 0
      %283 = vmatprep.subr.bf16.mxu0 0
      %284 = vmatpush1.bf16.msra.mxu0 0
      %285 = vmatprep.subr.bf16.mxu0 0
      %286 = vmatpush1.bf16.msra.mxu0 0
      %287 = vmatprep.subr.bf16.mxu0 0
      %288 = vmatpush1.bf16.msra.mxu0 0
      %289 = vmatprep.subr.bf16.mxu0 0
      %290 = vmatpush1.bf16.msra.mxu0 0
      %291 = vmatprep.subr.bf16.mxu0 0
      %292 = vmatpush1.bf16.msra.mxu0 0
      %293 = vmatprep.subr.bf16.mxu0 0
      %294 = vmatpush1.bf16.msra.mxu0 0
      %295 = vmatprep.subr.bf16.mxu0 0
      %296 = vmatpush1.bf16.msra.mxu0 0
      %297 = vmatprep.subr.bf16.mxu0 0
      %298 = vmatpush1.bf16.msra.mxu0 0
      %299 = vmatprep.subr.bf16.mxu0 0
      %300 = vmatpush1.bf16.msra.mxu0 0
      %301 = vmatprep.subr.bf16.mxu0 0
      %302 = vmatpush1.bf16.msra.mxu0 0
      %303 = vmatprep.subr.bf16.mxu0 0
      %304 = vmatpush1.bf16.msra.mxu0 0
      %305 = vmatprep.subr.bf16.mxu0 0
      %306 = vmatpush1.bf16.msra.mxu0 0
      %307 = vmatprep.subr.bf16.mxu0 0
      %308 = vmatpush1.bf16.msra.mxu0 0
      %309 = vmatprep.mubr.bf16.mxu0 0
      %310 = vmatmul.mubr.bf16.gmra.mrb[0].mxu0 %v271
      %v311 = vpop.f32.mrb[0].mxu0
      %v312 = vadd.f32 0.0, %v311
      %v313 = vpop.f32.mrb[0].mxu0
      %v314 = vpop.f32.mrb[0].mxu0
      %v315 = vadd.f32 0.0, %v314
      %v316 = vpop.f32.mrb[0].mxu0
      %317 = vdwg.mxu0
      %v318 = vmax.f32 %v312, 0.0
      %v319 = vmax.f32 %v315, 0.0
      %v320 = vpack.c.bf16 %v319, %v318
      %v321 = vld [vmem:[%s2] sm:$0xf]
      %v322 = vld [vmem:[%s2 + $0x4] sm:$0xf]
      %v323 = vld [vmem:[%s2 + $0x8] sm:$0xf]
      %v324 = vld [vmem:[%s2 + $0xc] sm:$0xf]
      %v325 = vld [vmem:[%s2 + $0x10] sm:$0xf]
      %v326 = vld [vmem:[%s2 + $0x14] sm:$0xf]
      %v327 = vld [vmem:[%s2 + $0x18] sm:$0xf]
      %v328 = vld [vmem:[%s2 + $0x1c] sm:$0xf]
      %v337 = vunpack.c.l.b16 %v321
      %v338 = vunpack.c.l.b16 %v322
      %v339 = vunpack.c.l.b16 %v323
      %v340 = vunpack.c.l.b16 %v324
      %v341 = vunpack.c.l.b16 %v325
      %v342 = vunpack.c.l.b16 %v326
      %v343 = vunpack.c.l.b16 %v327
      %v344 = vunpack.c.l.b16 %v328
      %v345 = vpack.c.b16 %v338, %v337
      %v346 = vpack.c.b16 %v340, %v339
      %v347 = vpack.c.b16 %v342, %v341
      %v348 = vpack.c.b16 %v344, %v343
      %vm353 = vcmask 523264
      %v355 = vsel %vm353, %v320, 0
      %357 = vmatprep.subr.bf16.mxu0 0
      %358 = vmatpush1.bf16.msra.mxu0 %v345
      %359 = vmatprep.subr.bf16.mxu0 0
      %360 = vmatpush1.bf16.msra.mxu0 %v346
      %361 = vmatprep.subr.bf16.mxu0 0
      %362 = vmatpush1.bf16.msra.mxu0 %v347
      %363 = vmatprep.subr.bf16.mxu0 0
      %364 = vmatpush1.bf16.msra.mxu0 %v348
      %365 = vmatprep.subr.bf16.mxu0 0
      %366 = vmatpush1.bf16.msra.mxu0 0
      %367 = vmatprep.subr.bf16.mxu0 0
      %368 = vmatpush1.bf16.msra.mxu0 0
      %369 = vmatprep.subr.bf16.mxu0 0
      %370 = vmatpush1.bf16.msra.mxu0 0
      %371 = vmatprep.subr.bf16.mxu0 0
      %372 = vmatpush1.bf16.msra.mxu0 0
      %373 = vmatprep.subr.bf16.mxu0 0
      %374 = vmatpush1.bf16.msra.mxu0 0
      %375 = vmatprep.subr.bf16.mxu0 0
      %376 = vmatpush1.bf16.msra.mxu0 0
      %377 = vmatprep.subr.bf16.mxu0 0
      %378 = vmatpush1.bf16.msra.mxu0 0
      %379 = vmatprep.subr.bf16.mxu0 0
      %380 = vmatpush1.bf16.msra.mxu0 0
      %381 = vmatprep.subr.bf16.mxu0 0
      %382 = vmatpush1.bf16.msra.mxu0 0
      %383 = vmatprep.subr.bf16.mxu0 0
      %384 = vmatpush1.bf16.msra.mxu0 0
      %385 = vmatprep.subr.bf16.mxu0 0
      %386 = vmatpush1.bf16.msra.mxu0 0
      %387 = vmatprep.subr.bf16.mxu0 0
      %388 = vmatpush1.bf16.msra.mxu0 0
      %389 = vmatprep.mubr.bf16.mxu0 0
      %390 = vmatmul.mubr.bf16.gmra.mrb[0].mxu0 %v355
      %v391 = vpop.f32.mrb[0].mxu0
      %v392 = vadd.f32 0.0, %v391
      %v393 = vpop.f32.mrb[0].mxu0
      %v394 = vpop.f32.mrb[0].mxu0
      %v395 = vadd.f32 0.0, %v394
      %v396 = vpop.f32.mrb[0].mxu0
      %397 = vdwg.mxu0
      %v398 = vmax.f32 %v392, 0.0
      %v399 = vmax.f32 %v395, 0.0
      %v400 = vpack.c.bf16 %v399, %v398
      %v401 = vld [vmem:[%s3] sm:$0xff]
      %v402 = vld [vmem:[%s3 + $0x8] sm:$0xff]
      %v403 = vld [vmem:[%s3 + $0x10] sm:$0xff]
      %v404 = vld [vmem:[%s3 + $0x18] sm:$0xff]
      %v405 = vld [vmem:[%s3 + $0x20] sm:$0xff]
      %v406 = vld [vmem:[%s3 + $0x28] sm:$0xff]
      %v407 = vld [vmem:[%s3 + $0x30] sm:$0xff]
      %v408 = vld [vmem:[%s3 + $0x38] sm:$0xff]
      %v409 = vld [vmem:[%s3 + $0x40] sm:$0xff]
      %v410 = vld [vmem:[%s3 + $0x48] sm:$0xff]
      %v411 = vld [vmem:[%s3 + $0x50] sm:$0xff]
      %v412 = vld [vmem:[%s3 + $0x58] sm:$0xff]
      %v413 = vld [vmem:[%s3 + $0x60] sm:$0xff]
      %v414 = vld [vmem:[%s3 + $0x68] sm:$0xff]
      %v415 = vld [vmem:[%s3 + $0x70] sm:$0xff]
      %v416 = vld [vmem:[%s3 + $0x78] sm:$0xff]
      %v417 = vld [vmem:[%s3 + $0x80] sm:$0xff]
      %v418 = vld [vmem:[%s3 + $0x88] sm:$0xff]
      %v419 = vld [vmem:[%s3 + $0x90] sm:$0xff]
      %v420 = vld [vmem:[%s3 + $0x98] sm:$0xff]
      %v421 = vld [vmem:[%s3 + $0xa0] sm:$0xff]
      %v422 = vld [vmem:[%s3 + $0xa8] sm:$0xff]
      %v423 = vld [vmem:[%s3 + $0xb0] sm:$0xff]
      %v424 = vld [vmem:[%s3 + $0xb8] sm:$0xff]
      %v425 = vld [vmem:[%s3 + $0xc0] sm:$0xff]
      %v426 = vld [vmem:[%s3 + $0xc8] sm:$0xff]
      %v427 = vld [vmem:[%s3 + $0xd0] sm:$0xff]
      %v428 = vld [vmem:[%s3 + $0xd8] sm:$0xff]
      %v429 = vld [vmem:[%s3 + $0xe0] sm:$0xff]
      %v430 = vld [vmem:[%s3 + $0xe8] sm:$0xff]
      %v431 = vld [vmem:[%s3 + $0xf0] sm:$0xff]
      %v432 = vld [vmem:[%s3 + $0xf8] sm:$0xff]
      %v433 = vld [vmem:[%s3 + $0x100] sm:$0xff]
      %v434 = vld [vmem:[%s3 + $0x108] sm:$0xff]
      %v435 = vld [vmem:[%s3 + $0x110] sm:$0xff]
      %v436 = vld [vmem:[%s3 + $0x118] sm:$0xff]
      %v437 = vld [vmem:[%s3 + $0x120] sm:$0xff]
      %v438 = vld [vmem:[%s3 + $0x128] sm:$0xff]
      %v439 = vld [vmem:[%s3 + $0x130] sm:$0xff]
      %v440 = vld [vmem:[%s3 + $0x138] sm:$0xff]
      %v441 = vld [vmem:[%s3 + $0x140] sm:$0xff]
      %v442 = vld [vmem:[%s3 + $0x148] sm:$0xff]
      %v443 = vld [vmem:[%s3 + $0x150] sm:$0xff]
      %v444 = vld [vmem:[%s3 + $0x158] sm:$0xff]
      %v445 = vld [vmem:[%s3 + $0x160] sm:$0xff]
      %v446 = vld [vmem:[%s3 + $0x168] sm:$0xff]
      %v447 = vld [vmem:[%s3 + $0x170] sm:$0xff]
      %v448 = vld [vmem:[%s3 + $0x178] sm:$0xff]
      %v449 = vld [vmem:[%s3 + $0x180] sm:$0xff]
      %v450 = vld [vmem:[%s3 + $0x188] sm:$0xff]
      %v451 = vld [vmem:[%s3 + $0x190] sm:$0xff]
      %v452 = vld [vmem:[%s3 + $0x198] sm:$0xff]
      %v453 = vld [vmem:[%s3 + $0x1a0] sm:$0xff]
      %v454 = vld [vmem:[%s3 + $0x1a8] sm:$0xff]
      %v455 = vld [vmem:[%s3 + $0x1b0] sm:$0xff]
      %v456 = vld [vmem:[%s3 + $0x1b8] sm:$0xff]
      %v457 = vld [vmem:[%s3 + $0x1c0] sm:$0xff]
      %v458 = vld [vmem:[%s3 + $0x1c8] sm:$0xff]
      %v459 = vld [vmem:[%s3 + $0x1d0] sm:$0xff]
      %v460 = vld [vmem:[%s3 + $0x1d8] sm:$0xff]
      %v461 = vld [vmem:[%s3 + $0x1e0] sm:$0xff]
      %v462 = vld [vmem:[%s3 + $0x1e8] sm:$0xff]
      %v463 = vld [vmem:[%s3 + $0x1f0] sm:$0xff]
      %v464 = vld [vmem:[%s3 + $0x1f8] sm:$0xff]
      %v529 = vunpack.c.l.b16 %v401
      %v530 = vunpack.c.h.b16 %v401
      %v531 = vunpack.c.l.b16 %v402
      %v532 = vunpack.c.h.b16 %v402
      %v533 = vunpack.c.l.b16 %v403
      %v534 = vunpack.c.h.b16 %v403
      %v535 = vunpack.c.l.b16 %v404
      %v536 = vunpack.c.h.b16 %v404
      %v537 = vunpack.c.l.b16 %v405
      %v538 = vunpack.c.h.b16 %v405
      %v539 = vunpack.c.l.b16 %v406
      %v540 = vunpack.c.h.b16 %v406
      %v541 = vunpack.c.l.b16 %v407
      %v542 = vunpack.c.h.b16 %v407
      %v543 = vunpack.c.l.b16 %v408
      %v544 = vunpack.c.h.b16 %v408
      %v545 = vunpack.c.l.b16 %v409
      %v546 = vunpack.c.h.b16 %v409
      %v547 = vunpack.c.l.b16 %v410
      %v548 = vunpack.c.h.b16 %v410
      %v549 = vunpack.c.l.b16 %v411
      %v550 = vunpack.c.h.b16 %v411
      %v551 = vunpack.c.l.b16 %v412
      %v552 = vunpack.c.h.b16 %v412
      %v553 = vunpack.c.l.b16 %v413
      %v554 = vunpack.c.h.b16 %v413
      %v555 = vunpack.c.l.b16 %v414
      %v556 = vunpack.c.h.b16 %v414
      %v557 = vunpack.c.l.b16 %v415
      %v558 = vunpack.c.h.b16 %v415
      %v559 = vunpack.c.l.b16 %v416
      %v560 = vunpack.c.h.b16 %v416
      %v561 = vunpack.c.l.b16 %v417
      %v562 = vunpack.c.h.b16 %v417
      %v563 = vunpack.c.l.b16 %v418
      %v564 = vunpack.c.h.b16 %v418
      %v565 = vunpack.c.l.b16 %v419
      %v566 = vunpack.c.h.b16 %v419
      %v567 = vunpack.c.l.b16 %v420
      %v568 = vunpack.c.h.b16 %v420
      %v569 = vunpack.c.l.b16 %v421
      %v570 = vunpack.c.h.b16 %v421
      %v571 = vunpack.c.l.b16 %v422
      %v572 = vunpack.c.h.b16 %v422
      %v573 = vunpack.c.l.b16 %v423
      %v574 = vunpack.c.h.b16 %v423
      %v575 = vunpack.c.l.b16 %v424
      %v576 = vunpack.c.h.b16 %v424
      %v577 = vunpack.c.l.b16 %v425
      %v578 = vunpack.c.h.b16 %v425
      %v579 = vunpack.c.l.b16 %v426
      %v580 = vunpack.c.h.b16 %v426
      %v581 = vunpack.c.l.b16 %v427
      %v582 = vunpack.c.h.b16 %v427
      %v583 = vunpack.c.l.b16 %v428
      %v584 = vunpack.c.h.b16 %v428
      %v585 = vunpack.c.l.b16 %v429
      %v586 = vunpack.c.h.b16 %v429
      %v587 = vunpack.c.l.b16 %v430
      %v588 = vunpack.c.h.b16 %v430
      %v589 = vunpack.c.l.b16 %v431
      %v590 = vunpack.c.h.b16 %v431
      %v591 = vunpack.c.l.b16 %v432
      %v592 = vunpack.c.h.b16 %v432
      %v593 = vunpack.c.l.b16 %v433
      %v594 = vunpack.c.h.b16 %v433
      %v595 = vunpack.c.l.b16 %v434
      %v596 = vunpack.c.h.b16 %v434
      %v597 = vunpack.c.l.b16 %v435
      %v598 = vunpack.c.h.b16 %v435
      %v599 = vunpack.c.l.b16 %v436
      %v600 = vunpack.c.h.b16 %v436
      %v601 = vunpack.c.l.b16 %v437
      %v602 = vunpack.c.h.b16 %v437
      %v603 = vunpack.c.l.b16 %v438
      %v604 = vunpack.c.h.b16 %v438
      %v605 = vunpack.c.l.b16 %v439
      %v606 = vunpack.c.h.b16 %v439
      %v607 = vunpack.c.l.b16 %v440
      %v608 = vunpack.c.h.b16 %v440
      %v609 = vunpack.c.l.b16 %v441
      %v610 = vunpack.c.h.b16 %v441
      %v611 = vunpack.c.l.b16 %v442
      %v612 = vunpack.c.h.b16 %v442
      %v613 = vunpack.c.l.b16 %v443
      %v614 = vunpack.c.h.b16 %v443
      %v615 = vunpack.c.l.b16 %v444
      %v616 = vunpack.c.h.b16 %v444
      %v617 = vunpack.c.l.b16 %v445
      %v618 = vunpack.c.h.b16 %v445
      %v619 = vunpack.c.l.b16 %v446
      %v620 = vunpack.c.h.b16 %v446
      %v621 = vunpack.c.l.b16 %v447
      %v622 = vunpack.c.h.b16 %v447
      %v623 = vunpack.c.l.b16 %v448
      %v624 = vunpack.c.h.b16 %v448
      %v625 = vunpack.c.l.b16 %v449
      %v626 = vunpack.c.h.b16 %v449
      %v627 = vunpack.c.l.b16 %v450
      %v628 = vunpack.c.h.b16 %v450
      %v629 = vunpack.c.l.b16 %v451
      %v630 = vunpack.c.h.b16 %v451
      %v631 = vunpack.c.l.b16 %v452
      %v632 = vunpack.c.h.b16 %v452
      %v633 = vunpack.c.l.b16 %v453
      %v634 = vunpack.c.h.b16 %v453
      %v635 = vunpack.c.l.b16 %v454
      %v636 = vunpack.c.h.b16 %v454
      %v637 = vunpack.c.l.b16 %v455
      %v638 = vunpack.c.h.b16 %v455
      %v639 = vunpack.c.l.b16 %v456
      %v640 = vunpack.c.h.b16 %v456
      %v641 = vunpack.c.l.b16 %v457
      %v642 = vunpack.c.h.b16 %v457
      %v643 = vunpack.c.l.b16 %v458
      %v644 = vunpack.c.h.b16 %v458
      %v645 = vunpack.c.l.b16 %v459
      %v646 = vunpack.c.h.b16 %v459
      %v647 = vunpack.c.l.b16 %v460
      %v648 = vunpack.c.h.b16 %v460
      %v649 = vunpack.c.l.b16 %v461
      %v650 = vunpack.c.h.b16 %v461
      %v651 = vunpack.c.l.b16 %v462
      %v652 = vunpack.c.h.b16 %v462
      %v653 = vunpack.c.l.b16 %v463
      %v654 = vunpack.c.h.b16 %v463
      %v655 = vunpack.c.l.b16 %v464
      %v656 = vunpack.c.h.b16 %v464
      %v657 = vpack.c.b16 %v537, %v529
      %v658 = vpack.c.b16 %v538, %v530
      %v659 = vpack.c.b16 %v539, %v531
      %v660 = vpack.c.b16 %v540, %v532
      %v661 = vpack.c.b16 %v541, %v533
      %v662 = vpack.c.b16 %v542, %v534
      %v663 = vpack.c.b16 %v543, %v535
      %v664 = vpack.c.b16 %v544, %v536
      %v665 = vpack.c.b16 %v553, %v545
      %v666 = vpack.c.b16 %v554, %v546
      %v667 = vpack.c.b16 %v555, %v547
      %v668 = vpack.c.b16 %v556, %v548
      %v669 = vpack.c.b16 %v557, %v549
      %v670 = vpack.c.b16 %v558, %v550
      %v671 = vpack.c.b16 %v559, %v551
      %v672 = vpack.c.b16 %v560, %v552
      %v673 = vpack.c.b16 %v569, %v561
      %v674 = vpack.c.b16 %v570, %v562
      %v675 = vpack.c.b16 %v571, %v563
      %v676 = vpack.c.b16 %v572, %v564
      %v677 = vpack.c.b16 %v573, %v565
      %v678 = vpack.c.b16 %v574, %v566
      %v679 = vpack.c.b16 %v575, %v567
      %v680 = vpack.c.b16 %v576, %v568
      %v681 = vpack.c.b16 %v585, %v577
      %v682 = vpack.c.b16 %v586, %v578
      %v683 = vpack.c.b16 %v587, %v579
      %v684 = vpack.c.b16 %v588, %v580
      %v685 = vpack.c.b16 %v589, %v581
      %v686 = vpack.c.b16 %v590, %v582
      %v687 = vpack.c.b16 %v591, %v583
      %v688 = vpack.c.b16 %v592, %v584
      %v689 = vpack.c.b16 %v601, %v593
      %v690 = vpack.c.b16 %v602, %v594
      %v691 = vpack.c.b16 %v603, %v595
      %v692 = vpack.c.b16 %v604, %v596
      %v693 = vpack.c.b16 %v605, %v597
      %v694 = vpack.c.b16 %v606, %v598
      %v695 = vpack.c.b16 %v607, %v599
      %v696 = vpack.c.b16 %v608, %v600
      %v697 = vpack.c.b16 %v617, %v609
      %v698 = vpack.c.b16 %v618, %v610
      %v699 = vpack.c.b16 %v619, %v611
      %v700 = vpack.c.b16 %v620, %v612
      %v701 = vpack.c.b16 %v621, %v613
      %v702 = vpack.c.b16 %v622, %v614
      %v703 = vpack.c.b16 %v623, %v615
      %v704 = vpack.c.b16 %v624, %v616
      %v705 = vpack.c.b16 %v633, %v625
      %v706 = vpack.c.b16 %v634, %v626
      %v707 = vpack.c.b16 %v635, %v627
      %v708 = vpack.c.b16 %v636, %v628
      %v709 = vpack.c.b16 %v637, %v629
      %v710 = vpack.c.b16 %v638, %v630
      %v711 = vpack.c.b16 %v639, %v631
      %v712 = vpack.c.b16 %v640, %v632
      %v713 = vpack.c.b16 %v649, %v641
      %v714 = vpack.c.b16 %v650, %v642
      %v715 = vpack.c.b16 %v651, %v643
      %v716 = vpack.c.b16 %v652, %v644
      %v717 = vpack.c.b16 %v653, %v645
      %v718 = vpack.c.b16 %v654, %v646
      %v719 = vpack.c.b16 %v655, %v647
      %v720 = vpack.c.b16 %v656, %v648
      %785 = vmatprep.subr.bf16.mxu0 %v658
      %786 = vmatpush1.bf16.msra.mxu0 %v657
      %787 = vmatprep.subr.bf16.mxu0 %v666
      %788 = vmatpush1.bf16.msra.mxu0 %v665
      %789 = vmatprep.subr.bf16.mxu0 %v674
      %790 = vmatpush1.bf16.msra.mxu0 %v673
      %791 = vmatprep.subr.bf16.mxu0 %v682
      %792 = vmatpush1.bf16.msra.mxu0 %v681
      %793 = vmatprep.subr.bf16.mxu0 %v690
      %794 = vmatpush1.bf16.msra.mxu0 %v689
      %795 = vmatprep.subr.bf16.mxu0 %v698
      %796 = vmatpush1.bf16.msra.mxu0 %v697
      %797 = vmatprep.subr.bf16.mxu0 %v706
      %798 = vmatpush1.bf16.msra.mxu0 %v705
      %799 = vmatprep.subr.bf16.mxu0 %v714
      %800 = vmatpush1.bf16.msra.mxu0 %v713
      %801 = vmatprep.subr.bf16.mxu0 0
      %802 = vmatpush1.bf16.msra.mxu0 0
      %803 = vmatprep.subr.bf16.mxu0 0
      %804 = vmatpush1.bf16.msra.mxu0 0
      %805 = vmatprep.subr.bf16.mxu0 0
      %806 = vmatpush1.bf16.msra.mxu0 0
      %807 = vmatprep.subr.bf16.mxu0 0
      %808 = vmatpush1.bf16.msra.mxu0 0
      %809 = vmatprep.subr.bf16.mxu0 0
      %810 = vmatpush1.bf16.msra.mxu0 0
      %811 = vmatprep.subr.bf16.mxu0 0
      %812 = vmatpush1.bf16.msra.mxu0 0
      %813 = vmatprep.subr.bf16.mxu0 0
      %814 = vmatpush1.bf16.msra.mxu0 0
      %815 = vmatprep.subr.bf16.mxu0 0
      %816 = vmatpush1.bf16.msra.mxu0 0
      %817 = vmatprep.mubr.bf16.mxu0 0
      %818 = vmatmul.mubr.bf16.gmra.mrb[0].mxu0 %v400
      %v819 = vpop.f32.mrb[0].mxu0
      %v820 = vadd.f32 0.0, %v819
      %v821 = vpop.f32.mrb[0].mxu0
      %v822 = vadd.f32 0.0, %v821
      %v823 = vpop.f32.mrb[0].mxu0
      %v824 = vadd.f32 0.0, %v823
      %v825 = vpop.f32.mrb[0].mxu0
      %v826 = vadd.f32 0.0, %v825
      %827 = vdwg.mxu0
      %828 = vmatprep.subr.bf16.mxu0 %v660
      %829 = vmatpush1.bf16.msra.mxu0 %v659
      %830 = vmatprep.subr.bf16.mxu0 %v668
      %831 = vmatpush1.bf16.msra.mxu0 %v667
      %832 = vmatprep.subr.bf16.mxu0 %v676
      %833 = vmatpush1.bf16.msra.mxu0 %v675
      %834 = vmatprep.subr.bf16.mxu0 %v684
      %835 = vmatpush1.bf16.msra.mxu0 %v683
      %836 = vmatprep.subr.bf16.mxu0 %v692
      %837 = vmatpush1.bf16.msra.mxu0 %v691
      %838 = vmatprep.subr.bf16.mxu0 %v700
      %839 = vmatpush1.bf16.msra.mxu0 %v699
      %840 = vmatprep.subr.bf16.mxu0 %v708
      %841 = vmatpush1.bf16.msra.mxu0 %v707
      %842 = vmatprep.subr.bf16.mxu0 %v716
      %843 = vmatpush1.bf16.msra.mxu0 %v715
      %844 = vmatprep.subr.bf16.mxu0 0
      %845 = vmatpush1.bf16.msra.mxu0 0
      %846 = vmatprep.subr.bf16.mxu0 0
      %847 = vmatpush1.bf16.msra.mxu0 0
      %848 = vmatprep.subr.bf16.mxu0 0
      %849 = vmatpush1.bf16.msra.mxu0 0
      %850 = vmatprep.subr.bf16.mxu0 0
      %851 = vmatpush1.bf16.msra.mxu0 0
      %852 = vmatprep.subr.bf16.mxu0 0
      %853 = vmatpush1.bf16.msra.mxu0 0
      %854 = vmatprep.subr.bf16.mxu0 0
      %855 = vmatpush1.bf16.msra.mxu0 0
      %856 = vmatprep.subr.bf16.mxu0 0
      %857 = vmatpush1.bf16.msra.mxu0 0
      %858 = vmatprep.subr.bf16.mxu0 0
      %859 = vmatpush1.bf16.msra.mxu0 0
      %860 = vmatprep.mubr.bf16.mxu0 0
      %861 = vmatmul.mubr.bf16.gmra.mrb[0].mxu0 %v400
      %v862 = vpop.f32.mrb[0].mxu0
      %v863 = vadd.f32 0.0, %v862
      %v864 = vpop.f32.mrb[0].mxu0
      %v865 = vadd.f32 0.0, %v864
      %v866 = vpop.f32.mrb[0].mxu0
      %v867 = vadd.f32 0.0, %v866
      %v868 = vpop.f32.mrb[0].mxu0
      %v869 = vadd.f32 0.0, %v868
      %870 = vdwg.mxu0
      %871 = vmatprep.subr.bf16.mxu0 %v662
      %872 = vmatpush1.bf16.msra.mxu0 %v661
      %873 = vmatprep.subr.bf16.mxu0 %v670
      %874 = vmatpush1.bf16.msra.mxu0 %v669
      %875 = vmatprep.subr.bf16.mxu0 %v678
      %876 = vmatpush1.bf16.msra.mxu0 %v677
      %877 = vmatprep.subr.bf16.mxu0 %v686
      %878 = vmatpush1.bf16.msra.mxu0 %v685
      %879 = vmatprep.subr.bf16.mxu0 %v694
      %880 = vmatpush1.bf16.msra.mxu0 %v693
      %881 = vmatprep.subr.bf16.mxu0 %v702
      %882 = vmatpush1.bf16.msra.mxu0 %v701
      %883 = vmatprep.subr.bf16.mxu0 %v710
      %884 = vmatpush1.bf16.msra.mxu0 %v709
      %885 = vmatprep.subr.bf16.mxu0 %v718
      %886 = vmatpush1.bf16.msra.mxu0 %v717
      %887 = vmatprep.subr.bf16.mxu0 0
      %888 = vmatpush1.bf16.msra.mxu0 0
      %889 = vmatprep.subr.bf16.mxu0 0
      %890 = vmatpush1.bf16.msra.mxu0 0
      %891 = vmatprep.subr.bf16.mxu0 0
      %892 = vmatpush1.bf16.msra.mxu0 0
      %893 = vmatprep.subr.bf16.mxu0 0
      %894 = vmatpush1.bf16.msra.mxu0 0
      %895 = vmatprep.subr.bf16.mxu0 0
      %896 = vmatpush1.bf16.msra.mxu0 0
      %897 = vmatprep.subr.bf16.mxu0 0
      %898 = vmatpush1.bf16.msra.mxu0 0
      %899 = vmatprep.subr.bf16.mxu0 0
      %900 = vmatpush1.bf16.msra.mxu0 0
      %901 = vmatprep.subr.bf16.mxu0 0
      %902 = vmatpush1.bf16.msra.mxu0 0
      %903 = vmatprep.mubr.bf16.mxu0 0
      %904 = vmatmul.mubr.bf16.gmra.mrb[0].mxu0 %v400
      %v905 = vpop.f32.mrb[0].mxu0
      %v906 = vadd.f32 0.0, %v905
      %v907 = vpop.f32.mrb[0].mxu0
      %v908 = vadd.f32 0.0, %v907
      %v909 = vpop.f32.mrb[0].mxu0
      %v910 = vadd.f32 0.0, %v909
      %v911 = vpop.f32.mrb[0].mxu0
      %v912 = vadd.f32 0.0, %v911
      %913 = vdwg.mxu0
      %914 = vmatprep.subr.bf16.mxu0 %v664
      %915 = vmatpush1.bf16.msra.mxu0 %v663
      %916 = vmatprep.subr.bf16.mxu0 %v672
      %917 = vmatpush1.bf16.msra.mxu0 %v671
      %918 = vmatprep.subr.bf16.mxu0 %v680
      %919 = vmatpush1.bf16.msra.mxu0 %v679
      %920 = vmatprep.subr.bf16.mxu0 %v688
      %921 = vmatpush1.bf16.msra.mxu0 %v687
      %922 = vmatprep.subr.bf16.mxu0 %v696
      %923 = vmatpush1.bf16.msra.mxu0 %v695
      %924 = vmatprep.subr.bf16.mxu0 %v704
      %925 = vmatpush1.bf16.msra.mxu0 %v703
      %926 = vmatprep.subr.bf16.mxu0 %v712
      %927 = vmatpush1.bf16.msra.mxu0 %v711
      %928 = vmatprep.subr.bf16.mxu0 %v720
      %929 = vmatpush1.bf16.msra.mxu0 %v719
      %930 = vmatprep.subr.bf16.mxu0 0
      %931 = vmatpush1.bf16.msra.mxu0 0
      %932 = vmatprep.subr.bf16.mxu0 0
      %933 = vmatpush1.bf16.msra.mxu0 0
      %934 = vmatprep.subr.bf16.mxu0 0
      %935 = vmatpush1.bf16.msra.mxu0 0
      %936 = vmatprep.subr.bf16.mxu0 0
      %937 = vmatpush1.bf16.msra.mxu0 0
      %938 = vmatprep.subr.bf16.mxu0 0
      %939 = vmatpush1.bf16.msra.mxu0 0
      %940 = vmatprep.subr.bf16.mxu0 0
      %941 = vmatpush1.bf16.msra.mxu0 0
      %942 = vmatprep.subr.bf16.mxu0 0
      %943 = vmatpush1.bf16.msra.mxu0 0
      %944 = vmatprep.subr.bf16.mxu0 0
      %945 = vmatpush1.bf16.msra.mxu0 0
      %946 = vmatprep.mubr.bf16.mxu0 0
      %947 = vmatmul.mubr.bf16.gmra.mrb[0].mxu0 %v400
      %v948 = vpop.f32.mrb[0].mxu0
      %v949 = vadd.f32 0.0, %v948
      %v950 = vpop.f32.mrb[0].mxu0
      %v951 = vadd.f32 0.0, %v950
      %v952 = vpop.f32.mrb[0].mxu0
      %v953 = vadd.f32 0.0, %v952
      %v954 = vpop.f32.mrb[0].mxu0
      %v955 = vadd.f32 0.0, %v954
      %956 = vdwg.mxu0
      %p957 = scmp.eq.s32.totalorder %s20, 1
      // Predicated region
      $region41: #{pointnet_densecls_forward.4} parent=35 // pred_check
        %p958 = pneg %p957
      $region42: #{pointnet_densecls_forward.4} parent=35 // pred_check_branch
        %960 = sbr.rel (%p958) target = $region44
      $region43: #{pointnet_densecls_forward.4} parent=35 // pred_region
        %s961 = smul.u32 %s20, 16
        %v962 = vlaneseq
        %v963 = vshrl.u32 %v962, 7
        %v964 = vadd.s32 %v963, 8
        %v965 = vstv %s961
        %v966 = vadd.s32 %v965, %v963
        %v967 = vadd.s32 %v965, %v964
        %vm968 = vcmp.lt.s32.totalorder %v966, 20
        %vm969 = vcmp.lt.s32.totalorder %v967, 20
        %v970 = vsel %vm968, 1, 0
        %v971 = vsel %vm969, 1, 0
        %vm972 = vcmp.eq.s32.totalorder %v970, 1
        %vm973 = vcmp.eq.s32.totalorder %v971, 1
        %v974 = vsel %vm972, %v820, -inf
        %v975 = vsel %vm972, %v822, -inf
        %v976 = vsel %vm972, %v863, -inf
        %v977 = vsel %vm972, %v865, -inf
        %v978 = vsel %vm972, %v906, -inf
        %v979 = vsel %vm972, %v908, -inf
        %v980 = vsel %vm972, %v949, -inf
        %v981 = vsel %vm972, %v951, -inf
        %v982 = vsel %vm973, %v824, -inf
        %v983 = vsel %vm973, %v826, -inf
        %v984 = vsel %vm973, %v867, -inf
        %v985 = vsel %vm973, %v869, -inf
        %v986 = vsel %vm973, %v910, -inf
        %v987 = vsel %vm973, %v912, -inf
        %v988 = vsel %vm973, %v953, -inf
        %v989 = vsel %vm973, %v955, -inf
        %v990 = vld [vmem:[%s243] sm:$0xff]
        %v991 = vmax.f32 %v974, %v982
        %v992 = vrot.slane %v991, 4
        %v993 = vmax.f32 %v991, %v992
        %v994 = vrot.slane %v993, 2
        %v995 = vmax.f32 %v993, %v994
        %v996 = vrot.slane %v995, 1
        %v997 = vmax.f32 %v995, %v996
        %v998 = vmax.f32 %v975, %v983
        %v999 = vrot.slane %v998, 4
        %v1000 = vmax.f32 %v998, %v999
        %v1001 = vrot.slane %v1000, 2
        %v1002 = vmax.f32 %v1000, %v1001
        %v1003 = vrot.slane %v1002, 1
        %v1004 = vmax.f32 %v1002, %v1003
        %v1005 = vmax.f32 %v976, %v984
        %v1006 = vrot.slane %v1005, 4
        %v1007 = vmax.f32 %v1005, %v1006
        %v1008 = vrot.slane %v1007, 2
        %v1009 = vmax.f32 %v1007, %v1008
        %v1010 = vrot.slane %v1009, 1
        %v1011 = vmax.f32 %v1009, %v1010
        %v1012 = vmax.f32 %v977, %v985
        %v1013 = vrot.slane %v1012, 4
        %v1014 = vmax.f32 %v1012, %v1013
        %v1015 = vrot.slane %v1014, 2
        %v1016 = vmax.f32 %v1014, %v1015
        %v1017 = vrot.slane %v1016, 1
        %v1018 = vmax.f32 %v1016, %v1017
        %v1019 = vmax.f32 %v978, %v986
        %v1020 = vrot.slane %v1019, 4
        %v1021 = vmax.f32 %v1019, %v1020
        %v1022 = vrot.slane %v1021, 2
        %v1023 = vmax.f32 %v1021, %v1022
        %v1024 = vrot.slane %v1023, 1
        %v1025 = vmax.f32 %v1023, %v1024
        %v1026 = vmax.f32 %v979, %v987
        %v1027 = vrot.slane %v1026, 4
        %v1028 = vmax.f32 %v1026, %v1027
        %v1029 = vrot.slane %v1028, 2
        %v1030 = vmax.f32 %v1028, %v1029
        %v1031 = vrot.slane %v1030, 1
        %v1032 = vmax.f32 %v1030, %v1031
        %v1033 = vmax.f32 %v980, %v988
        %v1034 = vrot.slane %v1033, 4
        %v1035 = vmax.f32 %v1033, %v1034
        %v1036 = vrot.slane %v1035, 2
        %v1037 = vmax.f32 %v1035, %v1036
        %v1038 = vrot.slane %v1037, 1
        %v1039 = vmax.f32 %v1037, %v1038
        %v1040 = vmax.f32 %v981, %v989
        %v1041 = vrot.slane %v1040, 4
        %v1042 = vmax.f32 %v1040, %v1041
        %v1043 = vrot.slane %v1042, 2
        %v1044 = vmax.f32 %v1042, %v1043
        %v1045 = vrot.slane %v1044, 1
        %v1046 = vmax.f32 %v1044, %v1045
        %v1055 = vcombine.low %v997, %v1004
        %v1056 = vcombine.low %v1011, %v1018
        %v1057 = vcombine.low %v1025, %v1032
        %v1058 = vcombine.low %v1039, %v1046
        %v1060 = vunpack.c.l.s4 1966171168
        %v1061 = vunpack.c.0.s8 %v1060
        %v1062 = vlaneseq
        %v1063 = vshrl.u32 %v1062, 7
        %v1064 = vsub.s32 %v1061, %v1063
        %v1065 = vrot.slane %v1055, %v1064
        %v1067 = vunpack.c.l.s4 1966171168
        %v1068 = vunpack.c.0.s8 %v1067
        %v1069 = vlaneseq
        %v1070 = vshrl.u32 %v1069, 7
        %v1071 = vsub.s32 %v1068, %v1070
        %v1072 = vrot.slane %v1056, %v1071
        %v1074 = vunpack.c.l.s4 1966171168
        %v1075 = vunpack.c.0.s8 %v1074
        %v1076 = vlaneseq
        %v1077 = vshrl.u32 %v1076, 7
        %v1078 = vsub.s32 %v1075, %v1077
        %v1079 = vrot.slane %v1057, %v1078
        %v1081 = vunpack.c.l.s4 1966171168
        %v1082 = vunpack.c.0.s8 %v1081
        %v1083 = vlaneseq
        %v1084 = vshrl.u32 %v1083, 7
        %v1085 = vsub.s32 %v1082, %v1084
        %v1086 = vrot.slane %v1058, %v1085
        %v1087 = vcombine.low %v1065, %v1072
        %v1088 = vcombine.low %v1079, %v1086
        %v1090 = vunpack.c.l.s4 1966171168
        %v1091 = vunpack.c.0.s8 %v1090
        %v1092 = vlaneseq
        %v1093 = vshrl.u32 %v1092, 7
        %v1094 = vsub.s32 %v1091, %v1093
        %v1095 = vrot.slane %v1087, %v1094
        %v1097 = vunpack.c.l.s4 1966171168
        %v1098 = vunpack.c.0.s8 %v1097
        %v1099 = vlaneseq
        %v1100 = vshrl.u32 %v1099, 7
        %v1101 = vsub.s32 %v1098, %v1100
        %v1102 = vrot.slane %v1088, %v1101
        %v1103 = vcombine.low %v1095, %v1102
        %v1105 = vmax.f32 %v990, %v1103
        %1106 = vst [vmem:[%s243] sm:$0xff] %v1105
      $region44: #{pointnet_densecls_forward.4} parent=35 // pred_fallthru
        _
      %p1107 = scmp.ne.s32.totalorder %s20, 1
      // Predicated region
      $region45: #{pointnet_densecls_forward.4} parent=35 // pred_check
        %p1108 = pneg %p1107
      $region46: #{pointnet_densecls_forward.4} parent=35 // pred_check_branch
        %1110 = sbr.rel (%p1108) target = $region48
      $region47: #{pointnet_densecls_forward.4} parent=35 // pred_region
        %v1111 = vld [vmem:[%s243] sm:$0xff]
        %v1112 = vmax.f32 %v820, %v824
        %v1113 = vrot.slane %v1112, 4
        %v1114 = vmax.f32 %v1112, %v1113
        %v1115 = vrot.slane %v1114, 2
        %v1116 = vmax.f32 %v1114, %v1115
        %v1117 = vrot.slane %v1116, 1
        %v1118 = vmax.f32 %v1116, %v1117
        %v1119 = vmax.f32 %v822, %v826
        %v1120 = vrot.slane %v1119, 4
        %v1121 = vmax.f32 %v1119, %v1120
        %v1122 = vrot.slane %v1121, 2
        %v1123 = vmax.f32 %v1121, %v1122
        %v1124 = vrot.slane %v1123, 1
        %v1125 = vmax.f32 %v1123, %v1124
        %v1126 = vmax.f32 %v863, %v867
        %v1127 = vrot.slane %v1126, 4
        %v1128 = vmax.f32 %v1126, %v1127
        %v1129 = vrot.slane %v1128, 2
        %v1130 = vmax.f32 %v1128, %v1129
        %v1131 = vrot.slane %v1130, 1
        %v1132 = vmax.f32 %v1130, %v1131
        %v1133 = vmax.f32 %v865, %v869
        %v1134 = vrot.slane %v1133, 4
        %v1135 = vmax.f32 %v1133, %v1134
        %v1136 = vrot.slane %v1135, 2
        %v1137 = vmax.f32 %v1135, %v1136
        %v1138 = vrot.slane %v1137, 1
        %v1139 = vmax.f32 %v1137, %v1138
        %v1140 = vmax.f32 %v906, %v910
        %v1141 = vrot.slane %v1140, 4
        %v1142 = vmax.f32 %v1140, %v1141
        %v1143 = vrot.slane %v1142, 2
        %v1144 = vmax.f32 %v1142, %v1143
        %v1145 = vrot.slane %v1144, 1
        %v1146 = vmax.f32 %v1144, %v1145
        %v1147 = vmax.f32 %v908, %v912
        %v1148 = vrot.slane %v1147, 4
        %v1149 = vmax.f32 %v1147, %v1148
        %v1150 = vrot.slane %v1149, 2
        %v1151 = vmax.f32 %v1149, %v1150
        %v1152 = vrot.slane %v1151, 1
        %v1153 = vmax.f32 %v1151, %v1152
        %v1154 = vmax.f32 %v949, %v953
        %v1155 = vrot.slane %v1154, 4
        %v1156 = vmax.f32 %v1154, %v1155
        %v1157 = vrot.slane %v1156, 2
        %v1158 = vmax.f32 %v1156, %v1157
        %v1159 = vrot.slane %v1158, 1
        %v1160 = vmax.f32 %v1158, %v1159
        %v1161 = vmax.f32 %v951, %v955
        %v1162 = vrot.slane %v1161, 4
        %v1163 = vmax.f32 %v1161, %v1162
        %v1164 = vrot.slane %v1163, 2
        %v1165 = vmax.f32 %v1163, %v1164
        %v1166 = vrot.slane %v1165, 1
        %v1167 = vmax.f32 %v1165, %v1166
        %v1176 = vcombine.low %v1118, %v1125
        %v1177 = vcombine.low %v1132, %v1139
        %v1178 = vcombine.low %v1146, %v1153
        %v1179 = vcombine.low %v1160, %v1167
        %v1181 = vunpack.c.l.s4 1966171168
        %v1182 = vunpack.c.0.s8 %v1181
        %v1183 = vlaneseq
        %v1184 = vshrl.u32 %v1183, 7
        %v1185 = vsub.s32 %v1182, %v1184
        %v1186 = vrot.slane %v1176, %v1185
        %v1188 = vunpack.c.l.s4 1966171168
        %v1189 = vunpack.c.0.s8 %v1188
        %v1190 = vlaneseq
        %v1191 = vshrl.u32 %v1190, 7
        %v1192 = vsub.s32 %v1189, %v1191
        %v1193 = vrot.slane %v1177, %v1192
        %v1195 = vunpack.c.l.s4 1966171168
        %v1196 = vunpack.c.0.s8 %v1195
        %v1197 = vlaneseq
        %v1198 = vshrl.u32 %v1197, 7
        %v1199 = vsub.s32 %v1196, %v1198
        %v1200 = vrot.slane %v1178, %v1199
        %v1202 = vunpack.c.l.s4 1966171168
        %v1203 = vunpack.c.0.s8 %v1202
        %v1204 = vlaneseq
        %v1205 = vshrl.u32 %v1204, 7
        %v1206 = vsub.s32 %v1203, %v1205
        %v1207 = vrot.slane %v1179, %v1206
        %v1208 = vcombine.low %v1186, %v1193
        %v1209 = vcombine.low %v1200, %v1207
        %v1211 = vunpack.c.l.s4 1966171168
        %v1212 = vunpack.c.0.s8 %v1211
        %v1213 = vlaneseq
        %v1214 = vshrl.u32 %v1213, 7
        %v1215 = vsub.s32 %v1212, %v1214
        %v1216 = vrot.slane %v1208, %v1215
        %v1218 = vunpack.c.l.s4 1966171168
        %v1219 = vunpack.c.0.s8 %v1218
        %v1220 = vlaneseq
        %v1221 = vshrl.u32 %v1220, 7
        %v1222 = vsub.s32 %v1219, %v1221
        %v1223 = vrot.slane %v1209, %v1222
        %v1224 = vcombine.low %v1216, %v1223
        %v1226 = vmax.f32 %v1111, %v1224
        %1227 = vst [vmem:[%s243] sm:$0xff] %v1226
      $region48: #{pointnet_densecls_forward.4} parent=35 // pred_fallthru
        _
      %p1228 = scmp.lt.s32.totalorder %s19, 1
      %s1229 = scalar_select %p1228, %s19, 1
      %s1230 = smul.addr %s1229, 8
      %s1231 = scalar_lea.vmem %s4, %s1230
      // Predicated region
      $region49: #{pointnet_densecls_forward.4} parent=35 // pred_check
        %p1232 = pneg %p141
      $region50: #{pointnet_densecls_forward.4} parent=35 // pred_check_branch
        %1234 = sbr.rel (%p1232) target = $region52
      $region51: #{pointnet_densecls_forward.4} parent=35 // pred_region
        _
      $region52: #{pointnet_densecls_forward.4} parent=35 // pred_fallthru
        _
    $region36: #{pointnet_densecls_forward.4} parent=5 // pred_fallthru
      _
    %p1235 = scmp.le.s32.totalorder 2, %s10
    // Predicated region
    $region53: #{pointnet_densecls_forward.4} parent=5 // pred_check
      %p1236 = pneg %p1235
    $region54: #{pointnet_densecls_forward.4} parent=5 // pred_check_branch
      %1238 = sbr.rel (%p1236) target = $region56
    $region55: #{pointnet_densecls_forward.4} parent=5 // pred_region
      %s1239 = ssub.s32 %s10, 2
      // Predicated region
      $region57: #{pointnet_densecls_forward.4} parent=55 // pred_check
        %p1240 = pneg %p147
      $region58: #{pointnet_densecls_forward.4} parent=55 // pred_check_branch
        %1242 = sbr.rel (%p1240) target = $region60
      $region59: #{pointnet_densecls_forward.4} parent=55 // pred_region
        %p1243 = scmp.lt.s32.totalorder %s21, 1
        %s1244 = scalar_select %p1243, %s21, 1
        %s1245 = smul.addr %s1244, 8
        %s1246 = scalar_lea.vmem %s4, %s1245
      $region60: #{pointnet_densecls_forward.4} parent=55 // pred_fallthru
        _
    $region56: #{pointnet_densecls_forward.4} parent=5 // pred_fallthru
      _
  $region6: #{pointnet_densecls_forward.4} parent=0 // loop_footer
    %s14 = sadd.s32 1, %s10
  $region7: #{pointnet_densecls_forward.4} parent=0 // loop_footer_branch
    %9 = sbr.rel target = $region3
  $region8: #{pointnet_densecls_forward.4} parent=0 // loop_exit
    _

// kernel: pointnet_densecls_forward.3
$region0: #{pointnet_densecls_forward.3}
  #allocation0 [shape = 'u32[]', space=smem, size = 0x4, offset = 0x4, fixed_abs, tag = 'smem constant byte address 0x4 - core index']
  #allocation1 [shape = 'u32[144,128]{1,0:T(1,128)}', space=vmem, size = 0x12000, scoped, tag = 'internal scratch']
  %s0 = inlined_call_operand.vmem [shape: bf16[2,32,24], index: 0, kind: input, shape index: {}]
  %s1 = inlined_call_operand.hbm [shape: bf16[24,64], index: 1, kind: input, shape index: {}]
  %s2 = inlined_call_operand.hbm [shape: bf16[64,128], index: 2, kind: input, shape index: {}]
  %s3 = inlined_call_operand.hbm [shape: bf16[128,1024], index: 3, kind: input, shape index: {}]
  %s4 = inlined_call_operand.vmem [shape: f32[2,1,1024], index: 4, kind: output, shape index: {}]
  %s5 = sld [smem:[#allocation0]]
  $region65: #{pointnet_densecls_forward.3} parent=0
    _
  %s7 = ssub.s32 1, %s5
  %s8 = scalar_select 0, %s7, %s5
  $region1: #{pointnet_densecls_forward.3} parent=0
    #allocation2 [shape = 'u8[6144]{0}', space=vmem, size = 0x1800, scoped, tag = 'input window, operand 1, single buffered']
    #allocation3 [shape = 's32[2]{0}', space=sflag, size = 0x8, scoped, tag = 'scoped memory for pointnet_densecls_forward.3']
    #allocation4 [shape = 'u8[16384]{0}', space=vmem, size = 0x4000, scoped, tag = 'input window, operand 2, single buffered']
    #allocation5 [shape = 's32[1]{0}', space=sflag, size = 0x4, scoped, tag = 'scoped memory for pointnet_densecls_forward.3']
    #allocation6 [shape = 'u8[262144]{0}', space=vmem, size = 0x40000, scoped, tag = 'input window, operand 3, single buffered']
    %9 = vsyncpa [#allocation3], 0
    %10 = vsyncpa [#allocation5], 0
    loop: start=0, step=1, limit=6
    $region2: #{pointnet_densecls_forward.3} parent=1 // loop_pre_header
      _
    $region3: #{pointnet_densecls_forward.3} parent=1 // loop_header
      %s12 = sphi 0, %s16
      %p13 = scmp.ge.s32.totalorder %s12, 6
      %s19 = sphi 0, %s31
      %s20 = sphi 0, %s27
      %s21 = sphi 0, %s19
      %s22 = sphi 0, %s20
      %s23 = sphi 0, %s21
      %s24 = sphi 0, %s22
      %s36 = sphi 0, %s38
      %s39 = sphi 0, %s36
      %s40 = sphi 0, %s39
      %s56 = sphi 0, %s40
      %s60 = sphi 0, %s60
      %s62 = sphi 0, %s60
      %s63 = sphi 0, %s62
      %s77 = sphi 0, %s63
      %s81 = sphi 0, %s81
      %s83 = sphi 0, %s81
      %s84 = sphi 0, %s83
      %s98 = sphi 0, %s84
      %s102 = sphi 0, %s102
      %s104 = sphi 0, %s102
      %s105 = sphi 0, %s104
      %s119 = sphi 0, %s105
      %s125 = sphi 0, %s127
      %s128 = sphi 0, %s125
      %s129 = sphi 0, %s128
      %s145 = sphi 0, %s129
    $region4: #{pointnet_densecls_forward.3} parent=1 // loop_header_branch
      %15 = sbr.rel (%p13) target = $region8
    $region5: #{pointnet_densecls_forward.3} parent=1 // loop_body
      %s17 = ssub.s32 %s12, 1
      %s18 = ssub.s32 %s12, 2
      %s25 = sadd.s32 1, %s20
      %p26 = scmp.ge.s32.totalorder %s25, 2
      %s27 = scalar_select %p26, 0, %s25
      %s28 = sadd.s32 1, %s19
      %s29 = scalar_select %p26, %s28, %s19
      %p30 = scmp.ge.s32.totalorder %s29, 2
      %s31 = scalar_select %p30, 0, %s29
      %s32 = ssub.s32 %s19, %s31
      %s33 = ssub.s32 %s20, %s27
      %s34 = sor.u32 %s32, %s33
      %p35 = scmp.eq.s32.totalorder %s34, 0
      %s37 = sadd.s32 %s36, 1
      %s38 = scalar_select %p35, %s36, %s37
      %p41 = pneg %p35
      %p42 = scmp.eq.s32.totalorder %s12, 3
      %p43 = por %p41, %p42
      %p44 = scmp.ne.s32.totalorder %s36, %s39
      %p45 = scmp.eq.s32.totalorder %s12, 0
      %p46 = por %p44, %p45
      %p47 = scmp.ne.s32.totalorder %s36, %s39
      %p48 = scmp.eq.s32.totalorder %s17, 3
      %p49 = por %p47, %p48
      %p50 = scmp.ne.s32.totalorder %s39, %s40
      %p51 = scmp.eq.s32.totalorder %s17, 0
      %p52 = por %p50, %p51
      %p53 = scmp.ne.s32.totalorder %s39, %s40
      %p54 = scmp.eq.s32.totalorder %s18, 3
      %p55 = por %p53, %p54
      %p57 = scmp.ne.s32.totalorder %s40, %s56
      %p58 = scmp.eq.s32.totalorder %s18, 0
      %p59 = por %p57, %p58
      %s61 = sadd.s32 %s60, 1
      %p64 = scmp.eq.s32.totalorder %s12, 3
      %p65 = scmp.ne.s32.totalorder %s60, %s62
      %p66 = scmp.eq.s32.totalorder %s12, 0
      %p67 = por %p65, %p66
      %p68 = scmp.ne.s32.totalorder %s60, %s62
      %p69 = scmp.eq.s32.totalorder %s17, 3
      %p70 = por %p68, %p69
      %p71 = scmp.ne.s32.totalorder %s62, %s63
      %p72 = scmp.eq.s32.totalorder %s17, 0
      %p73 = por %p71, %p72
      %p74 = scmp.ne.s32.totalorder %s62, %s63
      %p75 = scmp.eq.s32.totalorder %s18, 3
      %p76 = por %p74, %p75
      %p78 = scmp.ne.s32.totalorder %s63, %s77
      %p79 = scmp.eq.s32.totalorder %s18, 0
      %p80 = por %p78, %p79
      %s82 = sadd.s32 %s81, 1
      %p85 = scmp.eq.s32.totalorder %s12, 3
      %p86 = scmp.ne.s32.totalorder %s81, %s83
      %p87 = scmp.eq.s32.totalorder %s12, 0
      %p88 = por %p86, %p87
      %p89 = scmp.ne.s32.totalorder %s81, %s83
      %p90 = scmp.eq.s32.totalorder %s17, 3
      %p91 = por %p89, %p90
      %p92 = scmp.ne.s32.totalorder %s83, %s84
      %p93 = scmp.eq.s32.totalorder %s17, 0
      %p94 = por %p92, %p93
      %p95 = scmp.ne.s32.totalorder %s83, %s84
      %p96 = scmp.eq.s32.totalorder %s18, 3
      %p97 = por %p95, %p96
      %p99 = scmp.ne.s32.totalorder %s84, %s98
      %p100 = scmp.eq.s32.totalorder %s18, 0
      %p101 = por %p99, %p100
      %s103 = sadd.s32 %s102, 1
      %p106 = scmp.eq.s32.totalorder %s12, 3
      %p107 = scmp.ne.s32.totalorder %s102, %s104
      %p108 = scmp.eq.s32.totalorder %s12, 0
      %p109 = por %p107, %p108
      %p110 = scmp.ne.s32.totalorder %s102, %s104
      %p111 = scmp.eq.s32.totalorder %s17, 3
      %p112 = por %p110, %p111
      %p113 = scmp.ne.s32.totalorder %s104, %s105
      %p114 = scmp.eq.s32.totalorder %s17, 0
      %p115 = por %p113, %p114
      %p116 = scmp.ne.s32.totalorder %s104, %s105
      %p117 = scmp.eq.s32.totalorder %s18, 3
      %p118 = por %p116, %p117
      %p120 = scmp.ne.s32.totalorder %s105, %s119
      %p121 = scmp.eq.s32.totalorder %s18, 0
      %p122 = por %p120, %p121
      %s123 = ssub.s32 %s19, %s31
      %p124 = scmp.eq.s32.totalorder %s123, 0
      %s126 = sadd.s32 %s125, 1
      %s127 = scalar_select %p124, %s125, %s126
      %p130 = pneg %p124
      %p131 = scmp.eq.s32.totalorder %s12, 3
      %p132 = por %p130, %p131
      %p133 = scmp.ne.s32.totalorder %s125, %s128
      %p134 = scmp.eq.s32.totalorder %s12, 0
      %p135 = por %p133, %p134
      %p136 = scmp.ne.s32.totalorder %s125, %s128
      %p137 = scmp.eq.s32.totalorder %s17, 3
      %p138 = por %p136, %p137
      %p139 = scmp.ne.s32.totalorder %s128, %s129
      %p140 = scmp.eq.s32.totalorder %s17, 0
      %p141 = por %p139, %p140
      %p142 = scmp.ne.s32.totalorder %s128, %s129
      %p143 = scmp.eq.s32.totalorder %s18, 3
      %p144 = por %p142, %p143
      %p146 = scmp.ne.s32.totalorder %s129, %s145
      %p147 = scmp.eq.s32.totalorder %s18, 0
      %p148 = por %p146, %p147
      %p149 = scmp.le.s32.totalorder 1, %s12
      %p150 = scmp.lt.s32.totalorder %s12, 5
      %p151 = pnand %p149, %p150
      %p152 = pneg %p151
      // Predicated region
      $region9: #{pointnet_densecls_forward.3} parent=5 // pred_check
        _
      $region10: #{pointnet_densecls_forward.3} parent=5 // pred_check_branch
        %154 = sbr.rel (%p151) target = $region12
      $region11: #{pointnet_densecls_forward.3} parent=5 // pred_region
        %s155 = ssub.s32 %s12, 1
        // Predicated region
        $region13: #{pointnet_densecls_forward.3} parent=11 // pred_check
          %p156 = pneg %p73
        $region14: #{pointnet_densecls_forward.3} parent=11 // pred_check_branch
          %158 = sbr.rel (%p156) target = $region16
        $region15: #{pointnet_densecls_forward.3} parent=11 // pred_region
          %s160 = ssub.s32 192, 192
          %161 = vsyncadd [#allocation3], %s160
          %s162 = sshll.u32 [#allocation2], 4
          %s163 = int_to_ptr.vmem [resolvable:$true] %s162
          %168 = dma.hbm_to_vmem [thread:$0]  %s1, 192, %s163, [#allocation3], 64, 64, 4
        $region16: #{pointnet_densecls_forward.3} parent=11 // pred_fallthru
          _
        // Predicated region
        $region17: #{pointnet_densecls_forward.3} parent=11 // pred_check
          %p169 = pneg %p94
        $region18: #{pointnet_densecls_forward.3} parent=11 // pred_check_branch
          %171 = sbr.rel (%p169) target = $region20
        $region19: #{pointnet_densecls_forward.3} parent=11 // pred_region
          %s173 = ssub.s32 512, 512
          %174 = vsyncadd [#allocation5], %s173
          %s175 = sshll.u32 [#allocation4], 4
          %s176 = int_to_ptr.vmem [resolvable:$true] %s175
          %181 = dma.hbm_to_vmem [thread:$0]  %s2, 512, %s176, [#allocation5], 64, 64, 4
        $region20: #{pointnet_densecls_forward.3} parent=11 // pred_fallthru
          _
        // Predicated region
        $region21: #{pointnet_densecls_forward.3} parent=11 // pred_check
          %p182 = pneg %p115
        $region22: #{pointnet_densecls_forward.3} parent=11 // pred_check_branch
          %184 = sbr.rel (%p182) target = $region24
        $region23: #{pointnet_densecls_forward.3} parent=11 // pred_region
          %s186 = ssub.s32 8192, 8192
          %187 = vsyncadd [#allocation5], %s186
          %s188 = sshll.u32 [#allocation6], 4
          %s189 = int_to_ptr.vmem [resolvable:$true] %s188
          %194 = dma.hbm_to_vmem [thread:$0]  %s3, 8192, %s189, [#allocation5], 512, 512, 32
        $region24: #{pointnet_densecls_forward.3} parent=11 // pred_fallthru
          _
      $region12: #{pointnet_densecls_forward.3} parent=5 // pred_fallthru
        _
      %p195 = scmp.lt.s32.totalorder %s12, 4
      // Predicated region
      $region25: #{pointnet_densecls_forward.3} parent=5 // pred_check
        %p196 = pneg %p195
      $region26: #{pointnet_densecls_forward.3} parent=5 // pred_check_branch
        %198 = sbr.rel (%p196) target = $region28
      $region27: #{pointnet_densecls_forward.3} parent=5 // pred_region
        // Predicated region
        $region29: #{pointnet_densecls_forward.3} parent=27 // pred_check
          %p199 = pneg %p46
        $region30: #{pointnet_densecls_forward.3} parent=27 // pred_check_branch
          %201 = sbr.rel (%p199) target = $region32
        $region31: #{pointnet_densecls_forward.3} parent=27 // pred_region
          %s202 = smul.u32 2, %s20
          %p203 = scmp.lt.s32.totalorder %s19, 1
          %s204 = scalar_select %p203, %s19, 1
          %p205 = scmp.lt.s32.totalorder %s202, 3
          %s206 = scalar_select %p205, %s202, 3
          %s207 = smul.addr %s204, 4
          %s208 = sadd.s32 %s206, %s207
          %s209 = smul.addr %s208, 4
          %s210 = scalar_lea.vmem %s0, %s209
          %s211 = smul.u32 2, %s20
        $region32: #{pointnet_densecls_forward.3} parent=27 // pred_fallthru
          _
      $region28: #{pointnet_densecls_forward.3} parent=5 // pred_fallthru
        _
      %p212 = scmp.le.s32.totalorder 1, %s12
      %p213 = scmp.lt.s32.totalorder %s12, 5
      %p214 = pnand %p212, %p213
      %p215 = pneg %p214
      // Predicated region
      $region33: #{pointnet_densecls_forward.3} parent=5 // pred_check
        _
      $region34: #{pointnet_densecls_forward.3} parent=5 // pred_check_branch
        %217 = sbr.rel (%p214) target = $region36
      $region35: #{pointnet_densecls_forward.3} parent=5 // pred_region
        %s218 = ssub.s32 %s12, 1
        // Predicated region
        $region37: #{pointnet_densecls_forward.3} parent=35 // pred_check
          %p219 = pneg %p73
        $region38: #{pointnet_densecls_forward.3} parent=35 // pred_check_branch
          %221 = sbr.rel (%p219) target = $region40
        $region39: #{pointnet_densecls_forward.3} parent=35 // pred_region
          %222 = dma.done [#allocation3], 192
        $region40: #{pointnet_densecls_forward.3} parent=35 // pred_fallthru
          _
        // Predicated region
        $region41: #{pointnet_densecls_forward.3} parent=35 // pred_check
          %p223 = pneg %p94
        $region42: #{pointnet_densecls_forward.3} parent=35 // pred_check_branch
          %225 = sbr.rel (%p223) target = $region44
        $region43: #{pointnet_densecls_forward.3} parent=35 // pred_region
          %226 = dma.done [#allocation5], 512
        $region44: #{pointnet_densecls_forward.3} parent=35 // pred_fallthru
          _
        // Predicated region
        $region45: #{pointnet_densecls_forward.3} parent=35 // pred_check
          %p227 = pneg %p115
        $region46: #{pointnet_densecls_forward.3} parent=35 // pred_check_branch
          %229 = sbr.rel (%p227) target = $region48
        $region47: #{pointnet_densecls_forward.3} parent=35 // pred_region
          %230 = dma.done [#allocation5], 8192
        $region48: #{pointnet_densecls_forward.3} parent=35 // pred_fallthru
          _
        %s231 = smul.u32 2, %s22
        %p232 = scmp.lt.s32.totalorder %s21, 1
        %s233 = scalar_select %p232, %s21, 1
        %p234 = scmp.lt.s32.totalorder %s231, 3
        %s235 = scalar_select %p234, %s231, 3
        %s236 = smul.addr %s233, 4
        %s237 = sadd.s32 %s235, %s236
        %s238 = smul.addr %s237, 4
        %s239 = scalar_lea.vmem %s0, %s238
        %p240 = pneg %p52
        %p241 = pneg %p49
        %p242 = pneg %p73
        %p243 = pneg %p70
        %p244 = pneg %p94
        %p245 = pneg %p91
        %p246 = pneg %p115
        %p247 = pneg %p112
        %p248 = pneg %p141
        %p249 = pneg %p138
        %p250 = scmp.lt.s32.totalorder %s21, 1
        %s251 = scalar_select %p250, %s21, 1
        %s252 = smul.addr %s251, 8
        %s253 = scalar_lea.vmem %s4, %s252
        %s254 = smul.u32 2, %s22
        %p255 = scmp.lt.s32.totalorder %s21, 1
        %s256 = scalar_select %p255, %s21, 1
        %p257 = scmp.lt.s32.totalorder %s254, 3
        %s258 = scalar_select %p257, %s254, 3
        %s259 = smul.addr %s256, 4
        %s260 = sadd.s32 %s258, %s259
        %s261 = smul.addr %s260, 4
        %s262 = scalar_lea.vmem %s0, %s261
        %s263 = smul.u32 2, %s22
        %p264 = scmp.lt.s32.totalorder %s21, 1
        %s265 = scalar_select %p264, %s21, 1
        %s266 = smul.addr %s265, 8
        %s267 = scalar_lea.vmem %s4, %s266
        %p269 = scmp.eq.s32.totalorder %s22, 0
        // Predicated region
        $region49: #{pointnet_densecls_forward.3} parent=35 // pred_check
          %p270 = pneg %p269
        $region50: #{pointnet_densecls_forward.3} parent=35 // pred_check_branch
          %272 = sbr.rel (%p270) target = $region52
        $region51: #{pointnet_densecls_forward.3} parent=35 // pred_region
          %273 = vst [vmem:[%s267] sm:$0xff] 0.0
        $region52: #{pointnet_densecls_forward.3} parent=35 // pred_fallthru
          _
        %v274 = vld [vmem:[%s262] sm:$0xf]
        %v275 = vld [vmem:[%s262 + $0x4] sm:$0xf]
        %v276 = vld [vmem:[#allocation2] sm:$0xf]
        %v277 = vld [vmem:[#allocation2 + $0x4] sm:$0xf]
        %v278 = vld [vmem:[#allocation2 + $0x8] sm:$0xf]
        %v281 = vunpack.c.l.b16 %v274
        %v282 = vunpack.c.l.b16 %v275
        %v283 = vpack.c.b16 %v282, %v281
        %v287 = vunpack.c.l.b16 %v276
        %v288 = vunpack.c.l.b16 %v277
        %v289 = vunpack.c.l.b16 %v278
        %v290 = vpack.c.b16 %v288, %v287
        %v291 = vpack.c.b16 %v289, %v289
        %vm293 = vcmask 195584
        %v295 = vsel %vm293, %v283, 0
        %vm297 = vcmask 1043456
        %v299 = vsel %vm297, %v291, 0
        %301 = vmatprep.subr.bf16.mxu0 0
        %302 = vmatpush1.bf16.msra.mxu0 %v290
        %303 = vmatprep.subr.bf16.mxu0 0
        %304 = vmatpush1.bf16.msra.mxu0 %v299
        %305 = vmatprep.subr.bf16.mxu0 0
        %306 = vmatpush1.bf16.msra.mxu0 0
        %307 = vmatprep.subr.bf16.mxu0 0
        %308 = vmatpush1.bf16.msra.mxu0 0
        %309 = vmatprep.subr.bf16.mxu0 0
        %310 = vmatpush1.bf16.msra.mxu0 0
        %311 = vmatprep.subr.bf16.mxu0 0
        %312 = vmatpush1.bf16.msra.mxu0 0
        %313 = vmatprep.subr.bf16.mxu0 0
        %314 = vmatpush1.bf16.msra.mxu0 0
        %315 = vmatprep.subr.bf16.mxu0 0
        %316 = vmatpush1.bf16.msra.mxu0 0
        %317 = vmatprep.subr.bf16.mxu0 0
        %318 = vmatpush1.bf16.msra.mxu0 0
        %319 = vmatprep.subr.bf16.mxu0 0
        %320 = vmatpush1.bf16.msra.mxu0 0
        %321 = vmatprep.subr.bf16.mxu0 0
        %322 = vmatpush1.bf16.msra.mxu0 0
        %323 = vmatprep.subr.bf16.mxu0 0
        %324 = vmatpush1.bf16.msra.mxu0 0
        %325 = vmatprep.subr.bf16.mxu0 0
        %326 = vmatpush1.bf16.msra.mxu0 0
        %327 = vmatprep.subr.bf16.mxu0 0
        %328 = vmatpush1.bf16.msra.mxu0 0
        %329 = vmatprep.subr.bf16.mxu0 0
        %330 = vmatpush1.bf16.msra.mxu0 0
        %331 = vmatprep.subr.bf16.mxu0 0
        %332 = vmatpush1.bf16.msra.mxu0 0
        %333 = vmatprep.mubr.bf16.mxu0 0
        %334 = vmatmul.mubr.bf16.gmra.mrb[0].mxu0 %v295
        %v335 = vpop.f32.mrb[0].mxu0
        %v336 = vadd.f32 0.0, %v335
        %v337 = vpop.f32.mrb[0].mxu0
        %v338 = vpop.f32.mrb[0].mxu0
        %v339 = vadd.f32 0.0, %v338
        %v340 = vpop.f32.mrb[0].mxu0
        %341 = vdwg.mxu0
        %v342 = vmax.f32 %v336, 0.0
        %v343 = vmax.f32 %v339, 0.0
        %v344 = vpack.c.bf16 %v343, %v342
        %v345 = vld [vmem:[#allocation4] sm:$0xf]
        %v346 = vld [vmem:[#allocation4 + $0x4] sm:$0xf]
        %v347 = vld [vmem:[#allocation4 + $0x8] sm:$0xf]
        %v348 = vld [vmem:[#allocation4 + $0xc] sm:$0xf]
        %v349 = vld [vmem:[#allocation4 + $0x10] sm:$0xf]
        %v350 = vld [vmem:[#allocation4 + $0x14] sm:$0xf]
        %v351 = vld [vmem:[#allocation4 + $0x18] sm:$0xf]
        %v352 = vld [vmem:[#allocation4 + $0x1c] sm:$0xf]
        %v361 = vunpack.c.l.b16 %v345
        %v362 = vunpack.c.l.b16 %v346
        %v363 = vunpack.c.l.b16 %v347
        %v364 = vunpack.c.l.b16 %v348
        %v365 = vunpack.c.l.b16 %v349
        %v366 = vunpack.c.l.b16 %v350
        %v367 = vunpack.c.l.b16 %v351
        %v368 = vunpack.c.l.b16 %v352
        %v369 = vpack.c.b16 %v362, %v361
        %v370 = vpack.c.b16 %v364, %v363
        %v371 = vpack.c.b16 %v366, %v365
        %v372 = vpack.c.b16 %v368, %v367
        %vm377 = vcmask 523264
        %v379 = vsel %vm377, %v344, 0
        %381 = vmatprep.subr.bf16.mxu0 0
        %382 = vmatpush1.bf16.msra.mxu0 %v369
        %383 = vmatprep.subr.bf16.mxu0 0
        %384 = vmatpush1.bf16.msra.mxu0 %v370
        %385 = vmatprep.subr.bf16.mxu0 0
        %386 = vmatpush1.bf16.msra.mxu0 %v371
        %387 = vmatprep.subr.bf16.mxu0 0
        %388 = vmatpush1.bf16.msra.mxu0 %v372
        %389 = vmatprep.subr.bf16.mxu0 0
        %390 = vmatpush1.bf16.msra.mxu0 0
        %391 = vmatprep.subr.bf16.mxu0 0
        %392 = vmatpush1.bf16.msra.mxu0 0
        %393 = vmatprep.subr.bf16.mxu0 0
        %394 = vmatpush1.bf16.msra.mxu0 0
        %395 = vmatprep.subr.bf16.mxu0 0
        %396 = vmatpush1.bf16.msra.mxu0 0
        %397 = vmatprep.subr.bf16.mxu0 0
        %398 = vmatpush1.bf16.msra.mxu0 0
        %399 = vmatprep.subr.bf16.mxu0 0
        %400 = vmatpush1.bf16.msra.mxu0 0
        %401 = vmatprep.subr.bf16.mxu0 0
        %402 = vmatpush1.bf16.msra.mxu0 0
        %403 = vmatprep.subr.bf16.mxu0 0
        %404 = vmatpush1.bf16.msra.mxu0 0
        %405 = vmatprep.subr.bf16.mxu0 0
        %406 = vmatpush1.bf16.msra.mxu0 0
        %407 = vmatprep.subr.bf16.mxu0 0
        %408 = vmatpush1.bf16.msra.mxu0 0
        %409 = vmatprep.subr.bf16.mxu0 0
        %410 = vmatpush1.bf16.msra.mxu0 0
        %411 = vmatprep.subr.bf16.mxu0 0
        %412 = vmatpush1.bf16.msra.mxu0 0
        %413 = vmatprep.mubr.bf16.mxu0 0
        %414 = vmatmul.mubr.bf16.gmra.mrb[0].mxu0 %v379
        %v415 = vpop.f32.mrb[0].mxu0
        %v416 = vadd.f32 0.0, %v415
        %v417 = vpop.f32.mrb[0].mxu0
        %v418 = vpop.f32.mrb[0].mxu0
        %v419 = vadd.f32 0.0, %v418
        %v420 = vpop.f32.mrb[0].mxu0
        %421 = vdwg.mxu0
        %v422 = vmax.f32 %v416, 0.0
        %v423 = vmax.f32 %v419, 0.0
        %v424 = vpack.c.bf16 %v423, %v422
        %v425 = vld [vmem:[#allocation6] sm:$0xff]
        %v426 = vld [vmem:[#allocation6 + $0x8] sm:$0xff]
        %v427 = vld [vmem:[#allocation6 + $0x10] sm:$0xff]
        %v428 = vld [vmem:[#allocation6 + $0x18] sm:$0xff]
        %v429 = vld [vmem:[#allocation6 + $0x20] sm:$0xff]
        %v430 = vld [vmem:[#allocation6 + $0x28] sm:$0xff]
        %v431 = vld [vmem:[#allocation6 + $0x30] sm:$0xff]
        %v432 = vld [vmem:[#allocation6 + $0x38] sm:$0xff]
        %v433 = vld [vmem:[#allocation6 + $0x40] sm:$0xff]
        %v434 = vld [vmem:[#allocation6 + $0x48] sm:$0xff]
        %v435 = vld [vmem:[#allocation6 + $0x50] sm:$0xff]
        %v436 = vld [vmem:[#allocation6 + $0x58] sm:$0xff]
        %v437 = vld [vmem:[#allocation6 + $0x60] sm:$0xff]
        %v438 = vld [vmem:[#allocation6 + $0x68] sm:$0xff]
        %v439 = vld [vmem:[#allocation6 + $0x70] sm:$0xff]
        %v440 = vld [vmem:[#allocation6 + $0x78] sm:$0xff]
        %v441 = vld [vmem:[#allocation6 + $0x80] sm:$0xff]
        %v442 = vld [vmem:[#allocation6 + $0x88] sm:$0xff]
        %v443 = vld [vmem:[#allocation6 + $0x90] sm:$0xff]
        %v444 = vld [vmem:[#allocation6 + $0x98] sm:$0xff]
        %v445 = vld [vmem:[#allocation6 + $0xa0] sm:$0xff]
        %v446 = vld [vmem:[#allocation6 + $0xa8] sm:$0xff]
        %v447 = vld [vmem:[#allocation6 + $0xb0] sm:$0xff]
        %v448 = vld [vmem:[#allocation6 + $0xb8] sm:$0xff]
        %v449 = vld [vmem:[#allocation6 + $0xc0] sm:$0xff]
        %v450 = vld [vmem:[#allocation6 + $0xc8] sm:$0xff]
        %v451 = vld [vmem:[#allocation6 + $0xd0] sm:$0xff]
        %v452 = vld [vmem:[#allocation6 + $0xd8] sm:$0xff]
        %v453 = vld [vmem:[#allocation6 + $0xe0] sm:$0xff]
        %v454 = vld [vmem:[#allocation6 + $0xe8] sm:$0xff]
        %v455 = vld [vmem:[#allocation6 + $0xf0] sm:$0xff]
        %v456 = vld [vmem:[#allocation6 + $0xf8] sm:$0xff]
        %v457 = vld [vmem:[#allocation6 + $0x100] sm:$0xff]
        %v458 = vld [vmem:[#allocation6 + $0x108] sm:$0xff]
        %v459 = vld [vmem:[#allocation6 + $0x110] sm:$0xff]
        %v460 = vld [vmem:[#allocation6 + $0x118] sm:$0xff]
        %v461 = vld [vmem:[#allocation6 + $0x120] sm:$0xff]
        %v462 = vld [vmem:[#allocation6 + $0x128] sm:$0xff]
        %v463 = vld [vmem:[#allocation6 + $0x130] sm:$0xff]
        %v464 = vld [vmem:[#allocation6 + $0x138] sm:$0xff]
        %v465 = vld [vmem:[#allocation6 + $0x140] sm:$0xff]
        %v466 = vld [vmem:[#allocation6 + $0x148] sm:$0xff]
        %v467 = vld [vmem:[#allocation6 + $0x150] sm:$0xff]
        %v468 = vld [vmem:[#allocation6 + $0x158] sm:$0xff]
        %v469 = vld [vmem:[#allocation6 + $0x160] sm:$0xff]
        %v470 = vld [vmem:[#allocation6 + $0x168] sm:$0xff]
        %v471 = vld [vmem:[#allocation6 + $0x170] sm:$0xff]
        %v472 = vld [vmem:[#allocation6 + $0x178] sm:$0xff]
        %v473 = vld [vmem:[#allocation6 + $0x180] sm:$0xff]
        %v474 = vld [vmem:[#allocation6 + $0x188] sm:$0xff]
        %v475 = vld [vmem:[#allocation6 + $0x190] sm:$0xff]
        %v476 = vld [vmem:[#allocation6 + $0x198] sm:$0xff]
        %v477 = vld [vmem:[#allocation6 + $0x1a0] sm:$0xff]
        %v478 = vld [vmem:[#allocation6 + $0x1a8] sm:$0xff]
        %v479 = vld [vmem:[#allocation6 + $0x1b0] sm:$0xff]
        %v480 = vld [vmem:[#allocation6 + $0x1b8] sm:$0xff]
        %v481 = vld [vmem:[#allocation6 + $0x1c0] sm:$0xff]
        %v482 = vld [vmem:[#allocation6 + $0x1c8] sm:$0xff]
        %v483 = vld [vmem:[#allocation6 + $0x1d0] sm:$0xff]
        %v484 = vld [vmem:[#allocation6 + $0x1d8] sm:$0xff]
        %v485 = vld [vmem:[#allocation6 + $0x1e0] sm:$0xff]
        %v486 = vld [vmem:[#allocation6 + $0x1e8] sm:$0xff]
        %v487 = vld [vmem:[#allocation6 + $0x1f0] sm:$0xff]
        %v488 = vld [vmem:[#allocation6 + $0x1f8] sm:$0xff]
        %v553 = vunpack.c.l.b16 %v425
        %v554 = vunpack.c.h.b16 %v425
        %v555 = vunpack.c.l.b16 %v426
        %v556 = vunpack.c.h.b16 %v426
        %v557 = vunpack.c.l.b16 %v427
        %v558 = vunpack.c.h.b16 %v427
        %v559 = vunpack.c.l.b16 %v428
        %v560 = vunpack.c.h.b16 %v428
        %v561 = vunpack.c.l.b16 %v429
        %v562 = vunpack.c.h.b16 %v429
        %v563 = vunpack.c.l.b16 %v430
        %v564 = vunpack.c.h.b16 %v430
        %v565 = vunpack.c.l.b16 %v431
        %v566 = vunpack.c.h.b16 %v431
        %v567 = vunpack.c.l.b16 %v432
        %v568 = vunpack.c.h.b16 %v432
        %v569 = vunpack.c.l.b16 %v433
        %v570 = vunpack.c.h.b16 %v433
        %v571 = vunpack.c.l.b16 %v434
        %v572 = vunpack.c.h.b16 %v434
        %v573 = vunpack.c.l.b16 %v435
        %v574 = vunpack.c.h.b16 %v435
        %v575 = vunpack.c.l.b16 %v436
        %v576 = vunpack.c.h.b16 %v436
        %v577 = vunpack.c.l.b16 %v437
        %v578 = vunpack.c.h.b16 %v437
        %v579 = vunpack.c.l.b16 %v438
        %v580 = vunpack.c.h.b16 %v438
        %v581 = vunpack.c.l.b16 %v439
        %v582 = vunpack.c.h.b16 %v439
        %v583 = vunpack.c.l.b16 %v440
        %v584 = vunpack.c.h.b16 %v440
        %v585 = vunpack.c.l.b16 %v441
        %v586 = vunpack.c.h.b16 %v441
        %v587 = vunpack.c.l.b16 %v442
        %v588 = vunpack.c.h.b16 %v442
        %v589 = vunpack.c.l.b16 %v443
        %v590 = vunpack.c.h.b16 %v443
        %v591 = vunpack.c.l.b16 %v444
        %v592 = vunpack.c.h.b16 %v444
        %v593 = vunpack.c.l.b16 %v445
        %v594 = vunpack.c.h.b16 %v445
        %v595 = vunpack.c.l.b16 %v446
        %v596 = vunpack.c.h.b16 %v446
        %v597 = vunpack.c.l.b16 %v447
        %v598 = vunpack.c.h.b16 %v447
        %v599 = vunpack.c.l.b16 %v448
        %v600 = vunpack.c.h.b16 %v448
        %v601 = vunpack.c.l.b16 %v449
        %v602 = vunpack.c.h.b16 %v449
        %v603 = vunpack.c.l.b16 %v450
        %v604 = vunpack.c.h.b16 %v450
        %v605 = vunpack.c.l.b16 %v451
        %v606 = vunpack.c.h.b16 %v451
        %v607 = vunpack.c.l.b16 %v452
        %v608 = vunpack.c.h.b16 %v452
        %v609 = vunpack.c.l.b16 %v453
        %v610 = vunpack.c.h.b16 %v453
        %v611 = vunpack.c.l.b16 %v454
        %v612 = vunpack.c.h.b16 %v454
        %v613 = vunpack.c.l.b16 %v455
        %v614 = vunpack.c.h.b16 %v455
        %v615 = vunpack.c.l.b16 %v456
        %v616 = vunpack.c.h.b16 %v456
        %v617 = vunpack.c.l.b16 %v457
        %v618 = vunpack.c.h.b16 %v457
        %v619 = vunpack.c.l.b16 %v458
        %v620 = vunpack.c.h.b16 %v458
        %v621 = vunpack.c.l.b16 %v459
        %v622 = vunpack.c.h.b16 %v459
        %v623 = vunpack.c.l.b16 %v460
        %v624 = vunpack.c.h.b16 %v460
        %v625 = vunpack.c.l.b16 %v461
        %v626 = vunpack.c.h.b16 %v461
        %v627 = vunpack.c.l.b16 %v462
        %v628 = vunpack.c.h.b16 %v462
        %v629 = vunpack.c.l.b16 %v463
        %v630 = vunpack.c.h.b16 %v463
        %v631 = vunpack.c.l.b16 %v464
        %v632 = vunpack.c.h.b16 %v464
        %v633 = vunpack.c.l.b16 %v465
        %v634 = vunpack.c.h.b16 %v465
        %v635 = vunpack.c.l.b16 %v466
        %v636 = vunpack.c.h.b16 %v466
        %v637 = vunpack.c.l.b16 %v467
        %v638 = vunpack.c.h.b16 %v467
        %v639 = vunpack.c.l.b16 %v468
        %v640 = vunpack.c.h.b16 %v468
        %v641 = vunpack.c.l.b16 %v469
        %v642 = vunpack.c.h.b16 %v469
        %v643 = vunpack.c.l.b16 %v470
        %v644 = vunpack.c.h.b16 %v470
        %v645 = vunpack.c.l.b16 %v471
        %v646 = vunpack.c.h.b16 %v471
        %v647 = vunpack.c.l.b16 %v472
        %v648 = vunpack.c.h.b16 %v472
        %v649 = vunpack.c.l.b16 %v473
        %v650 = vunpack.c.h.b16 %v473
        %v651 = vunpack.c.l.b16 %v474
        %v652 = vunpack.c.h.b16 %v474
        %v653 = vunpack.c.l.b16 %v475
        %v654 = vunpack.c.h.b16 %v475
        %v655 = vunpack.c.l.b16 %v476
        %v656 = vunpack.c.h.b16 %v476
        %v657 = vunpack.c.l.b16 %v477
        %v658 = vunpack.c.h.b16 %v477
        %v659 = vunpack.c.l.b16 %v478
        %v660 = vunpack.c.h.b16 %v478
        %v661 = vunpack.c.l.b16 %v479
        %v662 = vunpack.c.h.b16 %v479
        %v663 = vunpack.c.l.b16 %v480
        %v664 = vunpack.c.h.b16 %v480
        %v665 = vunpack.c.l.b16 %v481
        %v666 = vunpack.c.h.b16 %v481
        %v667 = vunpack.c.l.b16 %v482
        %v668 = vunpack.c.h.b16 %v482
        %v669 = vunpack.c.l.b16 %v483
        %v670 = vunpack.c.h.b16 %v483
        %v671 = vunpack.c.l.b16 %v484
        %v672 = vunpack.c.h.b16 %v484
        %v673 = vunpack.c.l.b16 %v485
        %v674 = vunpack.c.h.b16 %v485
        %v675 = vunpack.c.l.b16 %v486
        %v676 = vunpack.c.h.b16 %v486
        %v677 = vunpack.c.l.b16 %v487
        %v678 = vunpack.c.h.b16 %v487
        %v679 = vunpack.c.l.b16 %v488
        %v680 = vunpack.c.h.b16 %v488
        %v681 = vpack.c.b16 %v561, %v553
        %v682 = vpack.c.b16 %v562, %v554
        %v683 = vpack.c.b16 %v563, %v555
        %v684 = vpack.c.b16 %v564, %v556
        %v685 = vpack.c.b16 %v565, %v557
        %v686 = vpack.c.b16 %v566, %v558
        %v687 = vpack.c.b16 %v567, %v559
        %v688 = vpack.c.b16 %v568, %v560
        %v689 = vpack.c.b16 %v577, %v569
        %v690 = vpack.c.b16 %v578, %v570
        %v691 = vpack.c.b16 %v579, %v571
        %v692 = vpack.c.b16 %v580, %v572
        %v693 = vpack.c.b16 %v581, %v573
        %v694 = vpack.c.b16 %v582, %v574
        %v695 = vpack.c.b16 %v583, %v575
        %v696 = vpack.c.b16 %v584, %v576
        %v697 = vpack.c.b16 %v593, %v585
        %v698 = vpack.c.b16 %v594, %v586
        %v699 = vpack.c.b16 %v595, %v587
        %v700 = vpack.c.b16 %v596, %v588
        %v701 = vpack.c.b16 %v597, %v589
        %v702 = vpack.c.b16 %v598, %v590
        %v703 = vpack.c.b16 %v599, %v591
        %v704 = vpack.c.b16 %v600, %v592
        %v705 = vpack.c.b16 %v609, %v601
        %v706 = vpack.c.b16 %v610, %v602
        %v707 = vpack.c.b16 %v611, %v603
        %v708 = vpack.c.b16 %v612, %v604
        %v709 = vpack.c.b16 %v613, %v605
        %v710 = vpack.c.b16 %v614, %v606
        %v711 = vpack.c.b16 %v615, %v607
        %v712 = vpack.c.b16 %v616, %v608
        %v713 = vpack.c.b16 %v625, %v617
        %v714 = vpack.c.b16 %v626, %v618
        %v715 = vpack.c.b16 %v627, %v619
        %v716 = vpack.c.b16 %v628, %v620
        %v717 = vpack.c.b16 %v629, %v621
        %v718 = vpack.c.b16 %v630, %v622
        %v719 = vpack.c.b16 %v631, %v623
        %v720 = vpack.c.b16 %v632, %v624
        %v721 = vpack.c.b16 %v641, %v633
        %v722 = vpack.c.b16 %v642, %v634
        %v723 = vpack.c.b16 %v643, %v635
        %v724 = vpack.c.b16 %v644, %v636
        %v725 = vpack.c.b16 %v645, %v637
        %v726 = vpack.c.b16 %v646, %v638
        %v727 = vpack.c.b16 %v647, %v639
        %v728 = vpack.c.b16 %v648, %v640
        %v729 = vpack.c.b16 %v657, %v649
        %v730 = vpack.c.b16 %v658, %v650
        %v731 = vpack.c.b16 %v659, %v651
        %v732 = vpack.c.b16 %v660, %v652
        %v733 = vpack.c.b16 %v661, %v653
        %v734 = vpack.c.b16 %v662, %v654
        %v735 = vpack.c.b16 %v663, %v655
        %v736 = vpack.c.b16 %v664, %v656
        %v737 = vpack.c.b16 %v673, %v665
        %v738 = vpack.c.b16 %v674, %v666
        %v739 = vpack.c.b16 %v675, %v667
        %v740 = vpack.c.b16 %v676, %v668
        %v741 = vpack.c.b16 %v677, %v669
        %v742 = vpack.c.b16 %v678, %v670
        %v743 = vpack.c.b16 %v679, %v671
        %v744 = vpack.c.b16 %v680, %v672
        %809 = vmatprep.subr.bf16.mxu0 %v682
        %810 = vmatpush1.bf16.msra.mxu0 %v681
        %811 = vmatprep.subr.bf16.mxu0 %v690
        %812 = vmatpush1.bf16.msra.mxu0 %v689
        %813 = vmatprep.subr.bf16.mxu0 %v698
        %814 = vmatpush1.bf16.msra.mxu0 %v697
        %815 = vmatprep.subr.bf16.mxu0 %v706
        %816 = vmatpush1.bf16.msra.mxu0 %v705
        %817 = vmatprep.subr.bf16.mxu0 %v714
        %818 = vmatpush1.bf16.msra.mxu0 %v713
        %819 = vmatprep.subr.bf16.mxu0 %v722
        %820 = vmatpush1.bf16.msra.mxu0 %v721
        %821 = vmatprep.subr.bf16.mxu0 %v730
        %822 = vmatpush1.bf16.msra.mxu0 %v729
        %823 = vmatprep.subr.bf16.mxu0 %v738
        %824 = vmatpush1.bf16.msra.mxu0 %v737
        %825 = vmatprep.subr.bf16.mxu0 0
        %826 = vmatpush1.bf16.msra.mxu0 0
        %827 = vmatprep.subr.bf16.mxu0 0
        %828 = vmatpush1.bf16.msra.mxu0 0
        %829 = vmatprep.subr.bf16.mxu0 0
        %830 = vmatpush1.bf16.msra.mxu0 0
        %831 = vmatprep.subr.bf16.mxu0 0
        %832 = vmatpush1.bf16.msra.mxu0 0
        %833 = vmatprep.subr.bf16.mxu0 0
        %834 = vmatpush1.bf16.msra.mxu0 0
        %835 = vmatprep.subr.bf16.mxu0 0
        %836 = vmatpush1.bf16.msra.mxu0 0
        %837 = vmatprep.subr.bf16.mxu0 0
        %838 = vmatpush1.bf16.msra.mxu0 0
        %839 = vmatprep.subr.bf16.mxu0 0
        %840 = vmatpush1.bf16.msra.mxu0 0
        %841 = vmatprep.mubr.bf16.mxu0 0
        %842 = vmatmul.mubr.bf16.gmra.mrb[0].mxu0 %v424
        %v843 = vpop.f32.mrb[0].mxu0
        %v844 = vadd.f32 0.0, %v843
        %v845 = vpop.f32.mrb[0].mxu0
        %v846 = vadd.f32 0.0, %v845
        %v847 = vpop.f32.mrb[0].mxu0
        %v848 = vadd.f32 0.0, %v847
        %v849 = vpop.f32.mrb[0].mxu0
        %v850 = vadd.f32 0.0, %v849
        %851 = vdwg.mxu0
        %852 = vmatprep.subr.bf16.mxu0 %v684
        %853 = vmatpush1.bf16.msra.mxu0 %v683
        %854 = vmatprep.subr.bf16.mxu0 %v692
        %855 = vmatpush1.bf16.msra.mxu0 %v691
        %856 = vmatprep.subr.bf16.mxu0 %v700
        %857 = vmatpush1.bf16.msra.mxu0 %v699
        %858 = vmatprep.subr.bf16.mxu0 %v708
        %859 = vmatpush1.bf16.msra.mxu0 %v707
        %860 = vmatprep.subr.bf16.mxu0 %v716
        %861 = vmatpush1.bf16.msra.mxu0 %v715
        %862 = vmatprep.subr.bf16.mxu0 %v724
        %863 = vmatpush1.bf16.msra.mxu0 %v723
        %864 = vmatprep.subr.bf16.mxu0 %v732
        %865 = vmatpush1.bf16.msra.mxu0 %v731
        %866 = vmatprep.subr.bf16.mxu0 %v740
        %867 = vmatpush1.bf16.msra.mxu0 %v739
        %868 = vmatprep.subr.bf16.mxu0 0
        %869 = vmatpush1.bf16.msra.mxu0 0
        %870 = vmatprep.subr.bf16.mxu0 0
        %871 = vmatpush1.bf16.msra.mxu0 0
        %872 = vmatprep.subr.bf16.mxu0 0
        %873 = vmatpush1.bf16.msra.mxu0 0
        %874 = vmatprep.subr.bf16.mxu0 0
        %875 = vmatpush1.bf16.msra.mxu0 0
        %876 = vmatprep.subr.bf16.mxu0 0
        %877 = vmatpush1.bf16.msra.mxu0 0
        %878 = vmatprep.subr.bf16.mxu0 0
        %879 = vmatpush1.bf16.msra.mxu0 0
        %880 = vmatprep.subr.bf16.mxu0 0
        %881 = vmatpush1.bf16.msra.mxu0 0
        %882 = vmatprep.subr.bf16.mxu0 0
        %883 = vmatpush1.bf16.msra.mxu0 0
        %884 = vmatprep.mubr.bf16.mxu0 0
        %885 = vmatmul.mubr.bf16.gmra.mrb[0].mxu0 %v424
        %v886 = vpop.f32.mrb[0].mxu0
        %v887 = vadd.f32 0.0, %v886
        %v888 = vpop.f32.mrb[0].mxu0
        %v889 = vadd.f32 0.0, %v888
        %v890 = vpop.f32.mrb[0].mxu0
        %v891 = vadd.f32 0.0, %v890
        %v892 = vpop.f32.mrb[0].mxu0
        %v893 = vadd.f32 0.0, %v892
        %894 = vdwg.mxu0
        %895 = vmatprep.subr.bf16.mxu0 %v686
        %896 = vmatpush1.bf16.msra.mxu0 %v685
        %897 = vmatprep.subr.bf16.mxu0 %v694
        %898 = vmatpush1.bf16.msra.mxu0 %v693
        %899 = vmatprep.subr.bf16.mxu0 %v702
        %900 = vmatpush1.bf16.msra.mxu0 %v701
        %901 = vmatprep.subr.bf16.mxu0 %v710
        %902 = vmatpush1.bf16.msra.mxu0 %v709
        %903 = vmatprep.subr.bf16.mxu0 %v718
        %904 = vmatpush1.bf16.msra.mxu0 %v717
        %905 = vmatprep.subr.bf16.mxu0 %v726
        %906 = vmatpush1.bf16.msra.mxu0 %v725
        %907 = vmatprep.subr.bf16.mxu0 %v734
        %908 = vmatpush1.bf16.msra.mxu0 %v733
        %909 = vmatprep.subr.bf16.mxu0 %v742
        %910 = vmatpush1.bf16.msra.mxu0 %v741
        %911 = vmatprep.subr.bf16.mxu0 0
        %912 = vmatpush1.bf16.msra.mxu0 0
        %913 = vmatprep.subr.bf16.mxu0 0
        %914 = vmatpush1.bf16.msra.mxu0 0
        %915 = vmatprep.subr.bf16.mxu0 0
        %916 = vmatpush1.bf16.msra.mxu0 0
        %917 = vmatprep.subr.bf16.mxu0 0
        %918 = vmatpush1.bf16.msra.mxu0 0
        %919 = vmatprep.subr.bf16.mxu0 0
        %920 = vmatpush1.bf16.msra.mxu0 0
        %921 = vmatprep.subr.bf16.mxu0 0
        %922 = vmatpush1.bf16.msra.mxu0 0
        %923 = vmatprep.subr.bf16.mxu0 0
        %924 = vmatpush1.bf16.msra.mxu0 0
        %925 = vmatprep.subr.bf16.mxu0 0
        %926 = vmatpush1.bf16.msra.mxu0 0
        %927 = vmatprep.mubr.bf16.mxu0 0
        %928 = vmatmul.mubr.bf16.gmra.mrb[0].mxu0 %v424
        %v929 = vpop.f32.mrb[0].mxu0
        %v930 = vadd.f32 0.0, %v929
        %v931 = vpop.f32.mrb[0].mxu0
        %v932 = vadd.f32 0.0, %v931
        %v933 = vpop.f32.mrb[0].mxu0
        %v934 = vadd.f32 0.0, %v933
        %v935 = vpop.f32.mrb[0].mxu0
        %v936 = vadd.f32 0.0, %v935
        %937 = vdwg.mxu0
        %938 = vmatprep.subr.bf16.mxu0 %v688
        %939 = vmatpush1.bf16.msra.mxu0 %v687
        %940 = vmatprep.subr.bf16.mxu0 %v696
        %941 = vmatpush1.bf16.msra.mxu0 %v695
        %942 = vmatprep.subr.bf16.mxu0 %v704
        %943 = vmatpush1.bf16.msra.mxu0 %v703
        %944 = vmatprep.subr.bf16.mxu0 %v712
        %945 = vmatpush1.bf16.msra.mxu0 %v711
        %946 = vmatprep.subr.bf16.mxu0 %v720
        %947 = vmatpush1.bf16.msra.mxu0 %v719
        %948 = vmatprep.subr.bf16.mxu0 %v728
        %949 = vmatpush1.bf16.msra.mxu0 %v727
        %950 = vmatprep.subr.bf16.mxu0 %v736
        %951 = vmatpush1.bf16.msra.mxu0 %v735
        %952 = vmatprep.subr.bf16.mxu0 %v744
        %953 = vmatpush1.bf16.msra.mxu0 %v743
        %954 = vmatprep.subr.bf16.mxu0 0
        %955 = vmatpush1.bf16.msra.mxu0 0
        %956 = vmatprep.subr.bf16.mxu0 0
        %957 = vmatpush1.bf16.msra.mxu0 0
        %958 = vmatprep.subr.bf16.mxu0 0
        %959 = vmatpush1.bf16.msra.mxu0 0
        %960 = vmatprep.subr.bf16.mxu0 0
        %961 = vmatpush1.bf16.msra.mxu0 0
        %962 = vmatprep.subr.bf16.mxu0 0
        %963 = vmatpush1.bf16.msra.mxu0 0
        %964 = vmatprep.subr.bf16.mxu0 0
        %965 = vmatpush1.bf16.msra.mxu0 0
        %966 = vmatprep.subr.bf16.mxu0 0
        %967 = vmatpush1.bf16.msra.mxu0 0
        %968 = vmatprep.subr.bf16.mxu0 0
        %969 = vmatpush1.bf16.msra.mxu0 0
        %970 = vmatprep.mubr.bf16.mxu0 0
        %971 = vmatmul.mubr.bf16.gmra.mrb[0].mxu0 %v424
        %v972 = vpop.f32.mrb[0].mxu0
        %v973 = vadd.f32 0.0, %v972
        %v974 = vpop.f32.mrb[0].mxu0
        %v975 = vadd.f32 0.0, %v974
        %v976 = vpop.f32.mrb[0].mxu0
        %v977 = vadd.f32 0.0, %v976
        %v978 = vpop.f32.mrb[0].mxu0
        %v979 = vadd.f32 0.0, %v978
        %980 = vdwg.mxu0
        %v981 = vmax.f32 %v844, 0.0
        %v982 = vmax.f32 %v846, 0.0
        %v983 = vmax.f32 %v887, 0.0
        %v984 = vmax.f32 %v889, 0.0
        %v985 = vmax.f32 %v930, 0.0
        %v986 = vmax.f32 %v932, 0.0
        %v987 = vmax.f32 %v973, 0.0
        %v988 = vmax.f32 %v975, 0.0
        %v989 = vmax.f32 %v848, 0.0
        %v990 = vmax.f32 %v850, 0.0
        %v991 = vmax.f32 %v891, 0.0
        %v992 = vmax.f32 %v893, 0.0
        %v993 = vmax.f32 %v934, 0.0
        %v994 = vmax.f32 %v936, 0.0
        %v995 = vmax.f32 %v977, 0.0
        %v996 = vmax.f32 %v979, 0.0
        %v997 = vld [vmem:[%s267] sm:$0xff]
        %v998 = vmax.f32 %v981, %v989
        %v999 = vrot.slane %v998, 4
        %v1000 = vmax.f32 %v998, %v999
        %v1001 = vrot.slane %v1000, 2
        %v1002 = vmax.f32 %v1000, %v1001
        %v1003 = vrot.slane %v1002, 1
        %v1004 = vmax.f32 %v1002, %v1003
        %v1005 = vmax.f32 %v982, %v990
        %v1006 = vrot.slane %v1005, 4
        %v1007 = vmax.f32 %v1005, %v1006
        %v1008 = vrot.slane %v1007, 2
        %v1009 = vmax.f32 %v1007, %v1008
        %v1010 = vrot.slane %v1009, 1
        %v1011 = vmax.f32 %v1009, %v1010
        %v1012 = vmax.f32 %v983, %v991
        %v1013 = vrot.slane %v1012, 4
        %v1014 = vmax.f32 %v1012, %v1013
        %v1015 = vrot.slane %v1014, 2
        %v1016 = vmax.f32 %v1014, %v1015
        %v1017 = vrot.slane %v1016, 1
        %v1018 = vmax.f32 %v1016, %v1017
        %v1019 = vmax.f32 %v984, %v992
        %v1020 = vrot.slane %v1019, 4
        %v1021 = vmax.f32 %v1019, %v1020
        %v1022 = vrot.slane %v1021, 2
        %v1023 = vmax.f32 %v1021, %v1022
        %v1024 = vrot.slane %v1023, 1
        %v1025 = vmax.f32 %v1023, %v1024
        %v1026 = vmax.f32 %v985, %v993
        %v1027 = vrot.slane %v1026, 4
        %v1028 = vmax.f32 %v1026, %v1027
        %v1029 = vrot.slane %v1028, 2
        %v1030 = vmax.f32 %v1028, %v1029
        %v1031 = vrot.slane %v1030, 1
        %v1032 = vmax.f32 %v1030, %v1031
        %v1033 = vmax.f32 %v986, %v994
        %v1034 = vrot.slane %v1033, 4
        %v1035 = vmax.f32 %v1033, %v1034
        %v1036 = vrot.slane %v1035, 2
        %v1037 = vmax.f32 %v1035, %v1036
        %v1038 = vrot.slane %v1037, 1
        %v1039 = vmax.f32 %v1037, %v1038
        %v1040 = vmax.f32 %v987, %v995
        %v1041 = vrot.slane %v1040, 4
        %v1042 = vmax.f32 %v1040, %v1041
        %v1043 = vrot.slane %v1042, 2
        %v1044 = vmax.f32 %v1042, %v1043
        %v1045 = vrot.slane %v1044, 1
        %v1046 = vmax.f32 %v1044, %v1045
        %v1047 = vmax.f32 %v988, %v996
        %v1048 = vrot.slane %v1047, 4
        %v1049 = vmax.f32 %v1047, %v1048
        %v1050 = vrot.slane %v1049, 2
        %v1051 = vmax.f32 %v1049, %v1050
        %v1052 = vrot.slane %v1051, 1
        %v1053 = vmax.f32 %v1051, %v1052
        %v1062 = vcombine.low %v1004, %v1011
        %v1063 = vcombine.low %v1018, %v1025
        %v1064 = vcombine.low %v1032, %v1039
        %v1065 = vcombine.low %v1046, %v1053
        %v1067 = vunpack.c.l.s4 1966171168
        %v1068 = vunpack.c.0.s8 %v1067
        %v1069 = vlaneseq
        %v1070 = vshrl.u32 %v1069, 7
        %v1071 = vsub.s32 %v1068, %v1070
        %v1072 = vrot.slane %v1062, %v1071
        %v1074 = vunpack.c.l.s4 1966171168
        %v1075 = vunpack.c.0.s8 %v1074
        %v1076 = vlaneseq
        %v1077 = vshrl.u32 %v1076, 7
        %v1078 = vsub.s32 %v1075, %v1077
        %v1079 = vrot.slane %v1063, %v1078
        %v1081 = vunpack.c.l.s4 1966171168
        %v1082 = vunpack.c.0.s8 %v1081
        %v1083 = vlaneseq
        %v1084 = vshrl.u32 %v1083, 7
        %v1085 = vsub.s32 %v1082, %v1084
        %v1086 = vrot.slane %v1064, %v1085
        %v1088 = vunpack.c.l.s4 1966171168
        %v1089 = vunpack.c.0.s8 %v1088
        %v1090 = vlaneseq
        %v1091 = vshrl.u32 %v1090, 7
        %v1092 = vsub.s32 %v1089, %v1091
        %v1093 = vrot.slane %v1065, %v1092
        %v1094 = vcombine.low %v1072, %v1079
        %v1095 = vcombine.low %v1086, %v1093
        %v1097 = vunpack.c.l.s4 1966171168
        %v1098 = vunpack.c.0.s8 %v1097
        %v1099 = vlaneseq
        %v1100 = vshrl.u32 %v1099, 7
        %v1101 = vsub.s32 %v1098, %v1100
        %v1102 = vrot.slane %v1094, %v1101
        %v1104 = vunpack.c.l.s4 1966171168
        %v1105 = vunpack.c.0.s8 %v1104
        %v1106 = vlaneseq
        %v1107 = vshrl.u32 %v1106, 7
        %v1108 = vsub.s32 %v1105, %v1107
        %v1109 = vrot.slane %v1095, %v1108
        %v1110 = vcombine.low %v1102, %v1109
        %v1112 = vmax.f32 %v997, %v1110
        %1113 = vst [vmem:[%s267] sm:$0xff] %v1112
        %p1114 = scmp.lt.s32.totalorder %s21, 1
        %s1115 = scalar_select %p1114, %s21, 1
        %s1116 = smul.addr %s1115, 8
        %s1117 = scalar_lea.vmem %s4, %s1116
        // Predicated region
        $region53: #{pointnet_densecls_forward.3} parent=35 // pred_check
          %p1118 = pneg %p138
        $region54: #{pointnet_densecls_forward.3} parent=35 // pred_check_branch
          %1120 = sbr.rel (%p1118) target = $region56
        $region55: #{pointnet_densecls_forward.3} parent=35 // pred_region
          _
        $region56: #{pointnet_densecls_forward.3} parent=35 // pred_fallthru
          _
      $region36: #{pointnet_densecls_forward.3} parent=5 // pred_fallthru
        _
      %p1121 = scmp.le.s32.totalorder 2, %s12
      // Predicated region
      $region57: #{pointnet_densecls_forward.3} parent=5 // pred_check
        %p1122 = pneg %p1121
      $region58: #{pointnet_densecls_forward.3} parent=5 // pred_check_branch
        %1124 = sbr.rel (%p1122) target = $region60
      $region59: #{pointnet_densecls_forward.3} parent=5 // pred_region
        %s1125 = ssub.s32 %s12, 2
        // Predicated region
        $region61: #{pointnet_densecls_forward.3} parent=59 // pred_check
          %p1126 = pneg %p144
        $region62: #{pointnet_densecls_forward.3} parent=59 // pred_check_branch
          %1128 = sbr.rel (%p1126) target = $region64
        $region63: #{pointnet_densecls_forward.3} parent=59 // pred_region
          %p1129 = scmp.lt.s32.totalorder %s23, 1
          %s1130 = scalar_select %p1129, %s23, 1
          %s1131 = smul.addr %s1130, 8
          %s1132 = scalar_lea.vmem %s4, %s1131
        $region64: #{pointnet_densecls_forward.3} parent=59 // pred_fallthru
          _
      $region60: #{pointnet_densecls_forward.3} parent=5 // pred_fallthru
        _
    $region6: #{pointnet_densecls_forward.3} parent=1 // loop_footer
      %s16 = sadd.s32 1, %s12
    $region7: #{pointnet_densecls_forward.3} parent=1 // loop_footer_branch
      %11 = sbr.rel target = $region3
    $region8: #{pointnet_densecls_forward.3} parent=1 // loop_exit
      _
    %1133 = vsyncpa [#allocation3], 1
    %s1134 = scalar_lea.sflag [#allocation3], 1
    %1135 = vsyncpa %s1134, 1
    %1136 = vsyncpa [#allocation5], 1

// kernel: pointnet_densecls_forward.5
$region0: #{pointnet_densecls_forward.5}
  #allocation0 [shape = 'u32[]', space=smem, size = 0x4, offset = 0x4, fixed_abs, tag = 'smem constant byte address 0x4 - core index']
  #allocation1 [shape = 'u32[144,128]{1,0:T(1,128)}', space=vmem, size = 0x12000, scoped, tag = 'internal scratch']
  %s0 = inlined_call_operand.vmem [shape: bf16[2,32,24], index: 0, kind: input, shape index: {}]
  %s1 = inlined_call_operand.vmem [shape: bf16[2,24,64], index: 1, kind: input, shape index: {}]
  %s2 = inlined_call_operand.vmem [shape: f32[2,1,512], index: 2, kind: input, shape index: {}]
  %s3 = inlined_call_operand.vmem [shape: bf16[64,512], index: 3, kind: input, shape index: {}]
  %s4 = inlined_call_operand.vmem [shape: bf16[512,256], index: 4, kind: input, shape index: {}]
  %s5 = inlined_call_operand.vmem [shape: bf16[256,128], index: 5, kind: input, shape index: {}]
  %s6 = inlined_call_operand.vmem [shape: bf16[24,128], index: 6, kind: input, shape index: {}]
  %s7 = inlined_call_operand.vmem [shape: bf16[128,128], index: 7, kind: input, shape index: {}]
  %s8 = inlined_call_operand.vmem [shape: f32[1,128], index: 8, kind: input, shape index: {}]
  %s9 = inlined_call_operand.vmem [shape: f32[2,32,128], index: 9, kind: output, shape index: {}]
  %s10 = sld [smem:[#allocation0]]
  $region69: #{pointnet_densecls_forward.5} parent=0
    _
  %s12 = ssub.s32 1, %s10
  %s13 = scalar_select 0, %s12, %s10
  loop: start=0, step=1, limit=6
  $region2: #{pointnet_densecls_forward.5} parent=0 // loop_pre_header
    _
  $region3: #{pointnet_densecls_forward.5} parent=0 // loop_header
    %s15 = sphi 0, %s19
    %p16 = scmp.ge.s32.totalorder %s15, 6
    %s22 = sphi 0, %s34
    %s23 = sphi 0, %s30
    %s24 = sphi 0, %s22
    %s25 = sphi 0, %s23
    %s26 = sphi 0, %s24
    %s27 = sphi 0, %s25
    %s39 = sphi 0, %s41
    %s42 = sphi 0, %s39
    %s43 = sphi 0, %s42
    %s59 = sphi 0, %s43
    %s65 = sphi 0, %s67
    %s68 = sphi 0, %s65
    %s69 = sphi 0, %s68
    %s85 = sphi 0, %s69
    %s91 = sphi 0, %s93
    %s94 = sphi 0, %s91
    %s95 = sphi 0, %s94
    %s111 = sphi 0, %s95
    %s115 = sphi 0, %s115
    %s117 = sphi 0, %s115
    %s118 = sphi 0, %s117
    %s132 = sphi 0, %s118
    %s136 = sphi 0, %s136
    %s138 = sphi 0, %s136
    %s139 = sphi 0, %s138
    %s153 = sphi 0, %s139
    %s157 = sphi 0, %s157
    %s159 = sphi 0, %s157
    %s160 = sphi 0, %s159
    %s174 = sphi 0, %s160
    %s178 = sphi 0, %s178
    %s180 = sphi 0, %s178
    %s181 = sphi 0, %s180
    %s195 = sphi 0, %s181
    %s199 = sphi 0, %s199
    %s201 = sphi 0, %s199
    %s202 = sphi 0, %s201
    %s216 = sphi 0, %s202
    %s220 = sphi 0, %s220
    %s222 = sphi 0, %s220
    %s223 = sphi 0, %s222
    %s237 = sphi 0, %s223
    %s245 = sphi 0, %s247
    %s248 = sphi 0, %s245
    %s249 = sphi 0, %s248
    %s265 = sphi 0, %s249
  $region4: #{pointnet_densecls_forward.5} parent=0 // loop_header_branch
    %18 = sbr.rel (%p16) target = $region8
  $region5: #{pointnet_densecls_forward.5} parent=0 // loop_body
    %s20 = ssub.s32 %s15, 1
    %s21 = ssub.s32 %s15, 2
    %s28 = sadd.s32 1, %s23
    %p29 = scmp.ge.s32.totalorder %s28, 2
    %s30 = scalar_select %p29, 0, %s28
    %s31 = sadd.s32 1, %s22
    %s32 = scalar_select %p29, %s31, %s22
    %p33 = scmp.ge.s32.totalorder %s32, 2
    %s34 = scalar_select %p33, 0, %s32
    %s35 = ssub.s32 %s22, %s34
    %s36 = ssub.s32 %s23, %s30
    %s37 = sor.u32 %s35, %s36
    %p38 = scmp.eq.s32.totalorder %s37, 0
    %s40 = sadd.s32 %s39, 1
    %s41 = scalar_select %p38, %s39, %s40
    %p44 = pneg %p38
    %p45 = scmp.eq.s32.totalorder %s15, 3
    %p46 = por %p44, %p45
    %p47 = scmp.ne.s32.totalorder %s39, %s42
    %p48 = scmp.eq.s32.totalorder %s15, 0
    %p49 = por %p47, %p48
    %p50 = scmp.ne.s32.totalorder %s39, %s42
    %p51 = scmp.eq.s32.totalorder %s20, 3
    %p52 = por %p50, %p51
    %p53 = scmp.ne.s32.totalorder %s42, %s43
    %p54 = scmp.eq.s32.totalorder %s20, 0
    %p55 = por %p53, %p54
    %p56 = scmp.ne.s32.totalorder %s42, %s43
    %p57 = scmp.eq.s32.totalorder %s21, 3
    %p58 = por %p56, %p57
    %p60 = scmp.ne.s32.totalorder %s43, %s59
    %p61 = scmp.eq.s32.totalorder %s21, 0
    %p62 = por %p60, %p61
    %s63 = ssub.s32 %s22, %s34
    %p64 = scmp.eq.s32.totalorder %s63, 0
    %s66 = sadd.s32 %s65, 1
    %s67 = scalar_select %p64, %s65, %s66
    %p70 = pneg %p64
    %p71 = scmp.eq.s32.totalorder %s15, 3
    %p72 = por %p70, %p71
    %p73 = scmp.ne.s32.totalorder %s65, %s68
    %p74 = scmp.eq.s32.totalorder %s15, 0
    %p75 = por %p73, %p74
    %p76 = scmp.ne.s32.totalorder %s65, %s68
    %p77 = scmp.eq.s32.totalorder %s20, 3
    %p78 = por %p76, %p77
    %p79 = scmp.ne.s32.totalorder %s68, %s69
    %p80 = scmp.eq.s32.totalorder %s20, 0
    %p81 = por %p79, %p80
    %p82 = scmp.ne.s32.totalorder %s68, %s69
    %p83 = scmp.eq.s32.totalorder %s21, 3
    %p84 = por %p82, %p83
    %p86 = scmp.ne.s32.totalorder %s69, %s85
    %p87 = scmp.eq.s32.totalorder %s21, 0
    %p88 = por %p86, %p87
    %s89 = ssub.s32 %s22, %s34
    %p90 = scmp.eq.s32.totalorder %s89, 0
    %s92 = sadd.s32 %s91, 1
    %s93 = scalar_select %p90, %s91, %s92
    %p96 = pneg %p90
    %p97 = scmp.eq.s32.totalorder %s15, 3
    %p98 = por %p96, %p97
    %p99 = scmp.ne.s32.totalorder %s91, %s94
    %p100 = scmp.eq.s32.totalorder %s15, 0
    %p101 = por %p99, %p100
    %p102 = scmp.ne.s32.totalorder %s91, %s94
    %p103 = scmp.eq.s32.totalorder %s20, 3
    %p104 = por %p102, %p103
    %p105 = scmp.ne.s32.totalorder %s94, %s95
    %p106 = scmp.eq.s32.totalorder %s20, 0
    %p107 = por %p105, %p106
    %p108 = scmp.ne.s32.totalorder %s94, %s95
    %p109 = scmp.eq.s32.totalorder %s21, 3
    %p110 = por %p108, %p109
    %p112 = scmp.ne.s32.totalorder %s95, %s111
    %p113 = scmp.eq.s32.totalorder %s21, 0
    %p114 = por %p112, %p113
    %s116 = sadd.s32 %s115, 1
    %p119 = scmp.eq.s32.totalorder %s15, 3
    %p120 = scmp.ne.s32.totalorder %s115, %s117
    %p121 = scmp.eq.s32.totalorder %s15, 0
    %p122 = por %p120, %p121
    %p123 = scmp.ne.s32.totalorder %s115, %s117
    %p124 = scmp.eq.s32.totalorder %s20, 3
    %p125 = por %p123, %p124
    %p126 = scmp.ne.s32.totalorder %s117, %s118
    %p127 = scmp.eq.s32.totalorder %s20, 0
    %p128 = por %p126, %p127
    %p129 = scmp.ne.s32.totalorder %s117, %s118
    %p130 = scmp.eq.s32.totalorder %s21, 3
    %p131 = por %p129, %p130
    %p133 = scmp.ne.s32.totalorder %s118, %s132
    %p134 = scmp.eq.s32.totalorder %s21, 0
    %p135 = por %p133, %p134
    %s137 = sadd.s32 %s136, 1
    %p140 = scmp.eq.s32.totalorder %s15, 3
    %p141 = scmp.ne.s32.totalorder %s136, %s138
    %p142 = scmp.eq.s32.totalorder %s15, 0
    %p143 = por %p141, %p142
    %p144 = scmp.ne.s32.totalorder %s136, %s138
    %p145 = scmp.eq.s32.totalorder %s20, 3
    %p146 = por %p144, %p145
    %p147 = scmp.ne.s32.totalorder %s138, %s139
    %p148 = scmp.eq.s32.totalorder %s20, 0
    %p149 = por %p147, %p148
    %p150 = scmp.ne.s32.totalorder %s138, %s139
    %p151 = scmp.eq.s32.totalorder %s21, 3
    %p152 = por %p150, %p151
    %p154 = scmp.ne.s32.totalorder %s139, %s153
    %p155 = scmp.eq.s32.totalorder %s21, 0
    %p156 = por %p154, %p155
    %s158 = sadd.s32 %s157, 1
    %p161 = scmp.eq.s32.totalorder %s15, 3
    %p162 = scmp.ne.s32.totalorder %s157, %s159
    %p163 = scmp.eq.s32.totalorder %s15, 0
    %p164 = por %p162, %p163
    %p165 = scmp.ne.s32.totalorder %s157, %s159
    %p166 = scmp.eq.s32.totalorder %s20, 3
    %p167 = por %p165, %p166
    %p168 = scmp.ne.s32.totalorder %s159, %s160
    %p169 = scmp.eq.s32.totalorder %s20, 0
    %p170 = por %p168, %p169
    %p171 = scmp.ne.s32.totalorder %s159, %s160
    %p172 = scmp.eq.s32.totalorder %s21, 3
    %p173 = por %p171, %p172
    %p175 = scmp.ne.s32.totalorder %s160, %s174
    %p176 = scmp.eq.s32.totalorder %s21, 0
    %p177 = por %p175, %p176
    %s179 = sadd.s32 %s178, 1
    %p182 = scmp.eq.s32.totalorder %s15, 3
    %p183 = scmp.ne.s32.totalorder %s178, %s180
    %p184 = scmp.eq.s32.totalorder %s15, 0
    %p185 = por %p183, %p184
    %p186 = scmp.ne.s32.totalorder %s178, %s180
    %p187 = scmp.eq.s32.totalorder %s20, 3
    %p188 = por %p186, %p187
    %p189 = scmp.ne.s32.totalorder %s180, %s181
    %p190 = scmp.eq.s32.totalorder %s20, 0
    %p191 = por %p189, %p190
    %p192 = scmp.ne.s32.totalorder %s180, %s181
    %p193 = scmp.eq.s32.totalorder %s21, 3
    %p194 = por %p192, %p193
    %p196 = scmp.ne.s32.totalorder %s181, %s195
    %p197 = scmp.eq.s32.totalorder %s21, 0
    %p198 = por %p196, %p197
    %s200 = sadd.s32 %s199, 1
    %p203 = scmp.eq.s32.totalorder %s15, 3
    %p204 = scmp.ne.s32.totalorder %s199, %s201
    %p205 = scmp.eq.s32.totalorder %s15, 0
    %p206 = por %p204, %p205
    %p207 = scmp.ne.s32.totalorder %s199, %s201
    %p208 = scmp.eq.s32.totalorder %s20, 3
    %p209 = por %p207, %p208
    %p210 = scmp.ne.s32.totalorder %s201, %s202
    %p211 = scmp.eq.s32.totalorder %s20, 0
    %p212 = por %p210, %p211
    %p213 = scmp.ne.s32.totalorder %s201, %s202
    %p214 = scmp.eq.s32.totalorder %s21, 3
    %p215 = por %p213, %p214
    %p217 = scmp.ne.s32.totalorder %s202, %s216
    %p218 = scmp.eq.s32.totalorder %s21, 0
    %p219 = por %p217, %p218
    %s221 = sadd.s32 %s220, 1
    %p224 = scmp.eq.s32.totalorder %s15, 3
    %p225 = scmp.ne.s32.totalorder %s220, %s222
    %p226 = scmp.eq.s32.totalorder %s15, 0
    %p227 = por %p225, %p226
    %p228 = scmp.ne.s32.totalorder %s220, %s222
    %p229 = scmp.eq.s32.totalorder %s20, 3
    %p230 = por %p228, %p229
    %p231 = scmp.ne.s32.totalorder %s222, %s223
    %p232 = scmp.eq.s32.totalorder %s20, 0
    %p233 = por %p231, %p232
    %p234 = scmp.ne.s32.totalorder %s222, %s223
    %p235 = scmp.eq.s32.totalorder %s21, 3
    %p236 = por %p234, %p235
    %p238 = scmp.ne.s32.totalorder %s223, %s237
    %p239 = scmp.eq.s32.totalorder %s21, 0
    %p240 = por %p238, %p239
    %s241 = ssub.s32 %s22, %s34
    %s242 = ssub.s32 %s23, %s30
    %s243 = sor.u32 %s241, %s242
    %p244 = scmp.eq.s32.totalorder %s243, 0
    %s246 = sadd.s32 %s245, 1
    %s247 = scalar_select %p244, %s245, %s246
    %p250 = pneg %p244
    %p251 = scmp.eq.s32.totalorder %s15, 3
    %p252 = por %p250, %p251
    %p253 = scmp.ne.s32.totalorder %s245, %s248
    %p254 = scmp.eq.s32.totalorder %s15, 0
    %p255 = por %p253, %p254
    %p256 = scmp.ne.s32.totalorder %s245, %s248
    %p257 = scmp.eq.s32.totalorder %s20, 3
    %p258 = por %p256, %p257
    %p259 = scmp.ne.s32.totalorder %s248, %s249
    %p260 = scmp.eq.s32.totalorder %s20, 0
    %p261 = por %p259, %p260
    %p262 = scmp.ne.s32.totalorder %s248, %s249
    %p263 = scmp.eq.s32.totalorder %s21, 3
    %p264 = por %p262, %p263
    %p266 = scmp.ne.s32.totalorder %s249, %s265
    %p267 = scmp.eq.s32.totalorder %s21, 0
    %p268 = por %p266, %p267
    %p269 = scmp.le.s32.totalorder 1, %s15
    %p270 = scmp.lt.s32.totalorder %s15, 5
    %p271 = pnand %p269, %p270
    %p272 = pneg %p271
    // Predicated region
    $region9: #{pointnet_densecls_forward.5} parent=5 // pred_check
      _
    $region10: #{pointnet_densecls_forward.5} parent=5 // pred_check_branch
      %274 = sbr.rel (%p271) target = $region12
    $region11: #{pointnet_densecls_forward.5} parent=5 // pred_region
      %s275 = ssub.s32 %s15, 1
      // Predicated region
      $region13: #{pointnet_densecls_forward.5} parent=11 // pred_check
        %p276 = pneg %p128
      $region14: #{pointnet_densecls_forward.5} parent=11 // pred_check_branch
        %278 = sbr.rel (%p276) target = $region16
      $region15: #{pointnet_densecls_forward.5} parent=11 // pred_region
        _
      $region16: #{pointnet_densecls_forward.5} parent=11 // pred_fallthru
        _
      // Predicated region
      $region17: #{pointnet_densecls_forward.5} parent=11 // pred_check
        %p279 = pneg %p149
      $region18: #{pointnet_densecls_forward.5} parent=11 // pred_check_branch
        %281 = sbr.rel (%p279) target = $region20
      $region19: #{pointnet_densecls_forward.5} parent=11 // pred_region
        _
      $region20: #{pointnet_densecls_forward.5} parent=11 // pred_fallthru
        _
      // Predicated region
      $region21: #{pointnet_densecls_forward.5} parent=11 // pred_check
        %p282 = pneg %p170
      $region22: #{pointnet_densecls_forward.5} parent=11 // pred_check_branch
        %284 = sbr.rel (%p282) target = $region24
      $region23: #{pointnet_densecls_forward.5} parent=11 // pred_region
        _
      $region24: #{pointnet_densecls_forward.5} parent=11 // pred_fallthru
        _
      // Predicated region
      $region25: #{pointnet_densecls_forward.5} parent=11 // pred_check
        %p285 = pneg %p191
      $region26: #{pointnet_densecls_forward.5} parent=11 // pred_check_branch
        %287 = sbr.rel (%p285) target = $region28
      $region27: #{pointnet_densecls_forward.5} parent=11 // pred_region
        _
      $region28: #{pointnet_densecls_forward.5} parent=11 // pred_fallthru
        _
      // Predicated region
      $region29: #{pointnet_densecls_forward.5} parent=11 // pred_check
        %p288 = pneg %p212
      $region30: #{pointnet_densecls_forward.5} parent=11 // pred_check_branch
        %290 = sbr.rel (%p288) target = $region32
      $region31: #{pointnet_densecls_forward.5} parent=11 // pred_region
        _
      $region32: #{pointnet_densecls_forward.5} parent=11 // pred_fallthru
        _
      // Predicated region
      $region33: #{pointnet_densecls_forward.5} parent=11 // pred_check
        %p291 = pneg %p233
      $region34: #{pointnet_densecls_forward.5} parent=11 // pred_check_branch
        %293 = sbr.rel (%p291) target = $region36
      $region35: #{pointnet_densecls_forward.5} parent=11 // pred_region
        _
      $region36: #{pointnet_densecls_forward.5} parent=11 // pred_fallthru
        _
    $region12: #{pointnet_densecls_forward.5} parent=5 // pred_fallthru
      _
    %p294 = scmp.lt.s32.totalorder %s15, 4
    // Predicated region
    $region37: #{pointnet_densecls_forward.5} parent=5 // pred_check
      %p295 = pneg %p294
    $region38: #{pointnet_densecls_forward.5} parent=5 // pred_check_branch
      %297 = sbr.rel (%p295) target = $region40
    $region39: #{pointnet_densecls_forward.5} parent=5 // pred_region
      // Predicated region
      $region41: #{pointnet_densecls_forward.5} parent=39 // pred_check
        %p298 = pneg %p49
      $region42: #{pointnet_densecls_forward.5} parent=39 // pred_check_branch
        %300 = sbr.rel (%p298) target = $region44
      $region43: #{pointnet_densecls_forward.5} parent=39 // pred_region
        %s301 = smul.u32 2, %s23
        %p302 = scmp.lt.s32.totalorder %s22, 1
        %s303 = scalar_select %p302, %s22, 1
        %p304 = scmp.lt.s32.totalorder %s301, 3
        %s305 = scalar_select %p304, %s301, 3
        %s306 = smul.addr %s303, 4
        %s307 = sadd.s32 %s305, %s306
        %s308 = smul.addr %s307, 4
        %s309 = scalar_lea.vmem %s0, %s308
        %s310 = smul.u32 2, %s23
      $region44: #{pointnet_densecls_forward.5} parent=39 // pred_fallthru
        _
      // Predicated region
      $region45: #{pointnet_densecls_forward.5} parent=39 // pred_check
        %p311 = pneg %p75
      $region46: #{pointnet_densecls_forward.5} parent=39 // pred_check_branch
        %313 = sbr.rel (%p311) target = $region48
      $region47: #{pointnet_densecls_forward.5} parent=39 // pred_region
        %p314 = scmp.lt.s32.totalorder %s22, 1
        %s315 = scalar_select %p314, %s22, 1
        %s316 = smul.addr %s315, 3
        %s317 = smul.addr %s316, 4
        %s318 = scalar_lea.vmem %s1, %s317
      $region48: #{pointnet_densecls_forward.5} parent=39 // pred_fallthru
        _
      // Predicated region
      $region49: #{pointnet_densecls_forward.5} parent=39 // pred_check
        %p319 = pneg %p101
      $region50: #{pointnet_densecls_forward.5} parent=39 // pred_check_branch
        %321 = sbr.rel (%p319) target = $region52
      $region51: #{pointnet_densecls_forward.5} parent=39 // pred_region
        %p322 = scmp.lt.s32.totalorder %s22, 1
        %s323 = scalar_select %p322, %s22, 1
        %s324 = smul.addr %s323, 4
        %s325 = scalar_lea.vmem %s2, %s324
      $region52: #{pointnet_densecls_forward.5} parent=39 // pred_fallthru
        _
    $region40: #{pointnet_densecls_forward.5} parent=5 // pred_fallthru
      _
    %p326 = scmp.le.s32.totalorder 1, %s15
    %p327 = scmp.lt.s32.totalorder %s15, 5
    %p328 = pnand %p326, %p327
    %p329 = pneg %p328
    // Predicated region
    $region53: #{pointnet_densecls_forward.5} parent=5 // pred_check
      _
    $region54: #{pointnet_densecls_forward.5} parent=5 // pred_check_branch
      %331 = sbr.rel (%p328) target = $region56
    $region55: #{pointnet_densecls_forward.5} parent=5 // pred_region
      %s332 = ssub.s32 %s15, 1
      %s333 = smul.u32 2, %s25
      %p334 = scmp.lt.s32.totalorder %s24, 1
      %s335 = scalar_select %p334, %s24, 1
      %p336 = scmp.lt.s32.totalorder %s333, 3
      %s337 = scalar_select %p336, %s333, 3
      %s338 = smul.addr %s335, 4
      %s339 = sadd.s32 %s337, %s338
      %s340 = smul.addr %s339, 4
      %s341 = scalar_lea.vmem %s0, %s340
      %p342 = pneg %p55
      %p343 = pneg %p52
      %p344 = scmp.lt.s32.totalorder %s24, 1
      %s345 = scalar_select %p344, %s24, 1
      %s346 = smul.addr %s345, 3
      %s347 = smul.addr %s346, 4
      %s348 = scalar_lea.vmem %s1, %s347
      %p349 = pneg %p81
      %p350 = pneg %p78
      %p351 = scmp.lt.s32.totalorder %s24, 1
      %s352 = scalar_select %p351, %s24, 1
      %s353 = smul.addr %s352, 4
      %s354 = scalar_lea.vmem %s2, %s353
      %p355 = pneg %p107
      %p356 = pneg %p104
      %p357 = pneg %p128
      %p358 = pneg %p125
      %p359 = pneg %p149
      %p360 = pneg %p146
      %p361 = pneg %p170
      %p362 = pneg %p167
      %p363 = pneg %p191
      %p364 = pneg %p188
      %p365 = pneg %p212
      %p366 = pneg %p209
      %p367 = pneg %p233
      %p368 = pneg %p230
      %p369 = pneg %p261
      %p370 = pneg %p258
      %s371 = smul.u32 2, %s25
      %p372 = scmp.lt.s32.totalorder %s24, 1
      %s373 = scalar_select %p372, %s24, 1
      %p374 = scmp.lt.s32.totalorder %s371, 3
      %s375 = scalar_select %p374, %s371, 3
      %s376 = smul.addr %s373, 4
      %s377 = sadd.s32 %s375, %s376
      %s378 = smul.addr %s377, 8
      %s379 = scalar_lea.vmem %s9, %s378
      %s380 = smul.u32 2, %s25
      %p381 = scmp.lt.s32.totalorder %s24, 1
      %s382 = scalar_select %p381, %s24, 1
      %p383 = scmp.lt.s32.totalorder %s380, 3
      %s384 = scalar_select %p383, %s380, 3
      %s385 = smul.addr %s382, 4
      %s386 = sadd.s32 %s384, %s385
      %s387 = smul.addr %s386, 4
      %s388 = scalar_lea.vmem %s0, %s387
      %s389 = smul.u32 2, %s25
      %p390 = scmp.lt.s32.totalorder %s24, 1
      %s391 = scalar_select %p390, %s24, 1
      %s392 = smul.addr %s391, 3
      %s393 = smul.addr %s392, 4
      %s394 = scalar_lea.vmem %s1, %s393
      %p395 = scmp.lt.s32.totalorder %s24, 1
      %s396 = scalar_select %p395, %s24, 1
      %s397 = smul.addr %s396, 4
      %s398 = scalar_lea.vmem %s2, %s397
      %s399 = smul.u32 2, %s25
      %p400 = scmp.lt.s32.totalorder %s24, 1
      %s401 = scalar_select %p400, %s24, 1
      %p402 = scmp.lt.s32.totalorder %s399, 3
      %s403 = scalar_select %p402, %s399, 3
      %s404 = smul.addr %s401, 4
      %s405 = sadd.s32 %s403, %s404
      %s406 = smul.addr %s405, 8
      %s407 = scalar_lea.vmem %s9, %s406
      %s408 = smul.u32 2, %s25
      %v410 = vld [vmem:[%s388] sm:$0xf]
      %v411 = vld [vmem:[%s388 + $0x4] sm:$0xf]
      %v412 = vld [vmem:[%s394] sm:$0xf]
      %v413 = vld [vmem:[%s394 + $0x4] sm:$0xf]
      %v414 = vld [vmem:[%s394 + $0x8] sm:$0xf]
      %v417 = vunpack.c.l.b16 %v410
      %v418 = vunpack.c.l.b16 %v411
      %v419 = vpack.c.b16 %v418, %v417
      %v423 = vunpack.c.l.b16 %v412
      %v424 = vunpack.c.l.b16 %v413
      %v425 = vunpack.c.l.b16 %v414
      %v426 = vpack.c.b16 %v424, %v423
      %v427 = vpack.c.b16 %v425, %v425
      %vm429 = vcmask 195584
      %v431 = vsel %vm429, %v419, 0
      %vm433 = vcmask 1043456
      %v435 = vsel %vm433, %v427, 0
      %437 = vmatprep.subr.bf16.mxu0 0
      %438 = vmatpush1.bf16.msra.mxu0 %v426
      %439 = vmatprep.subr.bf16.mxu0 0
      %440 = vmatpush1.bf16.msra.mxu0 %v435
      %441 = vmatprep.subr.bf16.mxu0 0
      %442 = vmatpush1.bf16.msra.mxu0 0
      %443 = vmatprep.subr.bf16.mxu0 0
      %444 = vmatpush1.bf16.msra.mxu0 0
      %445 = vmatprep.subr.bf16.mxu0 0
      %446 = vmatpush1.bf16.msra.mxu0 0
      %447 = vmatprep.subr.bf16.mxu0 0
      %448 = vmatpush1.bf16.msra.mxu0 0
      %449 = vmatprep.subr.bf16.mxu0 0
      %450 = vmatpush1.bf16.msra.mxu0 0
      %451 = vmatprep.subr.bf16.mxu0 0
      %452 = vmatpush1.bf16.msra.mxu0 0
      %453 = vmatprep.subr.bf16.mxu0 0
      %454 = vmatpush1.bf16.msra.mxu0 0
      %455 = vmatprep.subr.bf16.mxu0 0
      %456 = vmatpush1.bf16.msra.mxu0 0
      %457 = vmatprep.subr.bf16.mxu0 0
      %458 = vmatpush1.bf16.msra.mxu0 0
      %459 = vmatprep.subr.bf16.mxu0 0
      %460 = vmatpush1.bf16.msra.mxu0 0
      %461 = vmatprep.subr.bf16.mxu0 0
      %462 = vmatpush1.bf16.msra.mxu0 0
      %463 = vmatprep.subr.bf16.mxu0 0
      %464 = vmatpush1.bf16.msra.mxu0 0
      %465 = vmatprep.subr.bf16.mxu0 0
      %466 = vmatpush1.bf16.msra.mxu0 0
      %467 = vmatprep.subr.bf16.mxu0 0
      %468 = vmatpush1.bf16.msra.mxu0 0
      %469 = vmatprep.mubr.bf16.mxu0 0
      %470 = vmatmul.mubr.bf16.gmra.mrb[0].mxu0 %v431
      %v471 = vpop.f32.mrb[0].mxu0
      %v472 = vadd.f32 0.0, %v471
      %v473 = vpop.f32.mrb[0].mxu0
      %v474 = vpop.f32.mrb[0].mxu0
      %v475 = vadd.f32 0.0, %v474
      %v476 = vpop.f32.mrb[0].mxu0
      %477 = vdwg.mxu0
      %v478 = vmax.f32 %v472, 0.0
      %v479 = vmax.f32 %v475, 0.0
      %v480 = vpack.c.bf16 %v479, %v478
      %v481 = vld [vmem:[%s3] sm:$0xff]
      %v482 = vld [vmem:[%s3 + $0x8] sm:$0xff]
      %v483 = vld [vmem:[%s3 + $0x10] sm:$0xff]
      %v484 = vld [vmem:[%s3 + $0x18] sm:$0xff]
      %v485 = vld [vmem:[%s3 + $0x20] sm:$0xff]
      %v486 = vld [vmem:[%s3 + $0x28] sm:$0xff]
      %v487 = vld [vmem:[%s3 + $0x30] sm:$0xff]
      %v488 = vld [vmem:[%s3 + $0x38] sm:$0xff]
      %v489 = vld [vmem:[%s3 + $0x40] sm:$0xff]
      %v490 = vld [vmem:[%s3 + $0x48] sm:$0xff]
      %v491 = vld [vmem:[%s3 + $0x50] sm:$0xff]
      %v492 = vld [vmem:[%s3 + $0x58] sm:$0xff]
      %v493 = vld [vmem:[%s3 + $0x60] sm:$0xff]
      %v494 = vld [vmem:[%s3 + $0x68] sm:$0xff]
      %v495 = vld [vmem:[%s3 + $0x70] sm:$0xff]
      %v496 = vld [vmem:[%s3 + $0x78] sm:$0xff]
      %v497 = vld [vmem:[%s398] sm:$0xf]
      %v499 = vlaneseq
      %v500 = vshrl.u32 %v499, 7
      %v501 = vsub.s32 0, %v500
      %v502 = vrot.slane %v497, %v501
      %v503 = vlaneseq
      %v504 = vshrl.u32 %v503, 7
      %v505 = vsub.s32 1, %v504
      %v506 = vrot.slane %v497, %v505
      %v507 = vlaneseq
      %v508 = vshrl.u32 %v507, 7
      %v509 = vsub.s32 2, %v508
      %v510 = vrot.slane %v497, %v509
      %v511 = vlaneseq
      %v512 = vshrl.u32 %v511, 7
      %v513 = vsub.s32 3, %v512
      %v514 = vrot.slane %v497, %v513
      %v535 = vunpack.c.l.b16 %v481
      %v536 = vunpack.c.h.b16 %v481
      %v537 = vunpack.c.l.b16 %v482
      %v538 = vunpack.c.h.b16 %v482
      %v539 = vunpack.c.l.b16 %v483
      %v540 = vunpack.c.h.b16 %v483
      %v541 = vunpack.c.l.b16 %v484
      %v542 = vunpack.c.h.b16 %v484
      %v543 = vunpack.c.l.b16 %v485
      %v544 = vunpack.c.h.b16 %v485
      %v545 = vunpack.c.l.b16 %v486
      %v546 = vunpack.c.h.b16 %v486
      %v547 = vunpack.c.l.b16 %v487
      %v548 = vunpack.c.h.b16 %v487
      %v549 = vunpack.c.l.b16 %v488
      %v550 = vunpack.c.h.b16 %v488
      %v551 = vunpack.c.l.b16 %v489
      %v552 = vunpack.c.h.b16 %v489
      %v553 = vunpack.c.l.b16 %v490
      %v554 = vunpack.c.h.b16 %v490
      %v555 = vunpack.c.l.b16 %v491
      %v556 = vunpack.c.h.b16 %v491
      %v557 = vunpack.c.l.b16 %v492
      %v558 = vunpack.c.h.b16 %v492
      %v559 = vunpack.c.l.b16 %v493
      %v560 = vunpack.c.h.b16 %v493
      %v561 = vunpack.c.l.b16 %v494
      %v562 = vunpack.c.h.b16 %v494
      %v563 = vunpack.c.l.b16 %v495
      %v564 = vunpack.c.h.b16 %v495
      %v565 = vunpack.c.l.b16 %v496
      %v566 = vunpack.c.h.b16 %v496
      %v567 = vpack.c.b16 %v539, %v535
      %v568 = vpack.c.b16 %v540, %v536
      %v569 = vpack.c.b16 %v541, %v537
      %v570 = vpack.c.b16 %v542, %v538
      %v571 = vpack.c.b16 %v547, %v543
      %v572 = vpack.c.b16 %v548, %v544
      %v573 = vpack.c.b16 %v549, %v545
      %v574 = vpack.c.b16 %v550, %v546
      %v575 = vpack.c.b16 %v555, %v551
      %v576 = vpack.c.b16 %v556, %v552
      %v577 = vpack.c.b16 %v557, %v553
      %v578 = vpack.c.b16 %v558, %v554
      %v579 = vpack.c.b16 %v563, %v559
      %v580 = vpack.c.b16 %v564, %v560
      %v581 = vpack.c.b16 %v565, %v561
      %v582 = vpack.c.b16 %v566, %v562
      %vm599 = vcmask 523264
      %v601 = vsel %vm599, %v480, 0
      %603 = vmatprep.subr.bf16.mxu0 %v568
      %604 = vmatpush1.bf16.msra.mxu0 %v567
      %605 = vmatprep.subr.bf16.mxu0 %v572
      %606 = vmatpush1.bf16.msra.mxu0 %v571
      %607 = vmatprep.subr.bf16.mxu0 %v576
      %608 = vmatpush1.bf16.msra.mxu0 %v575
      %609 = vmatprep.subr.bf16.mxu0 %v580
      %610 = vmatpush1.bf16.msra.mxu0 %v579
      %611 = vmatprep.subr.bf16.mxu0 0
      %612 = vmatpush1.bf16.msra.mxu0 0
      %613 = vmatprep.subr.bf16.mxu0 0
      %614 = vmatpush1.bf16.msra.mxu0 0
      %615 = vmatprep.subr.bf16.mxu0 0
      %616 = vmatpush1.bf16.msra.mxu0 0
      %617 = vmatprep.subr.bf16.mxu0 0
      %618 = vmatpush1.bf16.msra.mxu0 0
      %619 = vmatprep.subr.bf16.mxu0 0
      %620 = vmatpush1.bf16.msra.mxu0 0
      %621 = vmatprep.subr.bf16.mxu0 0
      %622 = vmatpush1.bf16.msra.mxu0 0
      %623 = vmatprep.subr.bf16.mxu0 0
      %624 = vmatpush1.bf16.msra.mxu0 0
      %625 = vmatprep.subr.bf16.mxu0 0
      %626 = vmatpush1.bf16.msra.mxu0 0
      %627 = vmatprep.subr.bf16.mxu0 0
      %628 = vmatpush1.bf16.msra.mxu0 0
      %629 = vmatprep.subr.bf16.mxu0 0
      %630 = vmatpush1.bf16.msra.mxu0 0
      %631 = vmatprep.subr.bf16.mxu0 0
      %632 = vmatpush1.bf16.msra.mxu0 0
      %633 = vmatprep.subr.bf16.mxu0 0
      %634 = vmatpush1.bf16.msra.mxu0 0
      %635 = vmatprep.mubr.bf16.mxu0 0
      %636 = vmatmul.mubr.bf16.gmra.mrb[0].mxu0 %v601
      %v637 = vpop.f32.mrb[0].mxu0
      %v638 = vadd.f32 %v502, %v637
      %v639 = vpop.f32.mrb[0].mxu0
      %v640 = vadd.f32 %v506, %v639
      %v641 = vpop.f32.mrb[0].mxu0
      %v642 = vadd.f32 %v502, %v641
      %v643 = vpop.f32.mrb[0].mxu0
      %v644 = vadd.f32 %v506, %v643
      %645 = vdwg.mxu0
      %646 = vmatprep.subr.bf16.mxu0 %v570
      %647 = vmatpush1.bf16.msra.mxu0 %v569
      %648 = vmatprep.subr.bf16.mxu0 %v574
      %649 = vmatpush1.bf16.msra.mxu0 %v573
      %650 = vmatprep.subr.bf16.mxu0 %v578
      %651 = vmatpush1.bf16.msra.mxu0 %v577
      %652 = vmatprep.subr.bf16.mxu0 %v582
      %653 = vmatpush1.bf16.msra.mxu0 %v581
      %654 = vmatprep.subr.bf16.mxu0 0
      %655 = vmatpush1.bf16.msra.mxu0 0
      %656 = vmatprep.subr.bf16.mxu0 0
      %657 = vmatpush1.bf16.msra.mxu0 0
      %658 = vmatprep.subr.bf16.mxu0 0
      %659 = vmatpush1.bf16.msra.mxu0 0
      %660 = vmatprep.subr.bf16.mxu0 0
      %661 = vmatpush1.bf16.msra.mxu0 0
      %662 = vmatprep.subr.bf16.mxu0 0
      %663 = vmatpush1.bf16.msra.mxu0 0
      %664 = vmatprep.subr.bf16.mxu0 0
      %665 = vmatpush1.bf16.msra.mxu0 0
      %666 = vmatprep.subr.bf16.mxu0 0
      %667 = vmatpush1.bf16.msra.mxu0 0
      %668 = vmatprep.subr.bf16.mxu0 0
      %669 = vmatpush1.bf16.msra.mxu0 0
      %670 = vmatprep.subr.bf16.mxu0 0
      %671 = vmatpush1.bf16.msra.mxu0 0
      %672 = vmatprep.subr.bf16.mxu0 0
      %673 = vmatpush1.bf16.msra.mxu0 0
      %674 = vmatprep.subr.bf16.mxu0 0
      %675 = vmatpush1.bf16.msra.mxu0 0
      %676 = vmatprep.subr.bf16.mxu0 0
      %677 = vmatpush1.bf16.msra.mxu0 0
      %678 = vmatprep.mubr.bf16.mxu0 0
      %679 = vmatmul.mubr.bf16.gmra.mrb[0].mxu0 %v601
      %v680 = vpop.f32.mrb[0].mxu0
      %v681 = vadd.f32 %v510, %v680
      %v682 = vpop.f32.mrb[0].mxu0
      %v683 = vadd.f32 %v514, %v682
      %v684 = vpop.f32.mrb[0].mxu0
      %v685 = vadd.f32 %v510, %v684
      %v686 = vpop.f32.mrb[0].mxu0
      %v687 = vadd.f32 %v514, %v686
      %688 = vdwg.mxu0
      %v689 = vmax.f32 %v638, 0.0
      %v690 = vmax.f32 %v640, 0.0
      %v691 = vmax.f32 %v681, 0.0
      %v692 = vmax.f32 %v683, 0.0
      %v693 = vmax.f32 %v642, 0.0
      %v694 = vmax.f32 %v644, 0.0
      %v695 = vmax.f32 %v685, 0.0
      %v696 = vmax.f32 %v687, 0.0
      %v697 = vpack.c.bf16 %v693, %v689
      %v698 = vpack.c.bf16 %v694, %v690
      %v699 = vpack.c.bf16 %v695, %v691
      %v700 = vpack.c.bf16 %v696, %v692
      %v701 = vld [vmem:[%s4] sm:$0xff]
      %v702 = vld [vmem:[%s4 + $0x8] sm:$0xff]
      %v703 = vld [vmem:[%s4 + $0x10] sm:$0xff]
      %v704 = vld [vmem:[%s4 + $0x18] sm:$0xff]
      %v705 = vld [vmem:[%s4 + $0x20] sm:$0xff]
      %v706 = vld [vmem:[%s4 + $0x28] sm:$0xff]
      %v707 = vld [vmem:[%s4 + $0x30] sm:$0xff]
      %v708 = vld [vmem:[%s4 + $0x38] sm:$0xff]
      %v709 = vld [vmem:[%s4 + $0x40] sm:$0xff]
      %v710 = vld [vmem:[%s4 + $0x48] sm:$0xff]
      %v711 = vld [vmem:[%s4 + $0x50] sm:$0xff]
      %v712 = vld [vmem:[%s4 + $0x58] sm:$0xff]
      %v713 = vld [vmem:[%s4 + $0x60] sm:$0xff]
      %v714 = vld [vmem:[%s4 + $0x68] sm:$0xff]
      %v715 = vld [vmem:[%s4 + $0x70] sm:$0xff]
      %v716 = vld [vmem:[%s4 + $0x78] sm:$0xff]
      %v717 = vld [vmem:[%s4 + $0x80] sm:$0xff]
      %v718 = vld [vmem:[%s4 + $0x88] sm:$0xff]
      %v719 = vld [vmem:[%s4 + $0x90] sm:$0xff]
      %v720 = vld [vmem:[%s4 + $0x98] sm:$0xff]
      %v721 = vld [vmem:[%s4 + $0xa0] sm:$0xff]
      %v722 = vld [vmem:[%s4 + $0xa8] sm:$0xff]
      %v723 = vld [vmem:[%s4 + $0xb0] sm:$0xff]
      %v724 = vld [vmem:[%s4 + $0xb8] sm:$0xff]
      %v725 = vld [vmem:[%s4 + $0xc0] sm:$0xff]
      %v726 = vld [vmem:[%s4 + $0xc8] sm:$0xff]
      %v727 = vld [vmem:[%s4 + $0xd0] sm:$0xff]
      %v728 = vld [vmem:[%s4 + $0xd8] sm:$0xff]
      %v729 = vld [vmem:[%s4 + $0xe0] sm:$0xff]
      %v730 = vld [vmem:[%s4 + $0xe8] sm:$0xff]
      %v731 = vld [vmem:[%s4 + $0xf0] sm:$0xff]
      %v732 = vld [vmem:[%s4 + $0xf8] sm:$0xff]
      %v733 = vld [vmem:[%s4 + $0x100] sm:$0xff]
      %v734 = vld [vmem:[%s4 + $0x108] sm:$0xff]
      %v735 = vld [vmem:[%s4 + $0x110] sm:$0xff]
      %v736 = vld [vmem:[%s4 + $0x118] sm:$0xff]
      %v737 = vld [vmem:[%s4 + $0x120] sm:$0xff]
      %v738 = vld [vmem:[%s4 + $0x128] sm:$0xff]
      %v739 = vld [vmem:[%s4 + $0x130] sm:$0xff]
      %v740 = vld [vmem:[%s4 + $0x138] sm:$0xff]
      %v741 = vld [vmem:[%s4 + $0x140] sm:$0xff]
      %v742 = vld [vmem:[%s4 + $0x148] sm:$0xff]
      %v743 = vld [vmem:[%s4 + $0x150] sm:$0xff]
      %v744 = vld [vmem:[%s4 + $0x158] sm:$0xff]
      %v745 = vld [vmem:[%s4 + $0x160] sm:$0xff]
      %v746 = vld [vmem:[%s4 + $0x168] sm:$0xff]
      %v747 = vld [vmem:[%s4 + $0x170] sm:$0xff]
      %v748 = vld [vmem:[%s4 + $0x178] sm:$0xff]
      %v749 = vld [vmem:[%s4 + $0x180] sm:$0xff]
      %v750 = vld [vmem:[%s4 + $0x188] sm:$0xff]
      %v751 = vld [vmem:[%s4 + $0x190] sm:$0xff]
      %v752 = vld [vmem:[%s4 + $0x198] sm:$0xff]
      %v753 = vld [vmem:[%s4 + $0x1a0] sm:$0xff]
      %v754 = vld [vmem:[%s4 + $0x1a8] sm:$0xff]
      %v755 = vld [vmem:[%s4 + $0x1b0] sm:$0xff]
      %v756 = vld [vmem:[%s4 + $0x1b8] sm:$0xff]
      %v757 = vld [vmem:[%s4 + $0x1c0] sm:$0xff]
      %v758 = vld [vmem:[%s4 + $0x1c8] sm:$0xff]
      %v759 = vld [vmem:[%s4 + $0x1d0] sm:$0xff]
      %v760 = vld [vmem:[%s4 + $0x1d8] sm:$0xff]
      %v761 = vld [vmem:[%s4 + $0x1e0] sm:$0xff]
      %v762 = vld [vmem:[%s4 + $0x1e8] sm:$0xff]
      %v763 = vld [vmem:[%s4 + $0x1f0] sm:$0xff]
      %v764 = vld [vmem:[%s4 + $0x1f8] sm:$0xff]
      %v829 = vunpack.c.l.b16 %v701
      %v830 = vunpack.c.h.b16 %v701
      %v831 = vunpack.c.l.b16 %v702
      %v832 = vunpack.c.h.b16 %v702
      %v833 = vunpack.c.l.b16 %v703
      %v834 = vunpack.c.h.b16 %v703
      %v835 = vunpack.c.l.b16 %v704
      %v836 = vunpack.c.h.b16 %v704
      %v837 = vunpack.c.l.b16 %v705
      %v838 = vunpack.c.h.b16 %v705
      %v839 = vunpack.c.l.b16 %v706
      %v840 = vunpack.c.h.b16 %v706
      %v841 = vunpack.c.l.b16 %v707
      %v842 = vunpack.c.h.b16 %v707
      %v843 = vunpack.c.l.b16 %v708
      %v844 = vunpack.c.h.b16 %v708
      %v845 = vunpack.c.l.b16 %v709
      %v846 = vunpack.c.h.b16 %v709
      %v847 = vunpack.c.l.b16 %v710
      %v848 = vunpack.c.h.b16 %v710
      %v849 = vunpack.c.l.b16 %v711
      %v850 = vunpack.c.h.b16 %v711
      %v851 = vunpack.c.l.b16 %v712
      %v852 = vunpack.c.h.b16 %v712
      %v853 = vunpack.c.l.b16 %v713
      %v854 = vunpack.c.h.b16 %v713
      %v855 = vunpack.c.l.b16 %v714
      %v856 = vunpack.c.h.b16 %v714
      %v857 = vunpack.c.l.b16 %v715
      %v858 = vunpack.c.h.b16 %v715
      %v859 = vunpack.c.l.b16 %v716
      %v860 = vunpack.c.h.b16 %v716
      %v861 = vunpack.c.l.b16 %v717
      %v862 = vunpack.c.h.b16 %v717
      %v863 = vunpack.c.l.b16 %v718
      %v864 = vunpack.c.h.b16 %v718
      %v865 = vunpack.c.l.b16 %v719
      %v866 = vunpack.c.h.b16 %v719
      %v867 = vunpack.c.l.b16 %v720
      %v868 = vunpack.c.h.b16 %v720
      %v869 = vunpack.c.l.b16 %v721
      %v870 = vunpack.c.h.b16 %v721
      %v871 = vunpack.c.l.b16 %v722
      %v872 = vunpack.c.h.b16 %v722
      %v873 = vunpack.c.l.b16 %v723
      %v874 = vunpack.c.h.b16 %v723
      %v875 = vunpack.c.l.b16 %v724
      %v876 = vunpack.c.h.b16 %v724
      %v877 = vunpack.c.l.b16 %v725
      %v878 = vunpack.c.h.b16 %v725
      %v879 = vunpack.c.l.b16 %v726
      %v880 = vunpack.c.h.b16 %v726
      %v881 = vunpack.c.l.b16 %v727
      %v882 = vunpack.c.h.b16 %v727
      %v883 = vunpack.c.l.b16 %v728
      %v884 = vunpack.c.h.b16 %v728
      %v885 = vunpack.c.l.b16 %v729
      %v886 = vunpack.c.h.b16 %v729
      %v887 = vunpack.c.l.b16 %v730
      %v888 = vunpack.c.h.b16 %v730
      %v889 = vunpack.c.l.b16 %v731
      %v890 = vunpack.c.h.b16 %v731
      %v891 = vunpack.c.l.b16 %v732
      %v892 = vunpack.c.h.b16 %v732
      %v893 = vunpack.c.l.b16 %v733
      %v894 = vunpack.c.h.b16 %v733
      %v895 = vunpack.c.l.b16 %v734
      %v896 = vunpack.c.h.b16 %v734
      %v897 = vunpack.c.l.b16 %v735
      %v898 = vunpack.c.h.b16 %v735
      %v899 = vunpack.c.l.b16 %v736
      %v900 = vunpack.c.h.b16 %v736
      %v901 = vunpack.c.l.b16 %v737
      %v902 = vunpack.c.h.b16 %v737
      %v903 = vunpack.c.l.b16 %v738
      %v904 = vunpack.c.h.b16 %v738
      %v905 = vunpack.c.l.b16 %v739
      %v906 = vunpack.c.h.b16 %v739
      %v907 = vunpack.c.l.b16 %v740
      %v908 = vunpack.c.h.b16 %v740
      %v909 = vunpack.c.l.b16 %v741
      %v910 = vunpack.c.h.b16 %v741
      %v911 = vunpack.c.l.b16 %v742
      %v912 = vunpack.c.h.b16 %v742
      %v913 = vunpack.c.l.b16 %v743
      %v914 = vunpack.c.h.b16 %v743
      %v915 = vunpack.c.l.b16 %v744
      %v916 = vunpack.c.h.b16 %v744
      %v917 = vunpack.c.l.b16 %v745
      %v918 = vunpack.c.h.b16 %v745
      %v919 = vunpack.c.l.b16 %v746
      %v920 = vunpack.c.h.b16 %v746
      %v921 = vunpack.c.l.b16 %v747
      %v922 = vunpack.c.h.b16 %v747
      %v923 = vunpack.c.l.b16 %v748
      %v924 = vunpack.c.h.b16 %v748
      %v925 = vunpack.c.l.b16 %v749
      %v926 = vunpack.c.h.b16 %v749
      %v927 = vunpack.c.l.b16 %v750
      %v928 = vunpack.c.h.b16 %v750
      %v929 = vunpack.c.l.b16 %v751
      %v930 = vunpack.c.h.b16 %v751
      %v931 = vunpack.c.l.b16 %v752
      %v932 = vunpack.c.h.b16 %v752
      %v933 = vunpack.c.l.b16 %v753
      %v934 = vunpack.c.h.b16 %v753
      %v935 = vunpack.c.l.b16 %v754
      %v936 = vunpack.c.h.b16 %v754
      %v937 = vunpack.c.l.b16 %v755
      %v938 = vunpack.c.h.b16 %v755
      %v939 = vunpack.c.l.b16 %v756
      %v940 = vunpack.c.h.b16 %v756
      %v941 = vunpack.c.l.b16 %v757
      %v942 = vunpack.c.h.b16 %v757
      %v943 = vunpack.c.l.b16 %v758
      %v944 = vunpack.c.h.b16 %v758
      %v945 = vunpack.c.l.b16 %v759
      %v946 = vunpack.c.h.b16 %v759
      %v947 = vunpack.c.l.b16 %v760
      %v948 = vunpack.c.h.b16 %v760
      %v949 = vunpack.c.l.b16 %v761
      %v950 = vunpack.c.h.b16 %v761
      %v951 = vunpack.c.l.b16 %v762
      %v952 = vunpack.c.h.b16 %v762
      %v953 = vunpack.c.l.b16 %v763
      %v954 = vunpack.c.h.b16 %v763
      %v955 = vunpack.c.l.b16 %v764
      %v956 = vunpack.c.h.b16 %v764
      %v957 = vpack.c.b16 %v831, %v829
      %v958 = vpack.c.b16 %v832, %v830
      %v959 = vpack.c.b16 %v835, %v833
      %v960 = vpack.c.b16 %v836, %v834
      %v961 = vpack.c.b16 %v839, %v837
      %v962 = vpack.c.b16 %v840, %v838
      %v963 = vpack.c.b16 %v843, %v841
      %v964 = vpack.c.b16 %v844, %v842
      %v965 = vpack.c.b16 %v847, %v845
      %v966 = vpack.c.b16 %v848, %v846
      %v967 = vpack.c.b16 %v851, %v849
      %v968 = vpack.c.b16 %v852, %v850
      %v969 = vpack.c.b16 %v855, %v853
      %v970 = vpack.c.b16 %v856, %v854
      %v971 = vpack.c.b16 %v859, %v857
      %v972 = vpack.c.b16 %v860, %v858
      %v973 = vpack.c.b16 %v863, %v861
      %v974 = vpack.c.b16 %v864, %v862
      %v975 = vpack.c.b16 %v867, %v865
      %v976 = vpack.c.b16 %v868, %v866
      %v977 = vpack.c.b16 %v871, %v869
      %v978 = vpack.c.b16 %v872, %v870
      %v979 = vpack.c.b16 %v875, %v873
      %v980 = vpack.c.b16 %v876, %v874
      %v981 = vpack.c.b16 %v879, %v877
      %v982 = vpack.c.b16 %v880, %v878
      %v983 = vpack.c.b16 %v883, %v881
      %v984 = vpack.c.b16 %v884, %v882
      %v985 = vpack.c.b16 %v887, %v885
      %v986 = vpack.c.b16 %v888, %v886
      %v987 = vpack.c.b16 %v891, %v889
      %v988 = vpack.c.b16 %v892, %v890
      %v989 = vpack.c.b16 %v895, %v893
      %v990 = vpack.c.b16 %v896, %v894
      %v991 = vpack.c.b16 %v899, %v897
      %v992 = vpack.c.b16 %v900, %v898
      %v993 = vpack.c.b16 %v903, %v901
      %v994 = vpack.c.b16 %v904, %v902
      %v995 = vpack.c.b16 %v907, %v905
      %v996 = vpack.c.b16 %v908, %v906
      %v997 = vpack.c.b16 %v911, %v909
      %v998 = vpack.c.b16 %v912, %v910
      %v999 = vpack.c.b16 %v915, %v913
      %v1000 = vpack.c.b16 %v916, %v914
      %v1001 = vpack.c.b16 %v919, %v917
      %v1002 = vpack.c.b16 %v920, %v918
      %v1003 = vpack.c.b16 %v923, %v921
      %v1004 = vpack.c.b16 %v924, %v922
      %v1005 = vpack.c.b16 %v927, %v925
      %v1006 = vpack.c.b16 %v928, %v926
      %v1007 = vpack.c.b16 %v931, %v929
      %v1008 = vpack.c.b16 %v932, %v930
      %v1009 = vpack.c.b16 %v935, %v933
      %v1010 = vpack.c.b16 %v936, %v934
      %v1011 = vpack.c.b16 %v939, %v937
      %v1012 = vpack.c.b16 %v940, %v938
      %v1013 = vpack.c.b16 %v943, %v941
      %v1014 = vpack.c.b16 %v944, %v942
      %v1015 = vpack.c.b16 %v947, %v945
      %v1016 = vpack.c.b16 %v948, %v946
      %v1017 = vpack.c.b16 %v951, %v949
      %v1018 = vpack.c.b16 %v952, %v950
      %v1019 = vpack.c.b16 %v955, %v953
      %v1020 = vpack.c.b16 %v956, %v954
      %1085 = vmatprep.subr.bf16.mxu0 %v958
      %1086 = vmatpush1.bf16.msra.mxu0 %v957
      %1087 = vmatprep.subr.bf16.mxu0 %v960
      %1088 = vmatpush1.bf16.msra.mxu0 %v959
      %1089 = vmatprep.subr.bf16.mxu0 %v962
      %1090 = vmatpush1.bf16.msra.mxu0 %v961
      %1091 = vmatprep.subr.bf16.mxu0 %v964
      %1092 = vmatpush1.bf16.msra.mxu0 %v963
      %1093 = vmatprep.subr.bf16.mxu0 %v966
      %1094 = vmatpush1.bf16.msra.mxu0 %v965
      %1095 = vmatprep.subr.bf16.mxu0 %v968
      %1096 = vmatpush1.bf16.msra.mxu0 %v967
      %1097 = vmatprep.subr.bf16.mxu0 %v970
      %1098 = vmatpush1.bf16.msra.mxu0 %v969
      %1099 = vmatprep.subr.bf16.mxu0 %v972
      %1100 = vmatpush1.bf16.msra.mxu0 %v971
      %1101 = vmatprep.subr.bf16.mxu0 %v974
      %1102 = vmatpush1.bf16.msra.mxu0 %v973
      %1103 = vmatprep.subr.bf16.mxu0 %v976
      %1104 = vmatpush1.bf16.msra.mxu0 %v975
      %1105 = vmatprep.subr.bf16.mxu0 %v978
      %1106 = vmatpush1.bf16.msra.mxu0 %v977
      %1107 = vmatprep.subr.bf16.mxu0 %v980
      %1108 = vmatpush1.bf16.msra.mxu0 %v979
      %1109 = vmatprep.subr.bf16.mxu0 %v982
      %1110 = vmatpush1.bf16.msra.mxu0 %v981
      %1111 = vmatprep.subr.bf16.mxu0 %v984
      %1112 = vmatpush1.bf16.msra.mxu0 %v983
      %1113 = vmatprep.subr.bf16.mxu0 %v986
      %1114 = vmatpush1.bf16.msra.mxu0 %v985
      %1115 = vmatprep.subr.bf16.mxu0 %v988
      %1116 = vmatpush1.bf16.msra.mxu0 %v987
      %1117 = vmatprep.mubr.bf16.mxu0 %v698
      %1118 = vmatmul.mubr.bf16.gmra.mrb[0].mxu0 %v697
      %v1119 = vpop.f32.mrb[0].mxu0
      %v1120 = vadd.f32 0.0, %v1119
      %v1121 = vpop.f32.mrb[0].mxu0
      %v1122 = vadd.f32 0.0, %v1121
      %v1123 = vpop.f32.mrb[0].mxu0
      %v1124 = vadd.f32 0.0, %v1123
      %v1125 = vpop.f32.mrb[0].mxu0
      %v1126 = vadd.f32 0.0, %v1125
      %1127 = vdwg.mxu0
      %1128 = vmatprep.subr.bf16.mxu0 %v990
      %1129 = vmatpush1.bf16.msra.mxu0 %v989
      %1130 = vmatprep.subr.bf16.mxu0 %v992
      %1131 = vmatpush1.bf16.msra.mxu0 %v991
      %1132 = vmatprep.subr.bf16.mxu0 %v994
      %1133 = vmatpush1.bf16.msra.mxu0 %v993
      %1134 = vmatprep.subr.bf16.mxu0 %v996
      %1135 = vmatpush1.bf16.msra.mxu0 %v995
      %1136 = vmatprep.subr.bf16.mxu0 %v998
      %1137 = vmatpush1.bf16.msra.mxu0 %v997
      %1138 = vmatprep.subr.bf16.mxu0 %v1000
      %1139 = vmatpush1.bf16.msra.mxu0 %v999
      %1140 = vmatprep.subr.bf16.mxu0 %v1002
      %1141 = vmatpush1.bf16.msra.mxu0 %v1001
      %1142 = vmatprep.subr.bf16.mxu0 %v1004
      %1143 = vmatpush1.bf16.msra.mxu0 %v1003
      %1144 = vmatprep.subr.bf16.mxu0 %v1006
      %1145 = vmatpush1.bf16.msra.mxu0 %v1005
      %1146 = vmatprep.subr.bf16.mxu0 %v1008
      %1147 = vmatpush1.bf16.msra.mxu0 %v1007
      %1148 = vmatprep.subr.bf16.mxu0 %v1010
      %1149 = vmatpush1.bf16.msra.mxu0 %v1009
      %1150 = vmatprep.subr.bf16.mxu0 %v1012
      %1151 = vmatpush1.bf16.msra.mxu0 %v1011
      %1152 = vmatprep.subr.bf16.mxu0 %v1014
      %1153 = vmatpush1.bf16.msra.mxu0 %v1013
      %1154 = vmatprep.subr.bf16.mxu0 %v1016
      %1155 = vmatpush1.bf16.msra.mxu0 %v1015
      %1156 = vmatprep.subr.bf16.mxu0 %v1018
      %1157 = vmatpush1.bf16.msra.mxu0 %v1017
      %1158 = vmatprep.subr.bf16.mxu0 %v1020
      %1159 = vmatpush1.bf16.msra.mxu0 %v1019
      %1160 = vmatprep.mubr.bf16.mxu0 %v700
      %1161 = vmatmul.mubr.bf16.gmra.mrb[0].mxu0 %v699
      %v1162 = vpop.f32.mrb[0].mxu0
      %v1163 = vadd.f32 %v1120, %v1162
      %v1164 = vpop.f32.mrb[0].mxu0
      %v1165 = vadd.f32 %v1122, %v1164
      %v1166 = vpop.f32.mrb[0].mxu0
      %v1167 = vadd.f32 %v1124, %v1166
      %v1168 = vpop.f32.mrb[0].mxu0
      %v1169 = vadd.f32 %v1126, %v1168
      %1170 = vdwg.mxu0
      %v1171 = vmax.f32 %v1163, 0.0
      %v1172 = vmax.f32 %v1165, 0.0
      %v1173 = vmax.f32 %v1167, 0.0
      %v1174 = vmax.f32 %v1169, 0.0
      %v1175 = vpack.c.bf16 %v1173, %v1171
      %v1176 = vpack.c.bf16 %v1174, %v1172
      %v1177 = vld [vmem:[%s5] sm:$0xf]
      %v1178 = vld [vmem:[%s5 + $0x4] sm:$0xf]
      %v1179 = vld [vmem:[%s5 + $0x8] sm:$0xf]
      %v1180 = vld [vmem:[%s5 + $0xc] sm:$0xf]
      %v1181 = vld [vmem:[%s5 + $0x10] sm:$0xf]
      %v1182 = vld [vmem:[%s5 + $0x14] sm:$0xf]
      %v1183 = vld [vmem:[%s5 + $0x18] sm:$0xf]
      %v1184 = vld [vmem:[%s5 + $0x1c] sm:$0xf]
      %v1185 = vld [vmem:[%s5 + $0x20] sm:$0xf]
      %v1186 = vld [vmem:[%s5 + $0x24] sm:$0xf]
      %v1187 = vld [vmem:[%s5 + $0x28] sm:$0xf]
      %v1188 = vld [vmem:[%s5 + $0x2c] sm:$0xf]
      %v1189 = vld [vmem:[%s5 + $0x30] sm:$0xf]
      %v1190 = vld [vmem:[%s5 + $0x34] sm:$0xf]
      %v1191 = vld [vmem:[%s5 + $0x38] sm:$0xf]
      %v1192 = vld [vmem:[%s5 + $0x3c] sm:$0xf]
      %v1193 = vld [vmem:[%s5 + $0x40] sm:$0xf]
      %v1194 = vld [vmem:[%s5 + $0x44] sm:$0xf]
      %v1195 = vld [vmem:[%s5 + $0x48] sm:$0xf]
      %v1196 = vld [vmem:[%s5 + $0x4c] sm:$0xf]
      %v1197 = vld [vmem:[%s5 + $0x50] sm:$0xf]
      %v1198 = vld [vmem:[%s5 + $0x54] sm:$0xf]
      %v1199 = vld [vmem:[%s5 + $0x58] sm:$0xf]
      %v1200 = vld [vmem:[%s5 + $0x5c] sm:$0xf]
      %v1201 = vld [vmem:[%s5 + $0x60] sm:$0xf]
      %v1202 = vld [vmem:[%s5 + $0x64] sm:$0xf]
      %v1203 = vld [vmem:[%s5 + $0x68] sm:$0xf]
      %v1204 = vld [vmem:[%s5 + $0x6c] sm:$0xf]
      %v1205 = vld [vmem:[%s5 + $0x70] sm:$0xf]
      %v1206 = vld [vmem:[%s5 + $0x74] sm:$0xf]
      %v1207 = vld [vmem:[%s5 + $0x78] sm:$0xf]
      %v1208 = vld [vmem:[%s5 + $0x7c] sm:$0xf]
      %v1209 = vld [vmem:[%s6] sm:$0xf]
      %v1210 = vld [vmem:[%s6 + $0x4] sm:$0xf]
      %v1211 = vld [vmem:[%s6 + $0x8] sm:$0xf]
      %v1215 = vunpack.c.l.b16 %v1209
      %v1216 = vunpack.c.l.b16 %v1210
      %v1217 = vunpack.c.l.b16 %v1211
      %v1218 = vpack.c.b16 %v1216, %v1215
      %v1219 = vpack.c.b16 %v1217, %v1217
      %v1222 = vsel %vm433, %v1219, 0
      %1224 = vmatprep.subr.bf16.mxu0 0
      %1225 = vmatpush1.bf16.msra.mxu0 %v1218
      %1226 = vmatprep.subr.bf16.mxu0 0
      %1227 = vmatpush1.bf16.msra.mxu0 %v1222
      %1228 = vmatprep.subr.bf16.mxu0 0
      %1229 = vmatpush1.bf16.msra.mxu0 0
      %1230 = vmatprep.subr.bf16.mxu0 0
      %1231 = vmatpush1.bf16.msra.mxu0 0
      %1232 = vmatprep.subr.bf16.mxu0 0
      %1233 = vmatpush1.bf16.msra.mxu0 0
      %1234 = vmatprep.subr.bf16.mxu0 0
      %1235 = vmatpush1.bf16.msra.mxu0 0
      %1236 = vmatprep.subr.bf16.mxu0 0
      %1237 = vmatpush1.bf16.msra.mxu0 0
      %1238 = vmatprep.subr.bf16.mxu0 0
      %1239 = vmatpush1.bf16.msra.mxu0 0
      %1240 = vmatprep.subr.bf16.mxu0 0
      %1241 = vmatpush1.bf16.msra.mxu0 0
      %1242 = vmatprep.subr.bf16.mxu0 0
      %1243 = vmatpush1.bf16.msra.mxu0 0
      %1244 = vmatprep.subr.bf16.mxu0 0
      %1245 = vmatpush1.bf16.msra.mxu0 0
      %1246 = vmatprep.subr.bf16.mxu0 0
      %1247 = vmatpush1.bf16.msra.mxu0 0
      %1248 = vmatprep.subr.bf16.mxu0 0
      %1249 = vmatpush1.bf16.msra.mxu0 0
      %1250 = vmatprep.subr.bf16.mxu0 0
      %1251 = vmatpush1.bf16.msra.mxu0 0
      %1252 = vmatprep.subr.bf16.mxu0 0
      %1253 = vmatpush1.bf16.msra.mxu0 0
      %1254 = vmatprep.subr.bf16.mxu0 0
      %1255 = vmatpush1.bf16.msra.mxu0 0
      %1256 = vmatprep.mubr.bf16.mxu0 0
      %1257 = vmatmul.mubr.bf16.gmra.mrb[0].mxu0 %v431
      %v1258 = vpop.f32.mrb[0].mxu0
      %v1259 = vadd.f32 0.0, %v1258
      %v1260 = vpop.f32.mrb[0].mxu0
      %v1261 = vpop.f32.mrb[0].mxu0
      %v1262 = vadd.f32 0.0, %v1261
      %v1263 = vpop.f32.mrb[0].mxu0
      %1264 = vdwg.mxu0
      %v1297 = vunpack.c.l.b16 %v1177
      %v1298 = vunpack.c.l.b16 %v1178
      %v1299 = vunpack.c.l.b16 %v1179
      %v1300 = vunpack.c.l.b16 %v1180
      %v1301 = vunpack.c.l.b16 %v1181
      %v1302 = vunpack.c.l.b16 %v1182
      %v1303 = vunpack.c.l.b16 %v1183
      %v1304 = vunpack.c.l.b16 %v1184
      %v1305 = vunpack.c.l.b16 %v1185
      %v1306 = vunpack.c.l.b16 %v1186
      %v1307 = vunpack.c.l.b16 %v1187
      %v1308 = vunpack.c.l.b16 %v1188
      %v1309 = vunpack.c.l.b16 %v1189
      %v1310 = vunpack.c.l.b16 %v1190
      %v1311 = vunpack.c.l.b16 %v1191
      %v1312 = vunpack.c.l.b16 %v1192
      %v1313 = vunpack.c.l.b16 %v1193
      %v1314 = vunpack.c.l.b16 %v1194
      %v1315 = vunpack.c.l.b16 %v1195
      %v1316 = vunpack.c.l.b16 %v1196
      %v1317 = vunpack.c.l.b16 %v1197
      %v1318 = vunpack.c.l.b16 %v1198
      %v1319 = vunpack.c.l.b16 %v1199
      %v1320 = vunpack.c.l.b16 %v1200
      %v1321 = vunpack.c.l.b16 %v1201
      %v1322 = vunpack.c.l.b16 %v1202
      %v1323 = vunpack.c.l.b16 %v1203
      %v1324 = vunpack.c.l.b16 %v1204
      %v1325 = vunpack.c.l.b16 %v1205
      %v1326 = vunpack.c.l.b16 %v1206
      %v1327 = vunpack.c.l.b16 %v1207
      %v1328 = vunpack.c.l.b16 %v1208
      %v1329 = vpack.c.b16 %v1298, %v1297
      %v1330 = vpack.c.b16 %v1300, %v1299
      %v1331 = vpack.c.b16 %v1302, %v1301
      %v1332 = vpack.c.b16 %v1304, %v1303
      %v1333 = vpack.c.b16 %v1306, %v1305
      %v1334 = vpack.c.b16 %v1308, %v1307
      %v1335 = vpack.c.b16 %v1310, %v1309
      %v1336 = vpack.c.b16 %v1312, %v1311
      %v1337 = vpack.c.b16 %v1314, %v1313
      %v1338 = vpack.c.b16 %v1316, %v1315
      %v1339 = vpack.c.b16 %v1318, %v1317
      %v1340 = vpack.c.b16 %v1320, %v1319
      %v1341 = vpack.c.b16 %v1322, %v1321
      %v1342 = vpack.c.b16 %v1324, %v1323
      %v1343 = vpack.c.b16 %v1326, %v1325
      %v1344 = vpack.c.b16 %v1328, %v1327
      %1361 = vmatprep.subr.bf16.mxu0 0
      %1362 = vmatpush1.bf16.msra.mxu0 %v1329
      %1363 = vmatprep.subr.bf16.mxu0 0
      %1364 = vmatpush1.bf16.msra.mxu0 %v1330
      %1365 = vmatprep.subr.bf16.mxu0 0
      %1366 = vmatpush1.bf16.msra.mxu0 %v1331
      %1367 = vmatprep.subr.bf16.mxu0 0
      %1368 = vmatpush1.bf16.msra.mxu0 %v1332
      %1369 = vmatprep.subr.bf16.mxu0 0
      %1370 = vmatpush1.bf16.msra.mxu0 %v1333
      %1371 = vmatprep.subr.bf16.mxu0 0
      %1372 = vmatpush1.bf16.msra.mxu0 %v1334
      %1373 = vmatprep.subr.bf16.mxu0 0
      %1374 = vmatpush1.bf16.msra.mxu0 %v1335
      %1375 = vmatprep.subr.bf16.mxu0 0
      %1376 = vmatpush1.bf16.msra.mxu0 %v1336
      %1377 = vmatprep.subr.bf16.mxu0 0
      %1378 = vmatpush1.bf16.msra.mxu0 %v1337
      %1379 = vmatprep.subr.bf16.mxu0 0
      %1380 = vmatpush1.bf16.msra.mxu0 %v1338
      %1381 = vmatprep.subr.bf16.mxu0 0
      %1382 = vmatpush1.bf16.msra.mxu0 %v1339
      %1383 = vmatprep.subr.bf16.mxu0 0
      %1384 = vmatpush1.bf16.msra.mxu0 %v1340
      %1385 = vmatprep.subr.bf16.mxu0 0
      %1386 = vmatpush1.bf16.msra.mxu0 %v1341
      %1387 = vmatprep.subr.bf16.mxu0 0
      %1388 = vmatpush1.bf16.msra.mxu0 %v1342
      %1389 = vmatprep.subr.bf16.mxu0 0
      %1390 = vmatpush1.bf16.msra.mxu0 %v1343
      %1391 = vmatprep.subr.bf16.mxu0 0
      %1392 = vmatpush1.bf16.msra.mxu0 %v1344
      %1393 = vmatprep.mubr.bf16.mxu0 %v1176
      %1394 = vmatmul.mubr.bf16.gmra.mrb[0].mxu0 %v1175
      %v1395 = vpop.f32.mrb[0].mxu0
      %v1396 = vadd.f32 %v1259, %v1395
      %v1397 = vpop.f32.mrb[0].mxu0
      %v1398 = vpop.f32.mrb[0].mxu0
      %v1399 = vadd.f32 %v1262, %v1398
      %v1400 = vpop.f32.mrb[0].mxu0
      %1401 = vdwg.mxu0
      %v1402 = vmax.f32 %v1396, 0.0
      %v1403 = vmax.f32 %v1399, 0.0
      %v1404 = vpack.c.bf16 %v1403, %v1402
      %v1405 = vld [vmem:[%s7] sm:$0xf]
      %v1406 = vld [vmem:[%s7 + $0x4] sm:$0xf]
      %v1407 = vld [vmem:[%s7 + $0x8] sm:$0xf]
      %v1408 = vld [vmem:[%s7 + $0xc] sm:$0xf]
      %v1409 = vld [vmem:[%s7 + $0x10] sm:$0xf]
      %v1410 = vld [vmem:[%s7 + $0x14] sm:$0xf]
      %v1411 = vld [vmem:[%s7 + $0x18] sm:$0xf]
      %v1412 = vld [vmem:[%s7 + $0x1c] sm:$0xf]
      %v1413 = vld [vmem:[%s7 + $0x20] sm:$0xf]
      %v1414 = vld [vmem:[%s7 + $0x24] sm:$0xf]
      %v1415 = vld [vmem:[%s7 + $0x28] sm:$0xf]
      %v1416 = vld [vmem:[%s7 + $0x2c] sm:$0xf]
      %v1417 = vld [vmem:[%s7 + $0x30] sm:$0xf]
      %v1418 = vld [vmem:[%s7 + $0x34] sm:$0xf]
      %v1419 = vld [vmem:[%s7 + $0x38] sm:$0xf]
      %v1420 = vld [vmem:[%s7 + $0x3c] sm:$0xf]
      %v1421 = vld [vmem:[%s8] sm:$0x1]
      %v1423 = vlaneseq
      %v1424 = vshrl.u32 %v1423, 7
      %v1425 = vsub.s32 0, %v1424
      %v1426 = vrot.slane %v1421, %v1425
      %v1444 = vunpack.c.l.b16 %v1405
      %v1445 = vunpack.c.l.b16 %v1406
      %v1446 = vunpack.c.l.b16 %v1407
      %v1447 = vunpack.c.l.b16 %v1408
      %v1448 = vunpack.c.l.b16 %v1409
      %v1449 = vunpack.c.l.b16 %v1410
      %v1450 = vunpack.c.l.b16 %v1411
      %v1451 = vunpack.c.l.b16 %v1412
      %v1452 = vunpack.c.l.b16 %v1413
      %v1453 = vunpack.c.l.b16 %v1414
      %v1454 = vunpack.c.l.b16 %v1415
      %v1455 = vunpack.c.l.b16 %v1416
      %v1456 = vunpack.c.l.b16 %v1417
      %v1457 = vunpack.c.l.b16 %v1418
      %v1458 = vunpack.c.l.b16 %v1419
      %v1459 = vunpack.c.l.b16 %v1420
      %v1460 = vpack.c.b16 %v1445, %v1444
      %v1461 = vpack.c.b16 %v1447, %v1446
      %v1462 = vpack.c.b16 %v1449, %v1448
      %v1463 = vpack.c.b16 %v1451, %v1450
      %v1464 = vpack.c.b16 %v1453, %v1452
      %v1465 = vpack.c.b16 %v1455, %v1454
      %v1466 = vpack.c.b16 %v1457, %v1456
      %v1467 = vpack.c.b16 %v1459, %v1458
      %1476 = vmatprep.subr.bf16.mxu0 0
      %1477 = vmatpush1.bf16.msra.mxu0 %v1460
      %1478 = vmatprep.subr.bf16.mxu0 0
      %1479 = vmatpush1.bf16.msra.mxu0 %v1461
      %1480 = vmatprep.subr.bf16.mxu0 0
      %1481 = vmatpush1.bf16.msra.mxu0 %v1462
      %1482 = vmatprep.subr.bf16.mxu0 0
      %1483 = vmatpush1.bf16.msra.mxu0 %v1463
      %1484 = vmatprep.subr.bf16.mxu0 0
      %1485 = vmatpush1.bf16.msra.mxu0 %v1464
      %1486 = vmatprep.subr.bf16.mxu0 0
      %1487 = vmatpush1.bf16.msra.mxu0 %v1465
      %1488 = vmatprep.subr.bf16.mxu0 0
      %1489 = vmatpush1.bf16.msra.mxu0 %v1466
      %1490 = vmatprep.subr.bf16.mxu0 0
      %1491 = vmatpush1.bf16.msra.mxu0 %v1467
      %1492 = vmatprep.subr.bf16.mxu0 0
      %1493 = vmatpush1.bf16.msra.mxu0 0
      %1494 = vmatprep.subr.bf16.mxu0 0
      %1495 = vmatpush1.bf16.msra.mxu0 0
      %1496 = vmatprep.subr.bf16.mxu0 0
      %1497 = vmatpush1.bf16.msra.mxu0 0
      %1498 = vmatprep.subr.bf16.mxu0 0
      %1499 = vmatpush1.bf16.msra.mxu0 0
      %1500 = vmatprep.subr.bf16.mxu0 0
      %1501 = vmatpush1.bf16.msra.mxu0 0
      %1502 = vmatprep.subr.bf16.mxu0 0
      %1503 = vmatpush1.bf16.msra.mxu0 0
      %1504 = vmatprep.subr.bf16.mxu0 0
      %1505 = vmatpush1.bf16.msra.mxu0 0
      %1506 = vmatprep.subr.bf16.mxu0 0
      %1507 = vmatpush1.bf16.msra.mxu0 0
      %1508 = vmatprep.mubr.bf16.mxu0 0
      %1509 = vmatmul.mubr.bf16.gmra.mrb[0].mxu0 %v1404
      %v1510 = vpop.f32.mrb[0].mxu0
      %v1511 = vadd.f32 %v1426, %v1510
      %v1512 = vpop.f32.mrb[0].mxu0
      %v1513 = vpop.f32.mrb[0].mxu0
      %v1514 = vadd.f32 %v1426, %v1513
      %v1515 = vpop.f32.mrb[0].mxu0
      %1516 = vdwg.mxu0
      %1517 = vst [vmem:[%s407] sm:$0xff] %v1511
      %1518 = vst [vmem:[%s407 + $0x8] sm:$0xff] %v1514
      %s1519 = smul.u32 2, %s25
      %p1520 = scmp.lt.s32.totalorder %s24, 1
      %s1521 = scalar_select %p1520, %s24, 1
      %p1522 = scmp.lt.s32.totalorder %s1519, 3
      %s1523 = scalar_select %p1522, %s1519, 3
      %s1524 = smul.addr %s1521, 4
      %s1525 = sadd.s32 %s1523, %s1524
      %s1526 = smul.addr %s1525, 8
      %s1527 = scalar_lea.vmem %s9, %s1526
      // Predicated region
      $region57: #{pointnet_densecls_forward.5} parent=55 // pred_check
        %p1528 = pneg %p258
      $region58: #{pointnet_densecls_forward.5} parent=55 // pred_check_branch
        %1530 = sbr.rel (%p1528) target = $region60
      $region59: #{pointnet_densecls_forward.5} parent=55 // pred_region
        %s1531 = smul.u32 2, %s25
      $region60: #{pointnet_densecls_forward.5} parent=55 // pred_fallthru
        _
    $region56: #{pointnet_densecls_forward.5} parent=5 // pred_fallthru
      _
    %p1532 = scmp.le.s32.totalorder 2, %s15
    // Predicated region
    $region61: #{pointnet_densecls_forward.5} parent=5 // pred_check
      %p1533 = pneg %p1532
    $region62: #{pointnet_densecls_forward.5} parent=5 // pred_check_branch
      %1535 = sbr.rel (%p1533) target = $region64
    $region63: #{pointnet_densecls_forward.5} parent=5 // pred_region
      %s1536 = ssub.s32 %s15, 2
      // Predicated region
      $region65: #{pointnet_densecls_forward.5} parent=63 // pred_check
        %p1537 = pneg %p264
      $region66: #{pointnet_densecls_forward.5} parent=63 // pred_check_branch
        %1539 = sbr.rel (%p1537) target = $region68
      $region67: #{pointnet_densecls_forward.5} parent=63 // pred_region
        %s1540 = smul.u32 2, %s27
        %p1541 = scmp.lt.s32.totalorder %s26, 1
        %s1542 = scalar_select %p1541, %s26, 1
        %p1543 = scmp.lt.s32.totalorder %s1540, 3
        %s1544 = scalar_select %p1543, %s1540, 3
        %s1545 = smul.addr %s1542, 4
        %s1546 = sadd.s32 %s1544, %s1545
        %s1547 = smul.addr %s1546, 8
        %s1548 = scalar_lea.vmem %s9, %s1547
      $region68: #{pointnet_densecls_forward.5} parent=63 // pred_fallthru
        _
    $region64: #{pointnet_densecls_forward.5} parent=5 // pred_fallthru
      _
  $region6: #{pointnet_densecls_forward.5} parent=0 // loop_footer
    %s19 = sadd.s32 1, %s15
  $region7: #{pointnet_densecls_forward.5} parent=0 // loop_footer_branch
    %14 = sbr.rel target = $region3
  $region8: #{pointnet_densecls_forward.5} parent=0 // loop_exit
    _

</llo_original>
